<compile_context>
chip_gen: v7x
topology: tpu7x:2x2x1
jax: 0.10.0
libtpu: 0.0.40
codegen_flags: <defaults>
</compile_context>

<pallas_src>
import numpy as np
import jax
import jax.numpy as jnp
from jax.experimental import pallas as pl
from jax.experimental.pallas import tpu as pltpu

NZ = 16       # cfg.nz
NGF = 8       # cfg.ngf
NC = 3        # cfg.nc
BATCH = 2
BN_EPS = 1e-5
LANE = 128
TILE_R = 512  # row tile for the final tanh layer (multiple of 256, lane-dense)

# (phase, window_offset) -> ConvTranspose2d(k=4, stride=2, pad=1) kernel tap
# index along that axis, or None if the tap has no contribution.
_TAP = {0: (3, 1, None), 1: (None, 2, 0)}


def _round_up(x, m):
    return ((x + m - 1) // m) * m


# ----------------------------- Pallas kernels ------------------------------

def _make_bn_relu_kernel(count):
    inv_n = 1.0 / float(count)

    def kernel(p_ref, w_ref, a_ref, g_ref, b_ref, o_ref):
        # p_ref: (R, Kp) bf16 patches; w_ref: (Kp, 128) bf16 weight matrix
        # a_ref: (128, 128) f32 phase-pooling matrix; g_ref/b_ref: (1, 128) f32
        y = jnp.dot(p_ref[...], w_ref[...], preferred_element_type=jnp.float32)
        # One-pass batch statistics: per-column sum and sum-of-squares, then
        # pool the phase column-groups of each channel via a small MXU matmul.
        s1 = jnp.sum(y, axis=0, keepdims=True)
        s2 = jnp.sum(y * y, axis=0, keepdims=True)
        stats = jnp.concatenate(
            [s1, s2, jnp.zeros((6, LANE), jnp.float32)], axis=0)        # (8,128)
        pooled = jnp.dot(stats, a_ref[...], preferred_element_type=jnp.float32)
        mean = pooled[0:1, :] * inv_n
        var = jnp.maximum(pooled[1:2, :] * inv_n - mean * mean, 0.0)
        yn = (y - mean) * jax.lax.rsqrt(var + BN_EPS)
        yn = yn * g_ref[...] + b_ref[...]
        o_ref[...] = jnp.maximum(yn, 0.0).astype(o_ref.dtype)

    return kernel


def _tanh_kernel(p_ref, w_ref, o_ref):
    y = jnp.dot(p_ref[...], w_ref[...], preferred_element_type=jnp.float32)
    o_ref[...] = jnp.tanh(y)


def _call_bn_relu(patches, w_mat, pool_mat, g_row, b_row, count):
    R, Kp = patches.shape
    return pl.pallas_call(
        _make_bn_relu_kernel(count),
        out_shape=jax.ShapeDtypeStruct((R, LANE), jnp.bfloat16),
        grid=(1,),
        in_specs=[pl.BlockSpec((R, Kp), lambda i: (0, 0)),
                  pl.BlockSpec((Kp, LANE), lambda i: (0, 0)),
                  pl.BlockSpec((LANE, LANE), lambda i: (0, 0)),
                  pl.BlockSpec((1, LANE), lambda i: (0, 0)),
                  pl.BlockSpec((1, LANE), lambda i: (0, 0))],
        out_specs=pl.BlockSpec((R, LANE), lambda i: (0, 0)),
        compiler_params=pltpu.CompilerParams(
            dimension_semantics=("arbitrary",)),
    )(patches, w_mat, pool_mat, g_row, b_row)


def _call_tanh(patches, w_mat):
    R, Kp = patches.shape
    tile_r = TILE_R if R % TILE_R == 0 else R
    return pl.pallas_call(
        _tanh_kernel,
        out_shape=jax.ShapeDtypeStruct((R, LANE), jnp.float32),
        grid=(R // tile_r,),
        in_specs=[pl.BlockSpec((tile_r, Kp), lambda i: (i, 0)),
                  pl.BlockSpec((Kp, LANE), lambda i: (0, 0))],
        out_specs=pl.BlockSpec((tile_r, LANE), lambda i: (i, 0)),
        compiler_params=pltpu.CompilerParams(
            dimension_semantics=("parallel",)),
    )(patches, w_mat)


# ------------------------------ plain-JAX glue ------------------------------

def _phase_patches(x, kpad):
    """(B, H, W, C) channels-last activation -> (B*H*W, kpad) 3x3-window patches."""
    bsz, H, W, C = x.shape
    xp = jnp.pad(x, ((0, 0), (1, 1), (1, 1), (0, 0)))
    cols = [xp[:, ry:ry + H, rx:rx + W, :] for ry in range(3) for rx in range(3)]
    p = jnp.concatenate(cols, axis=-1).reshape(bsz * H * W, 9 * C)
    if kpad > 9 * C:
        p = jnp.pad(p, ((0, 0), (0, kpad - 9 * C)))
    return p


def _depth_to_space(y, bsz, H, W, cout):
    """Kernel output (B*H*W, 128) with 4 phase column-groups -> (B, 2H, 2W, cout)."""
    y = y[:, :4 * cout].reshape(bsz, H, W, 2, 2, cout)
    y = y.transpose(0, 1, 3, 2, 4, 5).reshape(bsz, 2 * H, 2 * W, cout)
    return y


# ------------------------- init-time weight packing --------------------------

def _make_l1_wmat(w):
    """Layer-1 weight (nz, cout, 4, 4) -> (16*nz, 128) bf16 matmul matrix."""
    nz, cout = w.shape[0], w.shape[1]
    wm = np.zeros((16 * nz, LANE), np.float32)
    for s in range(16):
        wm[s * nz:(s + 1) * nz, :cout] = w[:, :, s // 4, s % 4]
    return jnp.asarray(wm, jnp.bfloat16)


def _make_stride2_wmat(w):
    """Stride-2 weight (cin, cout, 4, 4) -> (round_up(9*cin,128), 128) bf16,
    columns = 4 output phases x cout (phase order (py, px))."""
    cin, cout = w.shape[0], w.shape[1]
    kp = _round_up(9 * cin, LANE)
    wm = np.zeros((kp, LANE), np.float32)
    for py in range(2):
        for px in range(2):
            for ry in range(3):
                for rx in range(3):
                    ky, kx = _TAP[py][ry], _TAP[px][rx]
                    if ky is None or kx is None:
                        continue
                    r0 = (ry * 3 + rx) * cin
                    c0 = (py * 2 + px) * cout
                    wm[r0:r0 + cin, c0:c0 + cout] = w[:, :, ky, kx]
    return jnp.asarray(wm, jnp.bfloat16)


def _make_pool_matrix(cout, n_phase):
    """(128,128) 0/1 matrix pooling the n_phase column-copies of each channel."""
    width = cout * n_phase
    idx = np.arange(LANE)
    valid = idx < width
    a = ((idx[:, None] % cout) == (idx[None, :] % cout)) \
        & valid[:, None] & valid[None, :]
    return jnp.asarray(a.astype(np.float32))


def _make_affine_row(vec, cout, n_phase):
    """Per-channel vector -> (1,128) row replicated across phases, 0 in padding."""
    row = np.zeros((1, LANE), np.float32)
    row[0, :cout * n_phase] = np.tile(np.asarray(vec, np.float32), n_phase)
    return jnp.asarray(row)


def init_generator_params(key):
    """Deterministic DCGAN-style init (N(0, 0.02) conv weights, BN gamma=1, beta=0),
    with all matmul-ready weight matrices / pooling matrices precomputed."""
    layer_dims = [
        (NZ, NGF * 8),       # 1x1 -> 4x4   (stride 1, pad 0)
        (NGF * 8, NGF * 4),  # 4x4 -> 8x8   (stride 2, pad 1)
        (NGF * 4, NGF * 2),  # 8x8 -> 16x16
        (NGF * 2, NGF),      # 16x16 -> 32x32
        (NGF, NC),           # 32x32 -> 64x64
    ]
    params = []
    for idx, (cin, cout) in enumerate(layer_dims):
        key, wk = jax.random.split(key)
        w = 0.02 * jax.random.normal(wk, (cin, cout, 4, 4), jnp.float32)
        w_np = np.asarray(w)
        if idx == 0:
            wm = _make_l1_wmat(w_np)
            n_phase = 1
            kpad = 16 * cin
        else:
            wm = _make_stride2_wmat(w_np)
            n_phase = 4
            kpad = _round_up(9 * cin, LANE)
        layer = {"wm": wm, "cout": cout, "kpad": kpad}
        if idx < len(layer_dims) - 1:   # BN + ReLU layers
            gamma = np.ones((cout,), np.float32)
            beta = np.zeros((cout,), np.float32)
            layer["pool"] = _make_pool_matrix(cout, n_phase)
            layer["gamma_row"] = _make_affine_row(gamma, cout, n_phase)
            layer["beta_row"] = _make_affine_row(beta, cout, n_phase)
        params.append(layer)
    return params


# --------------------------------- forward ----------------------------------

def generator_forward(z, params):
    bsz = z.shape[0]
    zb = z.reshape(bsz, NZ).astype(jnp.bfloat16)

    # Layer 1: ConvTranspose2d(nz, ngf*8, 4, 1, 0) + BN + ReLU, written as one
    # matmul whose rows are (batch, output pixel) so BN stats are per-column.
    p0 = params[0]
    eye = jnp.eye(16, dtype=jnp.bfloat16)
    lhs = (eye[None, :, :, None] * zb[:, None, None, :]).reshape(bsz * 16, 16 * NZ)
    y = _call_bn_relu(lhs, p0["wm"], p0["pool"], p0["gamma_row"], p0["beta_row"],
                      count=bsz * 16)
    x = y[:, :p0["cout"]].reshape(bsz, 4, 4, p0["cout"])      # (B,4,4,64) bf16

    # Layers 2-4: stride-2 ConvTranspose2d + BN + ReLU (phase-decomposed).
    for p in params[1:-1]:
        _, H, W, _ = x.shape
        patches = _phase_patches(x, p["kpad"])
        y = _call_bn_relu(patches, p["wm"], p["pool"], p["gamma_row"],
                          p["beta_row"], count=4 * bsz * H * W)
        x = _depth_to_space(y, bsz, H, W, p["cout"])

    # Layer 5: stride-2 ConvTranspose2d + Tanh (row-tiled, megacore-parallel).
    p = params[-1]
    _, H, W, _ = x.shape
    patches = _phase_patches(x, p["kpad"])
    y = _call_tanh(patches, p["wm"])
    x = _depth_to_space(y, bsz, H, W, p["cout"])              # (B,64,64,3) f32

    return x.transpose(0, 3, 1, 2)                            # NCHW at boundary


# ----------------------------------- main ------------------------------------

if __name__ == "__main__":
    key = jax.random.PRNGKey(0)
    pkey, zkey = jax.random.split(key)
    params = init_generator_params(pkey)
    z = jax.random.normal(zkey, (BATCH, NZ, 1, 1), jnp.float32)

    fwd = jax.jit(lambda zz: generator_forward(zz, params))
    out = jax.block_until_ready(fwd(z))

    assert out.shape == (BATCH, NC, 64, 64), out.shape
    assert out.dtype == jnp.float32
    assert bool(jnp.all(jnp.isfinite(out)))
    assert bool(jnp.all(jnp.abs(out) <= 1.0))   # tanh range
    print("KERNEL_OK")
</pallas_src>

<mosaic_0001>
module attributes {stable_mosaic.version = 11 : i64} {
  func.func @kernel(%arg0: i32, %arg1: memref<32x256xbf16, #tpu.memory_space<vmem>>, %arg2: memref<256x128xbf16, #tpu.memory_space<vmem>>, %arg3: memref<128x128xf32, #tpu.memory_space<vmem>>, %arg4: memref<1x128xf32, #tpu.memory_space<vmem>>, %arg5: memref<1x128xf32, #tpu.memory_space<vmem>>, %arg6: memref<32x128xbf16, #tpu.memory_space<vmem>>) attributes {dimension_semantics = [#tpu.dimension_semantics<arbitrary>], iteration_bounds = array<i64: 1>, scalar_prefetch = 0 : i64, scratch_operands = 0 : i64, tpu.core_type = #tpu.core_type<tc>, window_params = [{pipeline_mode = #tpu.pipeline_mode<synchronous>, transform_indices = @transform_0, window_bounds = array<i64: 32, 256>}, {pipeline_mode = #tpu.pipeline_mode<synchronous>, transform_indices = @transform_1, window_bounds = array<i64: 256, 128>}, {pipeline_mode = #tpu.pipeline_mode<synchronous>, transform_indices = @transform_2, window_bounds = array<i64: 128, 128>}, {pipeline_mode = #tpu.pipeline_mode<synchronous>, transform_indices = @transform_3, window_bounds = array<i64: 1, 128>}, {pipeline_mode = #tpu.pipeline_mode<synchronous>, transform_indices = @transform_4, window_bounds = array<i64: 1, 128>}, {pipeline_mode = #tpu.pipeline_mode<synchronous>, transform_indices = @transform_5, window_bounds = array<i64: 32, 128>}]} {
    %c0 = arith.constant 0 : index
    %c0_0 = arith.constant 0 : index
    %0 = vector.load %arg1[%c0, %c0_0] : memref<32x256xbf16, #tpu.memory_space<vmem>>, vector<32x256xbf16>
    %c0_1 = arith.constant 0 : index
    %c0_2 = arith.constant 0 : index
    %1 = vector.load %arg2[%c0_1, %c0_2] : memref<256x128xbf16, #tpu.memory_space<vmem>>, vector<256x128xbf16>
    %cst = arith.constant dense<0.000000e+00> : vector<32x128xf32>
    %2 = tpu.matmul %0, %1, %cst {dimension_numbers = #tpu.dot_dimension_numbers<[1], [0], [0], [1], [0, 0, 1, 1], [], []>} : vector<32x256xbf16>, vector<256x128xbf16>, vector<32x128xf32> -> vector<32x128xf32>
    %cst_3 = arith.constant dense<0.000000e+00> : vector<128xf32>
    %3 = vector.multi_reduction <add>, %2, %cst_3 [0] : vector<32x128xf32> to vector<128xf32>
    %4 = vector.shape_cast %3 : vector<128xf32> to vector<1x128xf32>
    %5 = arith.mulf %2, %2 : vector<32x128xf32>
    %cst_4 = arith.constant dense<0.000000e+00> : vector<128xf32>
    %6 = vector.multi_reduction <add>, %5, %cst_4 [0] : vector<32x128xf32> to vector<128xf32>
    %7 = vector.shape_cast %6 : vector<128xf32> to vector<1x128xf32>
    %cst_5 = arith.constant 0.000000e+00 : f32
    %8 = vector.broadcast %cst_5 : f32 to vector<6x128xf32>
    %9 = tpu.concatenate %4, %7, %8 in 0 : vector<1x128xf32>, vector<1x128xf32>, vector<6x128xf32> -> vector<8x128xf32>
    %c0_6 = arith.constant 0 : index
    %c0_7 = arith.constant 0 : index
    %10 = vector.load %arg3[%c0_6, %c0_7] : memref<128x128xf32, #tpu.memory_space<vmem>>, vector<128x128xf32>
    %cst_8 = arith.constant dense<0.000000e+00> : vector<8x128xf32>
    %11 = tpu.matmul %9, %10, %cst_8 {dimension_numbers = #tpu.dot_dimension_numbers<[1], [0], [0], [1], [0, 0, 1, 1], [], []>} : vector<8x128xf32>, vector<128x128xf32>, vector<8x128xf32> -> vector<8x128xf32>
    %12 = vector.extract_strided_slice %11 {offsets = [0, 0], sizes = [1, 128], strides = [1, 1]} : vector<8x128xf32> to vector<1x128xf32>
    %cst_9 = arith.constant 3.125000e-02 : f32
    %13 = vector.broadcast %cst_9 : f32 to vector<1x128xf32>
    %14 = arith.mulf %12, %13 : vector<1x128xf32>
    %15 = vector.extract_strided_slice %11 {offsets = [1, 0], sizes = [1, 128], strides = [1, 1]} : vector<8x128xf32> to vector<1x128xf32>
    %cst_10 = arith.constant 3.125000e-02 : f32
    %16 = vector.broadcast %cst_10 : f32 to vector<1x128xf32>
    %17 = arith.mulf %15, %16 : vector<1x128xf32>
    %18 = arith.mulf %14, %14 : vector<1x128xf32>
    %19 = arith.subf %17, %18 : vector<1x128xf32>
    %cst_11 = arith.constant 0.000000e+00 : f32
    %20 = vector.broadcast %cst_11 : f32 to vector<1x128xf32>
    %21 = arith.maximumf %19, %20 : vector<1x128xf32>
    %22 = vector.broadcast %14 : vector<1x128xf32> to vector<32x128xf32>
    %23 = arith.subf %2, %22 : vector<32x128xf32>
    %cst_12 = arith.constant 9.99999974E-6 : f32
    %24 = vector.broadcast %cst_12 : f32 to vector<1x128xf32>
    %25 = arith.addf %21, %24 : vector<1x128xf32>
    %26 = math.rsqrt %25 : vector<1x128xf32>
    %27 = vector.broadcast %26 : vector<1x128xf32> to vector<32x128xf32>
    %28 = arith.mulf %23, %27 : vector<32x128xf32>
    %c0_13 = arith.constant 0 : index
    %c0_14 = arith.constant 0 : index
    %29 = vector.load %arg4[%c0_13, %c0_14] : memref<1x128xf32, #tpu.memory_space<vmem>>, vector<1x128xf32>
    %30 = vector.broadcast %29 : vector<1x128xf32> to vector<32x128xf32>
    %31 = arith.mulf %28, %30 : vector<32x128xf32>
    %c0_15 = arith.constant 0 : index
    %c0_16 = arith.constant 0 : index
    %32 = vector.load %arg5[%c0_15, %c0_16] : memref<1x128xf32, #tpu.memory_space<vmem>>, vector<1x128xf32>
    %33 = vector.broadcast %32 : vector<1x128xf32> to vector<32x128xf32>
    %34 = arith.addf %31, %33 : vector<32x128xf32>
    %cst_17 = arith.constant 0.000000e+00 : f32
    %35 = vector.broadcast %cst_17 : f32 to vector<32x128xf32>
    %36 = arith.maximumf %34, %35 : vector<32x128xf32>
    %37 = arith.truncf %36 : vector<32x128xf32> to vector<32x128xbf16>
    %c0_18 = arith.constant 0 : index
    %c0_19 = arith.constant 0 : index
    %38 = vector.load %arg6[%c0_18, %c0_19] : memref<32x128xbf16, #tpu.memory_space<vmem>>, vector<32x128xbf16>
    tpu.vector_store %arg6[%c0_18, %c0_19], %37 {strides = array<i32>} : memref<32x128xbf16, #tpu.memory_space<vmem>>, vector<32x128xbf16>,
    return
  }
  func.func @transform_0(%arg0: i32) -> (i32, i32) {
    %c0_i32 = arith.constant 0 : i32
    %c0_i32_0 = arith.constant 0 : i32
    %c0_i32_1 = arith.constant 0 : i32
    return %c0_i32, %c0_i32_0 : i32, i32
  }
  func.func @transform_1(%arg0: i32) -> (i32, i32) {
    %c0_i32 = arith.constant 0 : i32
    %c0_i32_0 = arith.constant 0 : i32
    %c0_i32_1 = arith.constant 0 : i32
    return %c0_i32, %c0_i32_0 : i32, i32
  }
  func.func @transform_2(%arg0: i32) -> (i32, i32) {
    %c0_i32 = arith.constant 0 : i32
    %c0_i32_0 = arith.constant 0 : i32
    %c0_i32_1 = arith.constant 0 : i32
    return %c0_i32, %c0_i32_0 : i32, i32
  }
  func.func @transform_3(%arg0: i32) -> (i32, i32) {
    %c0_i32 = arith.constant 0 : i32
    %c0_i32_0 = arith.constant 0 : i32
    %c0_i32_1 = arith.constant 0 : i32
    return %c0_i32, %c0_i32_0 : i32, i32
  }
  func.func @transform_4(%arg0: i32) -> (i32, i32) {
    %c0_i32 = arith.constant 0 : i32
    %c0_i32_0 = arith.constant 0 : i32
    %c0_i32_1 = arith.constant 0 : i32
    return %c0_i32, %c0_i32_0 : i32, i32
  }
  func.func @transform_5(%arg0: i32) -> (i32, i32) {
    %c0_i32 = arith.constant 0 : i32
    %c0_i32_0 = arith.constant 0 : i32
    %c0_i32_1 = arith.constant 0 : i32
    return %c0_i32, %c0_i32_0 : i32, i32
  }
}

module attributes {stable_mosaic.version = 11 : i64} {
  func.func @kernel(%arg0: i32, %arg1: memref<32x640xbf16, #tpu.memory_space<vmem>>, %arg2: memref<640x128xbf16, #tpu.memory_space<vmem>>, %arg3: memref<128x128xf32, #tpu.memory_space<vmem>>, %arg4: memref<1x128xf32, #tpu.memory_space<vmem>>, %arg5: memref<1x128xf32, #tpu.memory_space<vmem>>, %arg6: memref<32x128xbf16, #tpu.memory_space<vmem>>) attributes {dimension_semantics = [#tpu.dimension_semantics<arbitrary>], iteration_bounds = array<i64: 1>, scalar_prefetch = 0 : i64, scratch_operands = 0 : i64, tpu.core_type = #tpu.core_type<tc>, window_params = [{pipeline_mode = #tpu.pipeline_mode<synchronous>, transform_indices = @transform_0, window_bounds = array<i64: 32, 640>}, {pipeline_mode = #tpu.pipeline_mode<synchronous>, transform_indices = @transform_1, window_bounds = array<i64: 640, 128>}, {pipeline_mode = #tpu.pipeline_mode<synchronous>, transform_indices = @transform_2, window_bounds = array<i64: 128, 128>}, {pipeline_mode = #tpu.pipeline_mode<synchronous>, transform_indices = @transform_3, window_bounds = array<i64: 1, 128>}, {pipeline_mode = #tpu.pipeline_mode<synchronous>, transform_indices = @transform_4, window_bounds = array<i64: 1, 128>}, {pipeline_mode = #tpu.pipeline_mode<synchronous>, transform_indices = @transform_5, window_bounds = array<i64: 32, 128>}]} {
    %c0 = arith.constant 0 : index
    %c0_0 = arith.constant 0 : index
    %0 = vector.load %arg1[%c0, %c0_0] : memref<32x640xbf16, #tpu.memory_space<vmem>>, vector<32x640xbf16>
    %c0_1 = arith.constant 0 : index
    %c0_2 = arith.constant 0 : index
    %1 = vector.load %arg2[%c0_1, %c0_2] : memref<640x128xbf16, #tpu.memory_space<vmem>>, vector<640x128xbf16>
    %cst = arith.constant dense<0.000000e+00> : vector<32x128xf32>
    %2 = tpu.matmul %0, %1, %cst {dimension_numbers = #tpu.dot_dimension_numbers<[1], [0], [0], [1], [0, 0, 1, 1], [], []>} : vector<32x640xbf16>, vector<640x128xbf16>, vector<32x128xf32> -> vector<32x128xf32>
    %cst_3 = arith.constant dense<0.000000e+00> : vector<128xf32>
    %3 = vector.multi_reduction <add>, %2, %cst_3 [0] : vector<32x128xf32> to vector<128xf32>
    %4 = vector.shape_cast %3 : vector<128xf32> to vector<1x128xf32>
    %5 = arith.mulf %2, %2 : vector<32x128xf32>
    %cst_4 = arith.constant dense<0.000000e+00> : vector<128xf32>
    %6 = vector.multi_reduction <add>, %5, %cst_4 [0] : vector<32x128xf32> to vector<128xf32>
    %7 = vector.shape_cast %6 : vector<128xf32> to vector<1x128xf32>
    %cst_5 = arith.constant 0.000000e+00 : f32
    %8 = vector.broadcast %cst_5 : f32 to vector<6x128xf32>
    %9 = tpu.concatenate %4, %7, %8 in 0 : vector<1x128xf32>, vector<1x128xf32>, vector<6x128xf32> -> vector<8x128xf32>
    %c0_6 = arith.constant 0 : index
    %c0_7 = arith.constant 0 : index
    %10 = vector.load %arg3[%c0_6, %c0_7] : memref<128x128xf32, #tpu.memory_space<vmem>>, vector<128x128xf32>
    %cst_8 = arith.constant dense<0.000000e+00> : vector<8x128xf32>
    %11 = tpu.matmul %9, %10, %cst_8 {dimension_numbers = #tpu.dot_dimension_numbers<[1], [0], [0], [1], [0, 0, 1, 1], [], []>} : vector<8x128xf32>, vector<128x128xf32>, vector<8x128xf32> -> vector<8x128xf32>
    %12 = vector.extract_strided_slice %11 {offsets = [0, 0], sizes = [1, 128], strides = [1, 1]} : vector<8x128xf32> to vector<1x128xf32>
    %cst_9 = arith.constant 7.812500e-03 : f32
    %13 = vector.broadcast %cst_9 : f32 to vector<1x128xf32>
    %14 = arith.mulf %12, %13 : vector<1x128xf32>
    %15 = vector.extract_strided_slice %11 {offsets = [1, 0], sizes = [1, 128], strides = [1, 1]} : vector<8x128xf32> to vector<1x128xf32>
    %cst_10 = arith.constant 7.812500e-03 : f32
    %16 = vector.broadcast %cst_10 : f32 to vector<1x128xf32>
    %17 = arith.mulf %15, %16 : vector<1x128xf32>
    %18 = arith.mulf %14, %14 : vector<1x128xf32>
    %19 = arith.subf %17, %18 : vector<1x128xf32>
    %cst_11 = arith.constant 0.000000e+00 : f32
    %20 = vector.broadcast %cst_11 : f32 to vector<1x128xf32>
    %21 = arith.maximumf %19, %20 : vector<1x128xf32>
    %22 = vector.broadcast %14 : vector<1x128xf32> to vector<32x128xf32>
    %23 = arith.subf %2, %22 : vector<32x128xf32>
    %cst_12 = arith.constant 9.99999974E-6 : f32
    %24 = vector.broadcast %cst_12 : f32 to vector<1x128xf32>
    %25 = arith.addf %21, %24 : vector<1x128xf32>
    %26 = math.rsqrt %25 : vector<1x128xf32>
    %27 = vector.broadcast %26 : vector<1x128xf32> to vector<32x128xf32>
    %28 = arith.mulf %23, %27 : vector<32x128xf32>
    %c0_13 = arith.constant 0 : index
    %c0_14 = arith.constant 0 : index
    %29 = vector.load %arg4[%c0_13, %c0_14] : memref<1x128xf32, #tpu.memory_space<vmem>>, vector<1x128xf32>
    %30 = vector.broadcast %29 : vector<1x128xf32> to vector<32x128xf32>
    %31 = arith.mulf %28, %30 : vector<32x128xf32>
    %c0_15 = arith.constant 0 : index
    %c0_16 = arith.constant 0 : index
    %32 = vector.load %arg5[%c0_15, %c0_16] : memref<1x128xf32, #tpu.memory_space<vmem>>, vector<1x128xf32>
    %33 = vector.broadcast %32 : vector<1x128xf32> to vector<32x128xf32>
    %34 = arith.addf %31, %33 : vector<32x128xf32>
    %cst_17 = arith.constant 0.000000e+00 : f32
    %35 = vector.broadcast %cst_17 : f32 to vector<32x128xf32>
    %36 = arith.maximumf %34, %35 : vector<32x128xf32>
    %37 = arith.truncf %36 : vector<32x128xf32> to vector<32x128xbf16>
    %c0_18 = arith.constant 0 : index
    %c0_19 = arith.constant 0 : index
    %38 = vector.load %arg6[%c0_18, %c0_19] : memref<32x128xbf16, #tpu.memory_space<vmem>>, vector<32x128xbf16>
    tpu.vector_store %arg6[%c0_18, %c0_19], %37 {strides = array<i32>} : memref<32x128xbf16, #tpu.memory_space<vmem>>, vector<32x128xbf16>,
    return
  }
  func.func @transform_0(%arg0: i32) -> (i32, i32) {
    %c0_i32 = arith.constant 0 : i32
    %c0_i32_0 = arith.constant 0 : i32
    %c0_i32_1 = arith.constant 0 : i32
    return %c0_i32, %c0_i32_0 : i32, i32
  }
  func.func @transform_1(%arg0: i32) -> (i32, i32) {
    %c0_i32 = arith.constant 0 : i32
    %c0_i32_0 = arith.constant 0 : i32
    %c0_i32_1 = arith.constant 0 : i32
    return %c0_i32, %c0_i32_0 : i32, i32
  }
  func.func @transform_2(%arg0: i32) -> (i32, i32) {
    %c0_i32 = arith.constant 0 : i32
    %c0_i32_0 = arith.constant 0 : i32
    %c0_i32_1 = arith.constant 0 : i32
    return %c0_i32, %c0_i32_0 : i32, i32
  }
  func.func @transform_3(%arg0: i32) -> (i32, i32) {
    %c0_i32 = arith.constant 0 : i32
    %c0_i32_0 = arith.constant 0 : i32
    %c0_i32_1 = arith.constant 0 : i32
    return %c0_i32, %c0_i32_0 : i32, i32
  }
  func.func @transform_4(%arg0: i32) -> (i32, i32) {
    %c0_i32 = arith.constant 0 : i32
    %c0_i32_0 = arith.constant 0 : i32
    %c0_i32_1 = arith.constant 0 : i32
    return %c0_i32, %c0_i32_0 : i32, i32
  }
  func.func @transform_5(%arg0: i32) -> (i32, i32) {
    %c0_i32 = arith.constant 0 : i32
    %c0_i32_0 = arith.constant 0 : i32
    %c0_i32_1 = arith.constant 0 : i32
    return %c0_i32, %c0_i32_0 : i32, i32
  }
}

module attributes {stable_mosaic.version = 11 : i64} {
  func.func @kernel(%arg0: i32, %arg1: memref<128x384xbf16, #tpu.memory_space<vmem>>, %arg2: memref<384x128xbf16, #tpu.memory_space<vmem>>, %arg3: memref<128x128xf32, #tpu.memory_space<vmem>>, %arg4: memref<1x128xf32, #tpu.memory_space<vmem>>, %arg5: memref<1x128xf32, #tpu.memory_space<vmem>>, %arg6: memref<128x128xbf16, #tpu.memory_space<vmem>>) attributes {dimension_semantics = [#tpu.dimension_semantics<arbitrary>], iteration_bounds = array<i64: 1>, scalar_prefetch = 0 : i64, scratch_operands = 0 : i64, tpu.core_type = #tpu.core_type<tc>, window_params = [{pipeline_mode = #tpu.pipeline_mode<synchronous>, transform_indices = @transform_0, window_bounds = array<i64: 128, 384>}, {pipeline_mode = #tpu.pipeline_mode<synchronous>, transform_indices = @transform_1, window_bounds = array<i64: 384, 128>}, {pipeline_mode = #tpu.pipeline_mode<synchronous>, transform_indices = @transform_2, window_bounds = array<i64: 128, 128>}, {pipeline_mode = #tpu.pipeline_mode<synchronous>, transform_indices = @transform_3, window_bounds = array<i64: 1, 128>}, {pipeline_mode = #tpu.pipeline_mode<synchronous>, transform_indices = @transform_4, window_bounds = array<i64: 1, 128>}, {pipeline_mode = #tpu.pipeline_mode<synchronous>, transform_indices = @transform_5, window_bounds = array<i64: 128, 128>}]} {
    %c0 = arith.constant 0 : index
    %c0_0 = arith.constant 0 : index
    %0 = vector.load %arg1[%c0, %c0_0] : memref<128x384xbf16, #tpu.memory_space<vmem>>, vector<128x384xbf16>
    %c0_1 = arith.constant 0 : index
    %c0_2 = arith.constant 0 : index
    %1 = vector.load %arg2[%c0_1, %c0_2] : memref<384x128xbf16, #tpu.memory_space<vmem>>, vector<384x128xbf16>
    %cst = arith.constant dense<0.000000e+00> : vector<128x128xf32>
    %2 = tpu.matmul %0, %1, %cst {dimension_numbers = #tpu.dot_dimension_numbers<[1], [0], [0], [1], [0, 0, 1, 1], [], []>} : vector<128x384xbf16>, vector<384x128xbf16>, vector<128x128xf32> -> vector<128x128xf32>
    %cst_3 = arith.constant dense<0.000000e+00> : vector<128xf32>
    %3 = vector.multi_reduction <add>, %2, %cst_3 [0] : vector<128x128xf32> to vector<128xf32>
    %4 = vector.shape_cast %3 : vector<128xf32> to vector<1x128xf32>
    %5 = arith.mulf %2, %2 : vector<128x128xf32>
    %cst_4 = arith.constant dense<0.000000e+00> : vector<128xf32>
    %6 = vector.multi_reduction <add>, %5, %cst_4 [0] : vector<128x128xf32> to vector<128xf32>
    %7 = vector.shape_cast %6 : vector<128xf32> to vector<1x128xf32>
    %cst_5 = arith.constant 0.000000e+00 : f32
    %8 = vector.broadcast %cst_5 : f32 to vector<6x128xf32>
    %9 = tpu.concatenate %4, %7, %8 in 0 : vector<1x128xf32>, vector<1x128xf32>, vector<6x128xf32> -> vector<8x128xf32>
    %c0_6 = arith.constant 0 : index
    %c0_7 = arith.constant 0 : index
    %10 = vector.load %arg3[%c0_6, %c0_7] : memref<128x128xf32, #tpu.memory_space<vmem>>, vector<128x128xf32>
    %cst_8 = arith.constant dense<0.000000e+00> : vector<8x128xf32>
    %11 = tpu.matmul %9, %10, %cst_8 {dimension_numbers = #tpu.dot_dimension_numbers<[1], [0], [0], [1], [0, 0, 1, 1], [], []>} : vector<8x128xf32>, vector<128x128xf32>, vector<8x128xf32> -> vector<8x128xf32>
    %12 = vector.extract_strided_slice %11 {offsets = [0, 0], sizes = [1, 128], strides = [1, 1]} : vector<8x128xf32> to vector<1x128xf32>
    %cst_9 = arith.constant 0.001953125 : f32
    %13 = vector.broadcast %cst_9 : f32 to vector<1x128xf32>
    %14 = arith.mulf %12, %13 : vector<1x128xf32>
    %15 = vector.extract_strided_slice %11 {offsets = [1, 0], sizes = [1, 128], strides = [1, 1]} : vector<8x128xf32> to vector<1x128xf32>
    %cst_10 = arith.constant 0.001953125 : f32
    %16 = vector.broadcast %cst_10 : f32 to vector<1x128xf32>
    %17 = arith.mulf %15, %16 : vector<1x128xf32>
    %18 = arith.mulf %14, %14 : vector<1x128xf32>
    %19 = arith.subf %17, %18 : vector<1x128xf32>
    %cst_11 = arith.constant 0.000000e+00 : f32
    %20 = vector.broadcast %cst_11 : f32 to vector<1x128xf32>
    %21 = arith.maximumf %19, %20 : vector<1x128xf32>
    %22 = vector.broadcast %14 : vector<1x128xf32> to vector<128x128xf32>
    %23 = arith.subf %2, %22 : vector<128x128xf32>
    %cst_12 = arith.constant 9.99999974E-6 : f32
    %24 = vector.broadcast %cst_12 : f32 to vector<1x128xf32>
    %25 = arith.addf %21, %24 : vector<1x128xf32>
    %26 = math.rsqrt %25 : vector<1x128xf32>
    %27 = vector.broadcast %26 : vector<1x128xf32> to vector<128x128xf32>
    %28 = arith.mulf %23, %27 : vector<128x128xf32>
    %c0_13 = arith.constant 0 : index
    %c0_14 = arith.constant 0 : index
    %29 = vector.load %arg4[%c0_13, %c0_14] : memref<1x128xf32, #tpu.memory_space<vmem>>, vector<1x128xf32>
    %30 = vector.broadcast %29 : vector<1x128xf32> to vector<128x128xf32>
    %31 = arith.mulf %28, %30 : vector<128x128xf32>
    %c0_15 = arith.constant 0 : index
    %c0_16 = arith.constant 0 : index
    %32 = vector.load %arg5[%c0_15, %c0_16] : memref<1x128xf32, #tpu.memory_space<vmem>>, vector<1x128xf32>
    %33 = vector.broadcast %32 : vector<1x128xf32> to vector<128x128xf32>
    %34 = arith.addf %31, %33 : vector<128x128xf32>
    %cst_17 = arith.constant 0.000000e+00 : f32
    %35 = vector.broadcast %cst_17 : f32 to vector<128x128xf32>
    %36 = arith.maximumf %34, %35 : vector<128x128xf32>
    %37 = arith.truncf %36 : vector<128x128xf32> to vector<128x128xbf16>
    %c0_18 = arith.constant 0 : index
    %c0_19 = arith.constant 0 : index
    %38 = vector.load %arg6[%c0_18, %c0_19] : memref<128x128xbf16, #tpu.memory_space<vmem>>, vector<128x128xbf16>
    tpu.vector_store %arg6[%c0_18, %c0_19], %37 {strides = array<i32>} : memref<128x128xbf16, #tpu.memory_space<vmem>>, vector<128x128xbf16>,
    return
  }
  func.func @transform_0(%arg0: i32) -> (i32, i32) {
    %c0_i32 = arith.constant 0 : i32
    %c0_i32_0 = arith.constant 0 : i32
    %c0_i32_1 = arith.constant 0 : i32
    return %c0_i32, %c0_i32_0 : i32, i32
  }
  func.func @transform_1(%arg0: i32) -> (i32, i32) {
    %c0_i32 = arith.constant 0 : i32
    %c0_i32_0 = arith.constant 0 : i32
    %c0_i32_1 = arith.constant 0 : i32
    return %c0_i32, %c0_i32_0 : i32, i32
  }
  func.func @transform_2(%arg0: i32) -> (i32, i32) {
    %c0_i32 = arith.constant 0 : i32
    %c0_i32_0 = arith.constant 0 : i32
    %c0_i32_1 = arith.constant 0 : i32
    return %c0_i32, %c0_i32_0 : i32, i32
  }
  func.func @transform_3(%arg0: i32) -> (i32, i32) {
    %c0_i32 = arith.constant 0 : i32
    %c0_i32_0 = arith.constant 0 : i32
    %c0_i32_1 = arith.constant 0 : i32
    return %c0_i32, %c0_i32_0 : i32, i32
  }
  func.func @transform_4(%arg0: i32) -> (i32, i32) {
    %c0_i32 = arith.constant 0 : i32
    %c0_i32_0 = arith.constant 0 : i32
    %c0_i32_1 = arith.constant 0 : i32
    return %c0_i32, %c0_i32_0 : i32, i32
  }
  func.func @transform_5(%arg0: i32) -> (i32, i32) {
    %c0_i32 = arith.constant 0 : i32
    %c0_i32_0 = arith.constant 0 : i32
    %c0_i32_1 = arith.constant 0 : i32
    return %c0_i32, %c0_i32_0 : i32, i32
  }
}

module attributes {stable_mosaic.version = 11 : i64} {
  func.func @kernel(%arg0: i32, %arg1: memref<512x256xbf16, #tpu.memory_space<vmem>>, %arg2: memref<256x128xbf16, #tpu.memory_space<vmem>>, %arg3: memref<128x128xf32, #tpu.memory_space<vmem>>, %arg4: memref<1x128xf32, #tpu.memory_space<vmem>>, %arg5: memref<1x128xf32, #tpu.memory_space<vmem>>, %arg6: memref<512x128xbf16, #tpu.memory_space<vmem>>) attributes {dimension_semantics = [#tpu.dimension_semantics<arbitrary>], iteration_bounds = array<i64: 1>, scalar_prefetch = 0 : i64, scratch_operands = 0 : i64, tpu.core_type = #tpu.core_type<tc>, window_params = [{pipeline_mode = #tpu.pipeline_mode<synchronous>, transform_indices = @transform_0, window_bounds = array<i64: 512, 256>}, {pipeline_mode = #tpu.pipeline_mode<synchronous>, transform_indices = @transform_1, window_bounds = array<i64: 256, 128>}, {pipeline_mode = #tpu.pipeline_mode<synchronous>, transform_indices = @transform_2, window_bounds = array<i64: 128, 128>}, {pipeline_mode = #tpu.pipeline_mode<synchronous>, transform_indices = @transform_3, window_bounds = array<i64: 1, 128>}, {pipeline_mode = #tpu.pipeline_mode<synchronous>, transform_indices = @transform_4, window_bounds = array<i64: 1, 128>}, {pipeline_mode = #tpu.pipeline_mode<synchronous>, transform_indices = @transform_5, window_bounds = array<i64: 512, 128>}]} {
    %c0 = arith.constant 0 : index
    %c0_0 = arith.constant 0 : index
    %0 = vector.load %arg1[%c0, %c0_0] : memref<512x256xbf16, #tpu.memory_space<vmem>>, vector<512x256xbf16>
    %c0_1 = arith.constant 0 : index
    %c0_2 = arith.constant 0 : index
    %1 = vector.load %arg2[%c0_1, %c0_2] : memref<256x128xbf16, #tpu.memory_space<vmem>>, vector<256x128xbf16>
    %cst = arith.constant dense<0.000000e+00> : vector<512x128xf32>
    %2 = tpu.matmul %0, %1, %cst {dimension_numbers = #tpu.dot_dimension_numbers<[1], [0], [0], [1], [0, 0, 1, 1], [], []>} : vector<512x256xbf16>, vector<256x128xbf16>, vector<512x128xf32> -> vector<512x128xf32>
    %cst_3 = arith.constant dense<0.000000e+00> : vector<128xf32>
    %3 = vector.multi_reduction <add>, %2, %cst_3 [0] : vector<512x128xf32> to vector<128xf32>
    %4 = vector.shape_cast %3 : vector<128xf32> to vector<1x128xf32>
    %5 = arith.mulf %2, %2 : vector<512x128xf32>
    %cst_4 = arith.constant dense<0.000000e+00> : vector<128xf32>
    %6 = vector.multi_reduction <add>, %5, %cst_4 [0] : vector<512x128xf32> to vector<128xf32>
    %7 = vector.shape_cast %6 : vector<128xf32> to vector<1x128xf32>
    %cst_5 = arith.constant 0.000000e+00 : f32
    %8 = vector.broadcast %cst_5 : f32 to vector<6x128xf32>
    %9 = tpu.concatenate %4, %7, %8 in 0 : vector<1x128xf32>, vector<1x128xf32>, vector<6x128xf32> -> vector<8x128xf32>
    %c0_6 = arith.constant 0 : index
    %c0_7 = arith.constant 0 : index
    %10 = vector.load %arg3[%c0_6, %c0_7] : memref<128x128xf32, #tpu.memory_space<vmem>>, vector<128x128xf32>
    %cst_8 = arith.constant dense<0.000000e+00> : vector<8x128xf32>
    %11 = tpu.matmul %9, %10, %cst_8 {dimension_numbers = #tpu.dot_dimension_numbers<[1], [0], [0], [1], [0, 0, 1, 1], [], []>} : vector<8x128xf32>, vector<128x128xf32>, vector<8x128xf32> -> vector<8x128xf32>
    %12 = vector.extract_strided_slice %11 {offsets = [0, 0], sizes = [1, 128], strides = [1, 1]} : vector<8x128xf32> to vector<1x128xf32>
    %cst_9 = arith.constant 4.8828125E-4 : f32
    %13 = vector.broadcast %cst_9 : f32 to vector<1x128xf32>
    %14 = arith.mulf %12, %13 : vector<1x128xf32>
    %15 = vector.extract_strided_slice %11 {offsets = [1, 0], sizes = [1, 128], strides = [1, 1]} : vector<8x128xf32> to vector<1x128xf32>
    %cst_10 = arith.constant 4.8828125E-4 : f32
    %16 = vector.broadcast %cst_10 : f32 to vector<1x128xf32>
    %17 = arith.mulf %15, %16 : vector<1x128xf32>
    %18 = arith.mulf %14, %14 : vector<1x128xf32>
    %19 = arith.subf %17, %18 : vector<1x128xf32>
    %cst_11 = arith.constant 0.000000e+00 : f32
    %20 = vector.broadcast %cst_11 : f32 to vector<1x128xf32>
    %21 = arith.maximumf %19, %20 : vector<1x128xf32>
    %22 = vector.broadcast %14 : vector<1x128xf32> to vector<512x128xf32>
    %23 = arith.subf %2, %22 : vector<512x128xf32>
    %cst_12 = arith.constant 9.99999974E-6 : f32
    %24 = vector.broadcast %cst_12 : f32 to vector<1x128xf32>
    %25 = arith.addf %21, %24 : vector<1x128xf32>
    %26 = math.rsqrt %25 : vector<1x128xf32>
    %27 = vector.broadcast %26 : vector<1x128xf32> to vector<512x128xf32>
    %28 = arith.mulf %23, %27 : vector<512x128xf32>
    %c0_13 = arith.constant 0 : index
    %c0_14 = arith.constant 0 : index
    %29 = vector.load %arg4[%c0_13, %c0_14] : memref<1x128xf32, #tpu.memory_space<vmem>>, vector<1x128xf32>
    %30 = vector.broadcast %29 : vector<1x128xf32> to vector<512x128xf32>
    %31 = arith.mulf %28, %30 : vector<512x128xf32>
    %c0_15 = arith.constant 0 : index
    %c0_16 = arith.constant 0 : index
    %32 = vector.load %arg5[%c0_15, %c0_16] : memref<1x128xf32, #tpu.memory_space<vmem>>, vector<1x128xf32>
    %33 = vector.broadcast %32 : vector<1x128xf32> to vector<512x128xf32>
    %34 = arith.addf %31, %33 : vector<512x128xf32>
    %cst_17 = arith.constant 0.000000e+00 : f32
    %35 = vector.broadcast %cst_17 : f32 to vector<512x128xf32>
    %36 = arith.maximumf %34, %35 : vector<512x128xf32>
    %37 = arith.truncf %36 : vector<512x128xf32> to vector<512x128xbf16>
    %c0_18 = arith.constant 0 : index
    %c0_19 = arith.constant 0 : index
    %38 = vector.load %arg6[%c0_18, %c0_19] : memref<512x128xbf16, #tpu.memory_space<vmem>>, vector<512x128xbf16>
    tpu.vector_store %arg6[%c0_18, %c0_19], %37 {strides = array<i32>} : memref<512x128xbf16, #tpu.memory_space<vmem>>, vector<512x128xbf16>,
    return
  }
  func.func @transform_0(%arg0: i32) -> (i32, i32) {
    %c0_i32 = arith.constant 0 : i32
    %c0_i32_0 = arith.constant 0 : i32
    %c0_i32_1 = arith.constant 0 : i32
    return %c0_i32, %c0_i32_0 : i32, i32
  }
  func.func @transform_1(%arg0: i32) -> (i32, i32) {
    %c0_i32 = arith.constant 0 : i32
    %c0_i32_0 = arith.constant 0 : i32
    %c0_i32_1 = arith.constant 0 : i32
    return %c0_i32, %c0_i32_0 : i32, i32
  }
  func.func @transform_2(%arg0: i32) -> (i32, i32) {
    %c0_i32 = arith.constant 0 : i32
    %c0_i32_0 = arith.constant 0 : i32
    %c0_i32_1 = arith.constant 0 : i32
    return %c0_i32, %c0_i32_0 : i32, i32
  }
  func.func @transform_3(%arg0: i32) -> (i32, i32) {
    %c0_i32 = arith.constant 0 : i32
    %c0_i32_0 = arith.constant 0 : i32
    %c0_i32_1 = arith.constant 0 : i32
    return %c0_i32, %c0_i32_0 : i32, i32
  }
  func.func @transform_4(%arg0: i32) -> (i32, i32) {
    %c0_i32 = arith.constant 0 : i32
    %c0_i32_0 = arith.constant 0 : i32
    %c0_i32_1 = arith.constant 0 : i32
    return %c0_i32, %c0_i32_0 : i32, i32
  }
  func.func @transform_5(%arg0: i32) -> (i32, i32) {
    %c0_i32 = arith.constant 0 : i32
    %c0_i32_0 = arith.constant 0 : i32
    %c0_i32_1 = arith.constant 0 : i32
    return %c0_i32, %c0_i32_0 : i32, i32
  }
}

module attributes {stable_mosaic.version = 11 : i64} {
  func.func @_tanh_kernel(%arg0: i32, %arg1: memref<512x128xbf16, #tpu.memory_space<vmem>>, %arg2: memref<128x128xbf16, #tpu.memory_space<vmem>>, %arg3: memref<512x128xf32, #tpu.memory_space<vmem>>) attributes {dimension_semantics = [#tpu.dimension_semantics<parallel>], iteration_bounds = array<i64: 4>, scalar_prefetch = 0 : i64, scratch_operands = 0 : i64, tpu.core_type = #tpu.core_type<tc>, window_params = [{transform_indices = @transform_0, window_bounds = array<i64: 512, 128>}, {pipeline_mode = #tpu.pipeline_mode<synchronous>, transform_indices = @transform_1, window_bounds = array<i64: 128, 128>}, {transform_indices = @transform_2, window_bounds = array<i64: 512, 128>}]} {
    %c0 = arith.constant 0 : index
    %c0_0 = arith.constant 0 : index
    %0 = vector.load %arg1[%c0, %c0_0] : memref<512x128xbf16, #tpu.memory_space<vmem>>, vector<512x128xbf16>
    %c0_1 = arith.constant 0 : index
    %c0_2 = arith.constant 0 : index
    %1 = vector.load %arg2[%c0_1, %c0_2] : memref<128x128xbf16, #tpu.memory_space<vmem>>, vector<128x128xbf16>
    %cst = arith.constant dense<0.000000e+00> : vector<512x128xf32>
    %2 = tpu.matmul %0, %1, %cst {dimension_numbers = #tpu.dot_dimension_numbers<[1], [0], [0], [1], [0, 0, 1, 1], [], []>} : vector<512x128xbf16>, vector<128x128xbf16>, vector<512x128xf32> -> vector<512x128xf32>
    %3 = math.tanh %2 : vector<512x128xf32>
    %c0_3 = arith.constant 0 : index
    %c0_4 = arith.constant 0 : index
    %4 = vector.load %arg3[%c0_3, %c0_4] : memref<512x128xf32, #tpu.memory_space<vmem>>, vector<512x128xf32>
    tpu.vector_store %arg3[%c0_3, %c0_4], %3 {strides = array<i32>} : memref<512x128xf32, #tpu.memory_space<vmem>>, vector<512x128xf32>,
    return
  }
  func.func @transform_0(%arg0: i32) -> (i32, i32) {
    %c0_i32 = arith.constant 0 : i32
    %c0_i32_0 = arith.constant 0 : i32
    return %arg0, %c0_i32 : i32, i32
  }
  func.func @transform_1(%arg0: i32) -> (i32, i32) {
    %c0_i32 = arith.constant 0 : i32
    %c0_i32_0 = arith.constant 0 : i32
    %c0_i32_1 = arith.constant 0 : i32
    return %c0_i32, %c0_i32_0 : i32, i32
  }
  func.func @transform_2(%arg0: i32) -> (i32, i32) {
    %c0_i32 = arith.constant 0 : i32
    %c0_i32_0 = arith.constant 0 : i32
    return %arg0, %c0_i32 : i32, i32
  }
}

</mosaic_0001>

<llo_original>
// kernel: _lambda_.5
$region0: #{_lambda_.5}
  #allocation0 [shape = 'u32[]', space=smem, size = 0x4, offset = 0x4, fixed_abs, tag = 'smem constant byte address 0x4 - core index']
  #allocation1 [shape = 'u32[144,128]{1,0:T(1,128)}', space=vmem, size = 0x12000, scoped, tag = 'internal scratch']
  %s0 = inlined_call_operand.vmem [shape: bf16[32,256], index: 0, kind: input, shape index: {}]
  %s1 = inlined_call_operand.hbm [shape: bf16[256,128], index: 1, kind: input, shape index: {}]
  %s2 = inlined_call_operand.hbm [shape: f32[128,128], index: 2, kind: input, shape index: {}]
  %s3 = inlined_call_operand.hbm [shape: f32[1,128], index: 3, kind: input, shape index: {}]
  %s4 = inlined_call_operand.vmem [shape: f32[1,128], index: 4, kind: input, shape index: {}]
  %s5 = inlined_call_operand.vmem [shape: bf16[32,128], index: 5, kind: output, shape index: {}]
  %s6 = sld [smem:[#allocation0]]
  $region42: #{_lambda_.5} parent=0
    _
  %s8 = ssub.s32 1, %s6
  %s9 = scalar_select 0, %s8, %s6
  $region1: #{_lambda_.5} parent=0
    #allocation2 [shape = 'u8[65536]{0}', space=vmem, size = 0x10000, scoped, tag = 'input window, operand 1, single buffered']
    #allocation3 [shape = 's32[1]{0}', space=sflag, size = 0x4, scoped, tag = 'scoped memory for _lambda_.5']
    #allocation4 [shape = 'u8[65536]{0}', space=vmem, size = 0x10000, scoped, tag = 'input window, operand 2, single buffered']
    #allocation5 [shape = 's32[1]{0}', space=sflag, size = 0x4, scoped, tag = 'scoped memory for _lambda_.5']
    #allocation6 [shape = 'u8[512]{0}', space=vmem, size = 0x400, scoped, tag = 'input window, operand 3, single buffered']
    %10 = vsyncpa [#allocation3], 0
    %11 = vsyncpa [#allocation5], 0
    // Predicated region
    $region2: #{_lambda_.5} parent=1 // pred_check
      _
    $region3: #{_lambda_.5} parent=1 // pred_check_branch
      %13 = sbr.rel (0) target = $region5
    $region4: #{_lambda_.5} parent=1 // pred_region
      _
    $region5: #{_lambda_.5} parent=1 // pred_fallthru
      _
    // Predicated region
    $region6: #{_lambda_.5} parent=1 // pred_check
      _
    $region7: #{_lambda_.5} parent=1 // pred_check_branch
      %15 = sbr.rel (0) target = $region9
    $region8: #{_lambda_.5} parent=1 // pred_region
      %s17 = ssub.s32 2048, 2048
      %18 = vsyncadd [#allocation3], %s17
      %s19 = sshll.u32 [#allocation2], 4
      %s20 = int_to_ptr.vmem [resolvable:$true] %s19
      %25 = dma.hbm_to_vmem [thread:$0]  %s1, 2048, %s20, [#allocation3], 64, 64, 4
    $region9: #{_lambda_.5} parent=1 // pred_fallthru
      _
    // Predicated region
    $region10: #{_lambda_.5} parent=1 // pred_check
      _
    $region11: #{_lambda_.5} parent=1 // pred_check_branch
      %27 = sbr.rel (0) target = $region13
    $region12: #{_lambda_.5} parent=1 // pred_region
      %s29 = ssub.s32 2048, 2048
      %30 = vsyncadd [#allocation5], %s29
      %s31 = sshll.u32 [#allocation4], 4
      %s32 = int_to_ptr.vmem [resolvable:$true] %s31
      %37 = dma.hbm_to_vmem [thread:$0]  %s2, 2048, %s32, [#allocation5], 128, 128, 8
    $region13: #{_lambda_.5} parent=1 // pred_fallthru
      _
    // Predicated region
    $region14: #{_lambda_.5} parent=1 // pred_check
      _
    $region15: #{_lambda_.5} parent=1 // pred_check_branch
      %39 = sbr.rel (0) target = $region17
    $region16: #{_lambda_.5} parent=1 // pred_region
      %s41 = ssub.s32 16, 16
      %42 = vsyncadd [#allocation5], %s41
      %s44 = sshll.u32 [#allocation6], 4
      %s45 = int_to_ptr.vmem [resolvable:$true] %s44
      %47 = dma.hbm_to_vmem [thread:$0]  %s3, 16, %s45, [#allocation5]
    $region17: #{_lambda_.5} parent=1 // pred_fallthru
      _
    // Predicated region
    $region18: #{_lambda_.5} parent=1 // pred_check
      _
    $region19: #{_lambda_.5} parent=1 // pred_check_branch
      %49 = sbr.rel (0) target = $region21
    $region20: #{_lambda_.5} parent=1 // pred_region
      _
    $region21: #{_lambda_.5} parent=1 // pred_fallthru
      _
    // Predicated region
    $region22: #{_lambda_.5} parent=1 // pred_check
      _
    $region23: #{_lambda_.5} parent=1 // pred_check_branch
      %51 = sbr.rel (0) target = $region25
    $region24: #{_lambda_.5} parent=1 // pred_region
      %52 = dma.done [#allocation3], 2048
    $region25: #{_lambda_.5} parent=1 // pred_fallthru
      _
    // Predicated region
    $region26: #{_lambda_.5} parent=1 // pred_check
      _
    $region27: #{_lambda_.5} parent=1 // pred_check_branch
      %54 = sbr.rel (0) target = $region29
    $region28: #{_lambda_.5} parent=1 // pred_region
      %55 = dma.done [#allocation5], 2048
    $region29: #{_lambda_.5} parent=1 // pred_fallthru
      _
    // Predicated region
    $region30: #{_lambda_.5} parent=1 // pred_check
      _
    $region31: #{_lambda_.5} parent=1 // pred_check_branch
      %57 = sbr.rel (0) target = $region33
    $region32: #{_lambda_.5} parent=1 // pred_region
      %58 = dma.done [#allocation5], 16
    $region33: #{_lambda_.5} parent=1 // pred_fallthru
      _
    %v60 = vld [vmem:[%s0] sm:$0xff]
    %v61 = vld [vmem:[%s0 + $0x8] sm:$0xff]
    %v62 = vld [vmem:[%s0 + $0x10] sm:$0xff]
    %v63 = vld [vmem:[%s0 + $0x18] sm:$0xff]
    %v64 = vld [vmem:[#allocation2] sm:$0xf]
    %v65 = vld [vmem:[#allocation2 + $0x4] sm:$0xf]
    %v66 = vld [vmem:[#allocation2 + $0x8] sm:$0xf]
    %v67 = vld [vmem:[#allocation2 + $0xc] sm:$0xf]
    %v68 = vld [vmem:[#allocation2 + $0x10] sm:$0xf]
    %v69 = vld [vmem:[#allocation2 + $0x14] sm:$0xf]
    %v70 = vld [vmem:[#allocation2 + $0x18] sm:$0xf]
    %v71 = vld [vmem:[#allocation2 + $0x1c] sm:$0xf]
    %v72 = vld [vmem:[#allocation2 + $0x20] sm:$0xf]
    %v73 = vld [vmem:[#allocation2 + $0x24] sm:$0xf]
    %v74 = vld [vmem:[#allocation2 + $0x28] sm:$0xf]
    %v75 = vld [vmem:[#allocation2 + $0x2c] sm:$0xf]
    %v76 = vld [vmem:[#allocation2 + $0x30] sm:$0xf]
    %v77 = vld [vmem:[#allocation2 + $0x34] sm:$0xf]
    %v78 = vld [vmem:[#allocation2 + $0x38] sm:$0xf]
    %v79 = vld [vmem:[#allocation2 + $0x3c] sm:$0xf]
    %v80 = vld [vmem:[#allocation2 + $0x40] sm:$0xf]
    %v81 = vld [vmem:[#allocation2 + $0x44] sm:$0xf]
    %v82 = vld [vmem:[#allocation2 + $0x48] sm:$0xf]
    %v83 = vld [vmem:[#allocation2 + $0x4c] sm:$0xf]
    %v84 = vld [vmem:[#allocation2 + $0x50] sm:$0xf]
    %v85 = vld [vmem:[#allocation2 + $0x54] sm:$0xf]
    %v86 = vld [vmem:[#allocation2 + $0x58] sm:$0xf]
    %v87 = vld [vmem:[#allocation2 + $0x5c] sm:$0xf]
    %v88 = vld [vmem:[#allocation2 + $0x60] sm:$0xf]
    %v89 = vld [vmem:[#allocation2 + $0x64] sm:$0xf]
    %v90 = vld [vmem:[#allocation2 + $0x68] sm:$0xf]
    %v91 = vld [vmem:[#allocation2 + $0x6c] sm:$0xf]
    %v92 = vld [vmem:[#allocation2 + $0x70] sm:$0xf]
    %v93 = vld [vmem:[#allocation2 + $0x74] sm:$0xf]
    %v94 = vld [vmem:[#allocation2 + $0x78] sm:$0xf]
    %v95 = vld [vmem:[#allocation2 + $0x7c] sm:$0xf]
    %v100 = vunpack.c.l.b16 %v60
    %v101 = vunpack.c.h.b16 %v60
    %v102 = vunpack.c.l.b16 %v61
    %v103 = vunpack.c.h.b16 %v61
    %v104 = vunpack.c.l.b16 %v62
    %v105 = vunpack.c.h.b16 %v62
    %v106 = vunpack.c.l.b16 %v63
    %v107 = vunpack.c.h.b16 %v63
    %v108 = vpack.c.b16 %v102, %v100
    %v109 = vpack.c.b16 %v103, %v101
    %v110 = vpack.c.b16 %v106, %v104
    %v111 = vpack.c.b16 %v107, %v105
    %v148 = vunpack.c.l.b16 %v64
    %v149 = vunpack.c.l.b16 %v65
    %v150 = vunpack.c.l.b16 %v66
    %v151 = vunpack.c.l.b16 %v67
    %v152 = vunpack.c.l.b16 %v68
    %v153 = vunpack.c.l.b16 %v69
    %v154 = vunpack.c.l.b16 %v70
    %v155 = vunpack.c.l.b16 %v71
    %v156 = vunpack.c.l.b16 %v72
    %v157 = vunpack.c.l.b16 %v73
    %v158 = vunpack.c.l.b16 %v74
    %v159 = vunpack.c.l.b16 %v75
    %v160 = vunpack.c.l.b16 %v76
    %v161 = vunpack.c.l.b16 %v77
    %v162 = vunpack.c.l.b16 %v78
    %v163 = vunpack.c.l.b16 %v79
    %v164 = vunpack.c.l.b16 %v80
    %v165 = vunpack.c.l.b16 %v81
    %v166 = vunpack.c.l.b16 %v82
    %v167 = vunpack.c.l.b16 %v83
    %v168 = vunpack.c.l.b16 %v84
    %v169 = vunpack.c.l.b16 %v85
    %v170 = vunpack.c.l.b16 %v86
    %v171 = vunpack.c.l.b16 %v87
    %v172 = vunpack.c.l.b16 %v88
    %v173 = vunpack.c.l.b16 %v89
    %v174 = vunpack.c.l.b16 %v90
    %v175 = vunpack.c.l.b16 %v91
    %v176 = vunpack.c.l.b16 %v92
    %v177 = vunpack.c.l.b16 %v93
    %v178 = vunpack.c.l.b16 %v94
    %v179 = vunpack.c.l.b16 %v95
    %v180 = vpack.c.b16 %v149, %v148
    %v181 = vpack.c.b16 %v151, %v150
    %v182 = vpack.c.b16 %v153, %v152
    %v183 = vpack.c.b16 %v155, %v154
    %v184 = vpack.c.b16 %v157, %v156
    %v185 = vpack.c.b16 %v159, %v158
    %v186 = vpack.c.b16 %v161, %v160
    %v187 = vpack.c.b16 %v163, %v162
    %v188 = vpack.c.b16 %v165, %v164
    %v189 = vpack.c.b16 %v167, %v166
    %v190 = vpack.c.b16 %v169, %v168
    %v191 = vpack.c.b16 %v171, %v170
    %v192 = vpack.c.b16 %v173, %v172
    %v193 = vpack.c.b16 %v175, %v174
    %v194 = vpack.c.b16 %v177, %v176
    %v195 = vpack.c.b16 %v179, %v178
    %212 = vmatprep.subr.bf16.mxu0 0
    %213 = vmatpush1.bf16.msra.mxu0 %v180
    %214 = vmatprep.subr.bf16.mxu0 0
    %215 = vmatpush1.bf16.msra.mxu0 %v181
    %216 = vmatprep.subr.bf16.mxu0 0
    %217 = vmatpush1.bf16.msra.mxu0 %v182
    %218 = vmatprep.subr.bf16.mxu0 0
    %219 = vmatpush1.bf16.msra.mxu0 %v183
    %220 = vmatprep.subr.bf16.mxu0 0
    %221 = vmatpush1.bf16.msra.mxu0 %v184
    %222 = vmatprep.subr.bf16.mxu0 0
    %223 = vmatpush1.bf16.msra.mxu0 %v185
    %224 = vmatprep.subr.bf16.mxu0 0
    %225 = vmatpush1.bf16.msra.mxu0 %v186
    %226 = vmatprep.subr.bf16.mxu0 0
    %227 = vmatpush1.bf16.msra.mxu0 %v187
    %228 = vmatprep.subr.bf16.mxu0 0
    %229 = vmatpush1.bf16.msra.mxu0 %v188
    %230 = vmatprep.subr.bf16.mxu0 0
    %231 = vmatpush1.bf16.msra.mxu0 %v189
    %232 = vmatprep.subr.bf16.mxu0 0
    %233 = vmatpush1.bf16.msra.mxu0 %v190
    %234 = vmatprep.subr.bf16.mxu0 0
    %235 = vmatpush1.bf16.msra.mxu0 %v191
    %236 = vmatprep.subr.bf16.mxu0 0
    %237 = vmatpush1.bf16.msra.mxu0 %v192
    %238 = vmatprep.subr.bf16.mxu0 0
    %239 = vmatpush1.bf16.msra.mxu0 %v193
    %240 = vmatprep.subr.bf16.mxu0 0
    %241 = vmatpush1.bf16.msra.mxu0 %v194
    %242 = vmatprep.subr.bf16.mxu0 0
    %243 = vmatpush1.bf16.msra.mxu0 %v195
    %244 = vmatprep.mubr.bf16.mxu0 %v109
    %245 = vmatmul.mubr.bf16.gmra.mrb[0].mxu0 %v108
    %v246 = vpop.f32.mrb[0].mxu0
    %v247 = vadd.f32 0.0, %v246
    %v248 = vpop.f32.mrb[0].mxu0
    %v249 = vpop.f32.mrb[0].mxu0
    %v250 = vadd.f32 0.0, %v249
    %v251 = vpop.f32.mrb[0].mxu0
    %252 = vmatprep.mubr.bf16.mxu0 %v111
    %253 = vmatmul.mubr.bf16.gmra.mrb[0].mxu0 %v110
    %v254 = vpop.f32.mrb[0].mxu0
    %v255 = vadd.f32 0.0, %v254
    %v256 = vpop.f32.mrb[0].mxu0
    %v257 = vpop.f32.mrb[0].mxu0
    %v258 = vadd.f32 0.0, %v257
    %v259 = vpop.f32.mrb[0].mxu0
    %260 = vdwg.mxu0
    %v261 = vadd.f32 %v247, %v250
    %v262 = vadd.f32 %v261, %v255
    %v263 = vadd.f32 %v262, %v258
    %v264 = vrot.slane %v263, 4
    %v265 = vadd.f32 %v263, %v264
    %v266 = vrot.slane %v265, 2
    %v267 = vadd.f32 %v265, %v266
    %v268 = vrot.slane %v267, 1
    %v269 = vadd.f32 %v267, %v268
    %v270 = vmul.f32 %v247, %v247
    %v271 = vmul.f32 %v250, %v250
    %v272 = vmul.f32 %v255, %v255
    %v273 = vmul.f32 %v258, %v258
    %v274 = vadd.f32 %v270, %v271
    %v275 = vadd.f32 %v274, %v272
    %v276 = vadd.f32 %v275, %v273
    %v277 = vrot.slane %v276, 4
    %v278 = vadd.f32 %v276, %v277
    %v279 = vrot.slane %v278, 2
    %v280 = vadd.f32 %v278, %v279
    %v281 = vrot.slane %v280, 1
    %v282 = vadd.f32 %v280, %v281
    %vm283 = vcmask 1040384
    %v284 = vsel %vm283, %v269, %v282
    %vm285 = vcmask 1041408
    %v286 = vsel %vm285, %v284, 0.0
    %v287 = vld [vmem:[#allocation4] sm:$0xff]
    %v288 = vld [vmem:[#allocation4 + $0x8] sm:$0xff]
    %v289 = vld [vmem:[#allocation4 + $0x10] sm:$0xff]
    %v290 = vld [vmem:[#allocation4 + $0x18] sm:$0xff]
    %v291 = vld [vmem:[#allocation4 + $0x20] sm:$0xff]
    %v292 = vld [vmem:[#allocation4 + $0x28] sm:$0xff]
    %v293 = vld [vmem:[#allocation4 + $0x30] sm:$0xff]
    %v294 = vld [vmem:[#allocation4 + $0x38] sm:$0xff]
    %v295 = vld [vmem:[#allocation4 + $0x40] sm:$0xff]
    %v296 = vld [vmem:[#allocation4 + $0x48] sm:$0xff]
    %v297 = vld [vmem:[#allocation4 + $0x50] sm:$0xff]
    %v298 = vld [vmem:[#allocation4 + $0x58] sm:$0xff]
    %v299 = vld [vmem:[#allocation4 + $0x60] sm:$0xff]
    %v300 = vld [vmem:[#allocation4 + $0x68] sm:$0xff]
    %v301 = vld [vmem:[#allocation4 + $0x70] sm:$0xff]
    %v302 = vld [vmem:[#allocation4 + $0x78] sm:$0xff]
    %303 = vmatprep.subr.mxu0 0.0
    %304 = vmatpush1.msra.mxu0 %v287
    %305 = vmatprep.subr.mxu0 0.0
    %306 = vmatpush1.msra.mxu0 %v288
    %307 = vmatprep.subr.mxu0 0.0
    %308 = vmatpush1.msra.mxu0 %v289
    %309 = vmatprep.subr.mxu0 0.0
    %310 = vmatpush1.msra.mxu0 %v290
    %311 = vmatprep.subr.mxu0 0.0
    %312 = vmatpush1.msra.mxu0 %v291
    %313 = vmatprep.subr.mxu0 0.0
    %314 = vmatpush1.msra.mxu0 %v292
    %315 = vmatprep.subr.mxu0 0.0
    %316 = vmatpush1.msra.mxu0 %v293
    %317 = vmatprep.subr.mxu0 0.0
    %318 = vmatpush1.msra.mxu0 %v294
    %319 = vmatprep.subr.mxu0 0.0
    %320 = vmatpush1.msra.mxu0 %v295
    %321 = vmatprep.subr.mxu0 0.0
    %322 = vmatpush1.msra.mxu0 %v296
    %323 = vmatprep.subr.mxu0 0.0
    %324 = vmatpush1.msra.mxu0 %v297
    %325 = vmatprep.subr.mxu0 0.0
    %326 = vmatpush1.msra.mxu0 %v298
    %327 = vmatprep.subr.mxu0 0.0
    %328 = vmatpush1.msra.mxu0 %v299
    %329 = vmatprep.subr.mxu0 0.0
    %330 = vmatpush1.msra.mxu0 %v300
    %331 = vmatprep.subr.mxu0 0.0
    %332 = vmatpush1.msra.mxu0 %v301
    %333 = vmatprep.subr.mxu0 0.0
    %334 = vmatpush1.msra.mxu0 %v302
    %335 = vmatprep.subr.mxu0 0.0
    %336 = vmatpush1.msra.mxu0 0.0
    %337 = vmatprep.subr.mxu0 0.0
    %338 = vmatpush1.msra.mxu0 0.0
    %339 = vmatprep.subr.mxu0 0.0
    %340 = vmatpush1.msra.mxu0 0.0
    %341 = vmatprep.subr.mxu0 0.0
    %342 = vmatpush1.msra.mxu0 0.0
    %343 = vmatprep.subr.mxu0 0.0
    %344 = vmatpush1.msra.mxu0 0.0
    %345 = vmatprep.subr.mxu0 0.0
    %346 = vmatpush1.msra.mxu0 0.0
    %347 = vmatprep.subr.mxu0 0.0
    %348 = vmatpush1.msra.mxu0 0.0
    %349 = vmatprep.subr.mxu0 0.0
    %350 = vmatpush1.msra.mxu0 0.0
    %351 = vmatprep.subr.mxu0 0.0
    %352 = vmatpush1.msra.mxu0 0.0
    %353 = vmatprep.subr.mxu0 0.0
    %354 = vmatpush1.msra.mxu0 0.0
    %355 = vmatprep.subr.mxu0 0.0
    %356 = vmatpush1.msra.mxu0 0.0
    %357 = vmatprep.subr.mxu0 0.0
    %358 = vmatpush1.msra.mxu0 0.0
    %359 = vmatprep.subr.mxu0 0.0
    %360 = vmatpush1.msra.mxu0 0.0
    %361 = vmatprep.subr.mxu0 0.0
    %362 = vmatpush1.msra.mxu0 0.0
    %363 = vmatprep.subr.mxu0 0.0
    %364 = vmatpush1.msra.mxu0 0.0
    %365 = vmatprep.subr.mxu0 0.0
    %366 = vmatpush1.msra.mxu0 0.0
    %367 = vmatprep.mubr.f32.mxu0 0.0
    %368 = vmatmul.mubr.f32.gmra.mrb[0].mxu0 %v286
    %v369 = vpop.f32.mrb[0].mxu0
    %v370 = vadd.f32 0.0, %v369
    %v371 = vpop.f32.mrb[0].mxu0
    %372 = vdwg.mxu0
    %v373 = vmul.f32 %v370, 0.03125
    %v374 = vmul.f32 %v373, %v373
    %v376 = vrot.slane %v374, 7
    %v378 = vsub.f32 %v373, %v376
    %v379 = vmax.f32 %v378, 0.0
    %v380 = vlaneseq
    %v381 = vshrl.u32 %v380, 7
    %v382 = vsub.s32 0, %v381
    %v383 = vrot.slane %v373, %v382
    %v384 = vsub.f32 %v247, %v383
    %v385 = vsub.f32 %v250, %v383
    %v386 = vsub.f32 %v255, %v383
    %v387 = vsub.f32 %v258, %v383
    %v388 = vadd.f32 %v379, 1e-05
    %v389 = vrsqrt.pop %v388
    %v390 = vlaneseq
    %v391 = vshrl.u32 %v390, 7
    %v392 = vsub.s32 1, %v391
    %v393 = vrot.slane %v389, %v392
    %v394 = vmul.f32 %v384, %v393
    %v395 = vmul.f32 %v385, %v393
    %v396 = vmul.f32 %v386, %v393
    %v397 = vmul.f32 %v387, %v393
    %v398 = vld [vmem:[#allocation6] sm:$0x1]
    %v400 = vlaneseq
    %v401 = vshrl.u32 %v400, 7
    %v402 = vsub.s32 0, %v401
    %v403 = vrot.slane %v398, %v402
    %v405 = vmul.f32 %v394, %v403
    %v406 = vmul.f32 %v395, %v403
    %v407 = vmul.f32 %v396, %v403
    %v408 = vmul.f32 %v397, %v403
    %v409 = vld [vmem:[%s4] sm:$0x1]
    %v411 = vlaneseq
    %v412 = vshrl.u32 %v411, 7
    %v413 = vsub.s32 0, %v412
    %v414 = vrot.slane %v409, %v413
    %v416 = vadd.f32 %v405, %v414
    %v417 = vadd.f32 %v406, %v414
    %v418 = vadd.f32 %v407, %v414
    %v419 = vadd.f32 %v408, %v414
    %v420 = vmax.f32 %v416, 0.0
    %v421 = vmax.f32 %v417, 0.0
    %v422 = vmax.f32 %v418, 0.0
    %v423 = vmax.f32 %v419, 0.0
    %v424 = vpack.c.bf16 %v421, %v420
    %v425 = vpack.c.bf16 %v423, %v422
    %v428 = vunpack.c.l.b16 %v424
    %v429 = vunpack.c.h.b16 %v424
    %v430 = vunpack.c.l.b16 %v425
    %v431 = vunpack.c.h.b16 %v425
    %v432 = vpack.c.b16 %v428, %v428
    %v433 = vpack.c.b16 %v429, %v429
    %v434 = vpack.c.b16 %v430, %v430
    %v435 = vpack.c.b16 %v431, %v431
    %440 = vst [vmem:[%s5] sm:$0xf] %v432
    %441 = vst [vmem:[%s5 + $0x4] sm:$0xf] %v433
    %442 = vst [vmem:[%s5 + $0x8] sm:$0xf] %v434
    %443 = vst [vmem:[%s5 + $0xc] sm:$0xf] %v435
    // Predicated region
    $region34: #{_lambda_.5} parent=1 // pred_check
      _
    $region35: #{_lambda_.5} parent=1 // pred_check_branch
      %445 = sbr.rel (0) target = $region37
    $region36: #{_lambda_.5} parent=1 // pred_region
      _
    $region37: #{_lambda_.5} parent=1 // pred_fallthru
      _
    // Predicated region
    $region38: #{_lambda_.5} parent=1 // pred_check
      _
    $region39: #{_lambda_.5} parent=1 // pred_check_branch
      %447 = sbr.rel (0) target = $region41
    $region40: #{_lambda_.5} parent=1 // pred_region
      _
    $region41: #{_lambda_.5} parent=1 // pred_fallthru
      _
    %448 = vsyncpa [#allocation3], 1
    %449 = vsyncpa [#allocation5], 1

// kernel: _lambda_.6
$region0: #{_lambda_.6}
  #allocation0 [shape = 'u32[]', space=smem, size = 0x4, offset = 0x4, fixed_abs, tag = 'smem constant byte address 0x4 - core index']
  #allocation1 [shape = 'u32[144,128]{1,0:T(1,128)}', space=vmem, size = 0x12000, scoped, tag = 'internal scratch']
  %s0 = inlined_call_operand.vmem [shape: bf16[32,640], index: 0, kind: input, shape index: {}]
  %s1 = inlined_call_operand.hbm [shape: bf16[640,128], index: 1, kind: input, shape index: {}]
  %s2 = inlined_call_operand.hbm [shape: f32[128,128], index: 2, kind: input, shape index: {}]
  %s3 = inlined_call_operand.vmem [shape: f32[1,128], index: 3, kind: input, shape index: {}]
  %s4 = inlined_call_operand.vmem [shape: f32[1,128], index: 4, kind: input, shape index: {}]
  %s5 = inlined_call_operand.vmem [shape: bf16[32,128], index: 5, kind: output, shape index: {}]
  %s6 = sld [smem:[#allocation0]]
  $region38: #{_lambda_.6} parent=0
    _
  %s8 = ssub.s32 1, %s6
  %s9 = scalar_select 0, %s8, %s6
  $region1: #{_lambda_.6} parent=0
    #allocation2 [shape = 'u8[163840]{0}', space=vmem, size = 0x28000, scoped, tag = 'input window, operand 1, single buffered']
    #allocation3 [shape = 's32[1]{0}', space=sflag, size = 0x4, scoped, tag = 'scoped memory for _lambda_.6']
    #allocation4 [shape = 'u8[65536]{0}', space=vmem, size = 0x10000, scoped, tag = 'input window, operand 2, single buffered']
    #allocation5 [shape = 's32[1]{0}', space=sflag, size = 0x4, scoped, tag = 'scoped memory for _lambda_.6']
    %10 = vsyncpa [#allocation3], 0
    %11 = vsyncpa [#allocation5], 0
    // Predicated region
    $region2: #{_lambda_.6} parent=1 // pred_check
      _
    $region3: #{_lambda_.6} parent=1 // pred_check_branch
      %13 = sbr.rel (0) target = $region5
    $region4: #{_lambda_.6} parent=1 // pred_region
      _
    $region5: #{_lambda_.6} parent=1 // pred_fallthru
      _
    // Predicated region
    $region6: #{_lambda_.6} parent=1 // pred_check
      _
    $region7: #{_lambda_.6} parent=1 // pred_check_branch
      %15 = sbr.rel (0) target = $region9
    $region8: #{_lambda_.6} parent=1 // pred_region
      %s17 = ssub.s32 5120, 5120
      %18 = vsyncadd [#allocation3], %s17
      %s19 = sshll.u32 [#allocation2], 4
      %s20 = int_to_ptr.vmem [resolvable:$true] %s19
      %25 = dma.hbm_to_vmem [thread:$0]  %s1, 5120, %s20, [#allocation3], 64, 64, 4
    $region9: #{_lambda_.6} parent=1 // pred_fallthru
      _
    // Predicated region
    $region10: #{_lambda_.6} parent=1 // pred_check
      _
    $region11: #{_lambda_.6} parent=1 // pred_check_branch
      %27 = sbr.rel (0) target = $region13
    $region12: #{_lambda_.6} parent=1 // pred_region
      %s29 = ssub.s32 2048, 2048
      %30 = vsyncadd [#allocation5], %s29
      %s31 = sshll.u32 [#allocation4], 4
      %s32 = int_to_ptr.vmem [resolvable:$true] %s31
      %37 = dma.hbm_to_vmem [thread:$0]  %s2, 2048, %s32, [#allocation5], 128, 128, 8
    $region13: #{_lambda_.6} parent=1 // pred_fallthru
      _
    // Predicated region
    $region14: #{_lambda_.6} parent=1 // pred_check
      _
    $region15: #{_lambda_.6} parent=1 // pred_check_branch
      %39 = sbr.rel (0) target = $region17
    $region16: #{_lambda_.6} parent=1 // pred_region
      _
    $region17: #{_lambda_.6} parent=1 // pred_fallthru
      _
    // Predicated region
    $region18: #{_lambda_.6} parent=1 // pred_check
      _
    $region19: #{_lambda_.6} parent=1 // pred_check_branch
      %41 = sbr.rel (0) target = $region21
    $region20: #{_lambda_.6} parent=1 // pred_region
      _
    $region21: #{_lambda_.6} parent=1 // pred_fallthru
      _
    // Predicated region
    $region22: #{_lambda_.6} parent=1 // pred_check
      _
    $region23: #{_lambda_.6} parent=1 // pred_check_branch
      %43 = sbr.rel (0) target = $region25
    $region24: #{_lambda_.6} parent=1 // pred_region
      %44 = dma.done [#allocation3], 5120
    $region25: #{_lambda_.6} parent=1 // pred_fallthru
      _
    // Predicated region
    $region26: #{_lambda_.6} parent=1 // pred_check
      _
    $region27: #{_lambda_.6} parent=1 // pred_check_branch
      %46 = sbr.rel (0) target = $region29
    $region28: #{_lambda_.6} parent=1 // pred_region
      %47 = dma.done [#allocation5], 2048
    $region29: #{_lambda_.6} parent=1 // pred_fallthru
      _
    %v49 = vld [vmem:[%s0] sm:$0xff]
    %v50 = vld [vmem:[%s0 + $0x8] sm:$0xff]
    %v51 = vld [vmem:[%s0 + $0x10] sm:$0xf]
    %v52 = vld [vmem:[%s0 + $0x14] sm:$0xff]
    %v53 = vld [vmem:[%s0 + $0x1c] sm:$0xff]
    %v54 = vld [vmem:[%s0 + $0x24] sm:$0xf]
    %v55 = vld [vmem:[%s0 + $0x28] sm:$0xff]
    %v56 = vld [vmem:[%s0 + $0x30] sm:$0xff]
    %v57 = vld [vmem:[%s0 + $0x38] sm:$0xf]
    %v58 = vld [vmem:[%s0 + $0x3c] sm:$0xff]
    %v59 = vld [vmem:[%s0 + $0x44] sm:$0xff]
    %v60 = vld [vmem:[%s0 + $0x4c] sm:$0xf]
    %v61 = vld [vmem:[#allocation2] sm:$0xf]
    %v62 = vld [vmem:[#allocation2 + $0x4] sm:$0xf]
    %v63 = vld [vmem:[#allocation2 + $0x8] sm:$0xf]
    %v64 = vld [vmem:[#allocation2 + $0xc] sm:$0xf]
    %v65 = vld [vmem:[#allocation2 + $0x10] sm:$0xf]
    %v66 = vld [vmem:[#allocation2 + $0x14] sm:$0xf]
    %v67 = vld [vmem:[#allocation2 + $0x18] sm:$0xf]
    %v68 = vld [vmem:[#allocation2 + $0x1c] sm:$0xf]
    %v69 = vld [vmem:[#allocation2 + $0x20] sm:$0xf]
    %v70 = vld [vmem:[#allocation2 + $0x24] sm:$0xf]
    %v71 = vld [vmem:[#allocation2 + $0x28] sm:$0xf]
    %v72 = vld [vmem:[#allocation2 + $0x2c] sm:$0xf]
    %v73 = vld [vmem:[#allocation2 + $0x30] sm:$0xf]
    %v74 = vld [vmem:[#allocation2 + $0x34] sm:$0xf]
    %v75 = vld [vmem:[#allocation2 + $0x38] sm:$0xf]
    %v76 = vld [vmem:[#allocation2 + $0x3c] sm:$0xf]
    %v77 = vld [vmem:[#allocation2 + $0x40] sm:$0xf]
    %v78 = vld [vmem:[#allocation2 + $0x44] sm:$0xf]
    %v79 = vld [vmem:[#allocation2 + $0x48] sm:$0xf]
    %v80 = vld [vmem:[#allocation2 + $0x4c] sm:$0xf]
    %v81 = vld [vmem:[#allocation2 + $0x50] sm:$0xf]
    %v82 = vld [vmem:[#allocation2 + $0x54] sm:$0xf]
    %v83 = vld [vmem:[#allocation2 + $0x58] sm:$0xf]
    %v84 = vld [vmem:[#allocation2 + $0x5c] sm:$0xf]
    %v85 = vld [vmem:[#allocation2 + $0x60] sm:$0xf]
    %v86 = vld [vmem:[#allocation2 + $0x64] sm:$0xf]
    %v87 = vld [vmem:[#allocation2 + $0x68] sm:$0xf]
    %v88 = vld [vmem:[#allocation2 + $0x6c] sm:$0xf]
    %v89 = vld [vmem:[#allocation2 + $0x70] sm:$0xf]
    %v90 = vld [vmem:[#allocation2 + $0x74] sm:$0xf]
    %v91 = vld [vmem:[#allocation2 + $0x78] sm:$0xf]
    %v92 = vld [vmem:[#allocation2 + $0x7c] sm:$0xf]
    %v93 = vld [vmem:[#allocation2 + $0x80] sm:$0xf]
    %v94 = vld [vmem:[#allocation2 + $0x84] sm:$0xf]
    %v95 = vld [vmem:[#allocation2 + $0x88] sm:$0xf]
    %v96 = vld [vmem:[#allocation2 + $0x8c] sm:$0xf]
    %v97 = vld [vmem:[#allocation2 + $0x90] sm:$0xf]
    %v98 = vld [vmem:[#allocation2 + $0x94] sm:$0xf]
    %v99 = vld [vmem:[#allocation2 + $0x98] sm:$0xf]
    %v100 = vld [vmem:[#allocation2 + $0x9c] sm:$0xf]
    %v101 = vld [vmem:[#allocation2 + $0xa0] sm:$0xf]
    %v102 = vld [vmem:[#allocation2 + $0xa4] sm:$0xf]
    %v103 = vld [vmem:[#allocation2 + $0xa8] sm:$0xf]
    %v104 = vld [vmem:[#allocation2 + $0xac] sm:$0xf]
    %v105 = vld [vmem:[#allocation2 + $0xb0] sm:$0xf]
    %v106 = vld [vmem:[#allocation2 + $0xb4] sm:$0xf]
    %v107 = vld [vmem:[#allocation2 + $0xb8] sm:$0xf]
    %v108 = vld [vmem:[#allocation2 + $0xbc] sm:$0xf]
    %v109 = vld [vmem:[#allocation2 + $0xc0] sm:$0xf]
    %v110 = vld [vmem:[#allocation2 + $0xc4] sm:$0xf]
    %v111 = vld [vmem:[#allocation2 + $0xc8] sm:$0xf]
    %v112 = vld [vmem:[#allocation2 + $0xcc] sm:$0xf]
    %v113 = vld [vmem:[#allocation2 + $0xd0] sm:$0xf]
    %v114 = vld [vmem:[#allocation2 + $0xd4] sm:$0xf]
    %v115 = vld [vmem:[#allocation2 + $0xd8] sm:$0xf]
    %v116 = vld [vmem:[#allocation2 + $0xdc] sm:$0xf]
    %v117 = vld [vmem:[#allocation2 + $0xe0] sm:$0xf]
    %v118 = vld [vmem:[#allocation2 + $0xe4] sm:$0xf]
    %v119 = vld [vmem:[#allocation2 + $0xe8] sm:$0xf]
    %v120 = vld [vmem:[#allocation2 + $0xec] sm:$0xf]
    %v121 = vld [vmem:[#allocation2 + $0xf0] sm:$0xf]
    %v122 = vld [vmem:[#allocation2 + $0xf4] sm:$0xf]
    %v123 = vld [vmem:[#allocation2 + $0xf8] sm:$0xf]
    %v124 = vld [vmem:[#allocation2 + $0xfc] sm:$0xf]
    %v125 = vld [vmem:[#allocation2 + $0x100] sm:$0xf]
    %v126 = vld [vmem:[#allocation2 + $0x104] sm:$0xf]
    %v127 = vld [vmem:[#allocation2 + $0x108] sm:$0xf]
    %v128 = vld [vmem:[#allocation2 + $0x10c] sm:$0xf]
    %v129 = vld [vmem:[#allocation2 + $0x110] sm:$0xf]
    %v130 = vld [vmem:[#allocation2 + $0x114] sm:$0xf]
    %v131 = vld [vmem:[#allocation2 + $0x118] sm:$0xf]
    %v132 = vld [vmem:[#allocation2 + $0x11c] sm:$0xf]
    %v133 = vld [vmem:[#allocation2 + $0x120] sm:$0xf]
    %v134 = vld [vmem:[#allocation2 + $0x124] sm:$0xf]
    %v135 = vld [vmem:[#allocation2 + $0x128] sm:$0xf]
    %v136 = vld [vmem:[#allocation2 + $0x12c] sm:$0xf]
    %v137 = vld [vmem:[#allocation2 + $0x130] sm:$0xf]
    %v138 = vld [vmem:[#allocation2 + $0x134] sm:$0xf]
    %v139 = vld [vmem:[#allocation2 + $0x138] sm:$0xf]
    %v140 = vld [vmem:[#allocation2 + $0x13c] sm:$0xf]
    %v153 = vunpack.c.l.b16 %v49
    %v154 = vunpack.c.h.b16 %v49
    %v155 = vunpack.c.l.b16 %v50
    %v156 = vunpack.c.h.b16 %v50
    %v157 = vunpack.c.l.b16 %v51
    %v158 = vunpack.c.l.b16 %v52
    %v159 = vunpack.c.h.b16 %v52
    %v160 = vunpack.c.l.b16 %v53
    %v161 = vunpack.c.h.b16 %v53
    %v162 = vunpack.c.l.b16 %v54
    %v163 = vunpack.c.l.b16 %v55
    %v164 = vunpack.c.h.b16 %v55
    %v165 = vunpack.c.l.b16 %v56
    %v166 = vunpack.c.h.b16 %v56
    %v167 = vunpack.c.l.b16 %v57
    %v168 = vunpack.c.l.b16 %v58
    %v169 = vunpack.c.h.b16 %v58
    %v170 = vunpack.c.l.b16 %v59
    %v171 = vunpack.c.h.b16 %v59
    %v172 = vunpack.c.l.b16 %v60
    %v173 = vpack.c.b16 %v158, %v153
    %v174 = vpack.c.b16 %v159, %v154
    %v175 = vpack.c.b16 %v160, %v155
    %v176 = vpack.c.b16 %v161, %v156
    %v177 = vpack.c.b16 %v162, %v157
    %v178 = vpack.c.b16 %v168, %v163
    %v179 = vpack.c.b16 %v169, %v164
    %v180 = vpack.c.b16 %v170, %v165
    %v181 = vpack.c.b16 %v171, %v166
    %v182 = vpack.c.b16 %v172, %v167
    %v273 = vunpack.c.l.b16 %v61
    %v274 = vunpack.c.l.b16 %v62
    %v275 = vunpack.c.l.b16 %v63
    %v276 = vunpack.c.l.b16 %v64
    %v277 = vunpack.c.l.b16 %v65
    %v278 = vunpack.c.l.b16 %v66
    %v279 = vunpack.c.l.b16 %v67
    %v280 = vunpack.c.l.b16 %v68
    %v281 = vunpack.c.l.b16 %v69
    %v282 = vunpack.c.l.b16 %v70
    %v283 = vunpack.c.l.b16 %v71
    %v284 = vunpack.c.l.b16 %v72
    %v285 = vunpack.c.l.b16 %v73
    %v286 = vunpack.c.l.b16 %v74
    %v287 = vunpack.c.l.b16 %v75
    %v288 = vunpack.c.l.b16 %v76
    %v289 = vunpack.c.l.b16 %v77
    %v290 = vunpack.c.l.b16 %v78
    %v291 = vunpack.c.l.b16 %v79
    %v292 = vunpack.c.l.b16 %v80
    %v293 = vunpack.c.l.b16 %v81
    %v294 = vunpack.c.l.b16 %v82
    %v295 = vunpack.c.l.b16 %v83
    %v296 = vunpack.c.l.b16 %v84
    %v297 = vunpack.c.l.b16 %v85
    %v298 = vunpack.c.l.b16 %v86
    %v299 = vunpack.c.l.b16 %v87
    %v300 = vunpack.c.l.b16 %v88
    %v301 = vunpack.c.l.b16 %v89
    %v302 = vunpack.c.l.b16 %v90
    %v303 = vunpack.c.l.b16 %v91
    %v304 = vunpack.c.l.b16 %v92
    %v305 = vunpack.c.l.b16 %v93
    %v306 = vunpack.c.l.b16 %v94
    %v307 = vunpack.c.l.b16 %v95
    %v308 = vunpack.c.l.b16 %v96
    %v309 = vunpack.c.l.b16 %v97
    %v310 = vunpack.c.l.b16 %v98
    %v311 = vunpack.c.l.b16 %v99
    %v312 = vunpack.c.l.b16 %v100
    %v313 = vunpack.c.l.b16 %v101
    %v314 = vunpack.c.l.b16 %v102
    %v315 = vunpack.c.l.b16 %v103
    %v316 = vunpack.c.l.b16 %v104
    %v317 = vunpack.c.l.b16 %v105
    %v318 = vunpack.c.l.b16 %v106
    %v319 = vunpack.c.l.b16 %v107
    %v320 = vunpack.c.l.b16 %v108
    %v321 = vunpack.c.l.b16 %v109
    %v322 = vunpack.c.l.b16 %v110
    %v323 = vunpack.c.l.b16 %v111
    %v324 = vunpack.c.l.b16 %v112
    %v325 = vunpack.c.l.b16 %v113
    %v326 = vunpack.c.l.b16 %v114
    %v327 = vunpack.c.l.b16 %v115
    %v328 = vunpack.c.l.b16 %v116
    %v329 = vunpack.c.l.b16 %v117
    %v330 = vunpack.c.l.b16 %v118
    %v331 = vunpack.c.l.b16 %v119
    %v332 = vunpack.c.l.b16 %v120
    %v333 = vunpack.c.l.b16 %v121
    %v334 = vunpack.c.l.b16 %v122
    %v335 = vunpack.c.l.b16 %v123
    %v336 = vunpack.c.l.b16 %v124
    %v337 = vunpack.c.l.b16 %v125
    %v338 = vunpack.c.l.b16 %v126
    %v339 = vunpack.c.l.b16 %v127
    %v340 = vunpack.c.l.b16 %v128
    %v341 = vunpack.c.l.b16 %v129
    %v342 = vunpack.c.l.b16 %v130
    %v343 = vunpack.c.l.b16 %v131
    %v344 = vunpack.c.l.b16 %v132
    %v345 = vunpack.c.l.b16 %v133
    %v346 = vunpack.c.l.b16 %v134
    %v347 = vunpack.c.l.b16 %v135
    %v348 = vunpack.c.l.b16 %v136
    %v349 = vunpack.c.l.b16 %v137
    %v350 = vunpack.c.l.b16 %v138
    %v351 = vunpack.c.l.b16 %v139
    %v352 = vunpack.c.l.b16 %v140
    %v353 = vpack.c.b16 %v274, %v273
    %v354 = vpack.c.b16 %v276, %v275
    %v355 = vpack.c.b16 %v278, %v277
    %v356 = vpack.c.b16 %v280, %v279
    %v357 = vpack.c.b16 %v282, %v281
    %v358 = vpack.c.b16 %v284, %v283
    %v359 = vpack.c.b16 %v286, %v285
    %v360 = vpack.c.b16 %v288, %v287
    %v361 = vpack.c.b16 %v290, %v289
    %v362 = vpack.c.b16 %v292, %v291
    %v363 = vpack.c.b16 %v294, %v293
    %v364 = vpack.c.b16 %v296, %v295
    %v365 = vpack.c.b16 %v298, %v297
    %v366 = vpack.c.b16 %v300, %v299
    %v367 = vpack.c.b16 %v302, %v301
    %v368 = vpack.c.b16 %v304, %v303
    %v369 = vpack.c.b16 %v306, %v305
    %v370 = vpack.c.b16 %v308, %v307
    %v371 = vpack.c.b16 %v310, %v309
    %v372 = vpack.c.b16 %v312, %v311
    %v373 = vpack.c.b16 %v314, %v313
    %v374 = vpack.c.b16 %v316, %v315
    %v375 = vpack.c.b16 %v318, %v317
    %v376 = vpack.c.b16 %v320, %v319
    %v377 = vpack.c.b16 %v322, %v321
    %v378 = vpack.c.b16 %v324, %v323
    %v379 = vpack.c.b16 %v326, %v325
    %v380 = vpack.c.b16 %v328, %v327
    %v381 = vpack.c.b16 %v330, %v329
    %v382 = vpack.c.b16 %v332, %v331
    %v383 = vpack.c.b16 %v334, %v333
    %v384 = vpack.c.b16 %v336, %v335
    %v385 = vpack.c.b16 %v338, %v337
    %v386 = vpack.c.b16 %v340, %v339
    %v387 = vpack.c.b16 %v342, %v341
    %v388 = vpack.c.b16 %v344, %v343
    %v389 = vpack.c.b16 %v346, %v345
    %v390 = vpack.c.b16 %v348, %v347
    %v391 = vpack.c.b16 %v350, %v349
    %v392 = vpack.c.b16 %v352, %v351
    %433 = vmatprep.subr.bf16.mxu0 0
    %434 = vmatpush1.bf16.msra.mxu0 %v353
    %435 = vmatprep.subr.bf16.mxu0 0
    %436 = vmatpush1.bf16.msra.mxu0 %v354
    %437 = vmatprep.subr.bf16.mxu0 0
    %438 = vmatpush1.bf16.msra.mxu0 %v355
    %439 = vmatprep.subr.bf16.mxu0 0
    %440 = vmatpush1.bf16.msra.mxu0 %v356
    %441 = vmatprep.subr.bf16.mxu0 0
    %442 = vmatpush1.bf16.msra.mxu0 %v357
    %443 = vmatprep.subr.bf16.mxu0 0
    %444 = vmatpush1.bf16.msra.mxu0 %v358
    %445 = vmatprep.subr.bf16.mxu0 0
    %446 = vmatpush1.bf16.msra.mxu0 %v359
    %447 = vmatprep.subr.bf16.mxu0 0
    %448 = vmatpush1.bf16.msra.mxu0 %v360
    %449 = vmatprep.subr.bf16.mxu0 0
    %450 = vmatpush1.bf16.msra.mxu0 %v361
    %451 = vmatprep.subr.bf16.mxu0 0
    %452 = vmatpush1.bf16.msra.mxu0 %v362
    %453 = vmatprep.subr.bf16.mxu0 0
    %454 = vmatpush1.bf16.msra.mxu0 %v363
    %455 = vmatprep.subr.bf16.mxu0 0
    %456 = vmatpush1.bf16.msra.mxu0 %v364
    %457 = vmatprep.subr.bf16.mxu0 0
    %458 = vmatpush1.bf16.msra.mxu0 %v365
    %459 = vmatprep.subr.bf16.mxu0 0
    %460 = vmatpush1.bf16.msra.mxu0 %v366
    %461 = vmatprep.subr.bf16.mxu0 0
    %462 = vmatpush1.bf16.msra.mxu0 %v367
    %463 = vmatprep.subr.bf16.mxu0 0
    %464 = vmatpush1.bf16.msra.mxu0 %v368
    %465 = vmatprep.mubr.bf16.mxu0 %v174
    %466 = vmatmul.mubr.bf16.gmra.mrb[0].mxu0 %v173
    %v467 = vpop.f32.mrb[0].mxu0
    %v468 = vadd.f32 0.0, %v467
    %v469 = vpop.f32.mrb[0].mxu0
    %v470 = vpop.f32.mrb[0].mxu0
    %v471 = vadd.f32 0.0, %v470
    %v472 = vpop.f32.mrb[0].mxu0
    %473 = vmatprep.mubr.bf16.mxu0 %v179
    %474 = vmatmul.mubr.bf16.gmra.mrb[0].mxu0 %v178
    %v475 = vpop.f32.mrb[0].mxu0
    %v476 = vadd.f32 0.0, %v475
    %v477 = vpop.f32.mrb[0].mxu0
    %v478 = vpop.f32.mrb[0].mxu0
    %v479 = vadd.f32 0.0, %v478
    %v480 = vpop.f32.mrb[0].mxu0
    %481 = vdwg.mxu0
    %482 = vmatprep.subr.bf16.mxu0 0
    %483 = vmatpush1.bf16.msra.mxu0 %v369
    %484 = vmatprep.subr.bf16.mxu0 0
    %485 = vmatpush1.bf16.msra.mxu0 %v370
    %486 = vmatprep.subr.bf16.mxu0 0
    %487 = vmatpush1.bf16.msra.mxu0 %v371
    %488 = vmatprep.subr.bf16.mxu0 0
    %489 = vmatpush1.bf16.msra.mxu0 %v372
    %490 = vmatprep.subr.bf16.mxu0 0
    %491 = vmatpush1.bf16.msra.mxu0 %v373
    %492 = vmatprep.subr.bf16.mxu0 0
    %493 = vmatpush1.bf16.msra.mxu0 %v374
    %494 = vmatprep.subr.bf16.mxu0 0
    %495 = vmatpush1.bf16.msra.mxu0 %v375
    %496 = vmatprep.subr.bf16.mxu0 0
    %497 = vmatpush1.bf16.msra.mxu0 %v376
    %498 = vmatprep.subr.bf16.mxu0 0
    %499 = vmatpush1.bf16.msra.mxu0 %v377
    %500 = vmatprep.subr.bf16.mxu0 0
    %501 = vmatpush1.bf16.msra.mxu0 %v378
    %502 = vmatprep.subr.bf16.mxu0 0
    %503 = vmatpush1.bf16.msra.mxu0 %v379
    %504 = vmatprep.subr.bf16.mxu0 0
    %505 = vmatpush1.bf16.msra.mxu0 %v380
    %506 = vmatprep.subr.bf16.mxu0 0
    %507 = vmatpush1.bf16.msra.mxu0 %v381
    %508 = vmatprep.subr.bf16.mxu0 0
    %509 = vmatpush1.bf16.msra.mxu0 %v382
    %510 = vmatprep.subr.bf16.mxu0 0
    %511 = vmatpush1.bf16.msra.mxu0 %v383
    %512 = vmatprep.subr.bf16.mxu0 0
    %513 = vmatpush1.bf16.msra.mxu0 %v384
    %514 = vmatprep.mubr.bf16.mxu0 %v176
    %515 = vmatmul.mubr.bf16.gmra.mrb[0].mxu0 %v175
    %v516 = vpop.f32.mrb[0].mxu0
    %v517 = vadd.f32 %v468, %v516
    %v518 = vpop.f32.mrb[0].mxu0
    %v519 = vpop.f32.mrb[0].mxu0
    %v520 = vadd.f32 %v471, %v519
    %v521 = vpop.f32.mrb[0].mxu0
    %522 = vmatprep.mubr.bf16.mxu0 %v181
    %523 = vmatmul.mubr.bf16.gmra.mrb[0].mxu0 %v180
    %v524 = vpop.f32.mrb[0].mxu0
    %v525 = vadd.f32 %v476, %v524
    %v526 = vpop.f32.mrb[0].mxu0
    %v527 = vpop.f32.mrb[0].mxu0
    %v528 = vadd.f32 %v479, %v527
    %v529 = vpop.f32.mrb[0].mxu0
    %530 = vdwg.mxu0
    %531 = vmatprep.subr.bf16.mxu0 0
    %532 = vmatpush1.bf16.msra.mxu0 %v385
    %533 = vmatprep.subr.bf16.mxu0 0
    %534 = vmatpush1.bf16.msra.mxu0 %v386
    %535 = vmatprep.subr.bf16.mxu0 0
    %536 = vmatpush1.bf16.msra.mxu0 %v387
    %537 = vmatprep.subr.bf16.mxu0 0
    %538 = vmatpush1.bf16.msra.mxu0 %v388
    %539 = vmatprep.subr.bf16.mxu0 0
    %540 = vmatpush1.bf16.msra.mxu0 %v389
    %541 = vmatprep.subr.bf16.mxu0 0
    %542 = vmatpush1.bf16.msra.mxu0 %v390
    %543 = vmatprep.subr.bf16.mxu0 0
    %544 = vmatpush1.bf16.msra.mxu0 %v391
    %545 = vmatprep.subr.bf16.mxu0 0
    %546 = vmatpush1.bf16.msra.mxu0 %v392
    %547 = vmatprep.subr.bf16.mxu0 0
    %548 = vmatpush1.bf16.msra.mxu0 0
    %549 = vmatprep.subr.bf16.mxu0 0
    %550 = vmatpush1.bf16.msra.mxu0 0
    %551 = vmatprep.subr.bf16.mxu0 0
    %552 = vmatpush1.bf16.msra.mxu0 0
    %553 = vmatprep.subr.bf16.mxu0 0
    %554 = vmatpush1.bf16.msra.mxu0 0
    %555 = vmatprep.subr.bf16.mxu0 0
    %556 = vmatpush1.bf16.msra.mxu0 0
    %557 = vmatprep.subr.bf16.mxu0 0
    %558 = vmatpush1.bf16.msra.mxu0 0
    %559 = vmatprep.subr.bf16.mxu0 0
    %560 = vmatpush1.bf16.msra.mxu0 0
    %561 = vmatprep.subr.bf16.mxu0 0
    %562 = vmatpush1.bf16.msra.mxu0 0
    %563 = vmatprep.mubr.bf16.mxu0 0
    %564 = vmatmul.mubr.bf16.gmra.mrb[0].mxu0 %v177
    %v565 = vpop.f32.mrb[0].mxu0
    %v566 = vadd.f32 %v517, %v565
    %v567 = vpop.f32.mrb[0].mxu0
    %v568 = vpop.f32.mrb[0].mxu0
    %v569 = vadd.f32 %v520, %v568
    %v570 = vpop.f32.mrb[0].mxu0
    %571 = vmatprep.mubr.bf16.mxu0 0
    %572 = vmatmul.mubr.bf16.gmra.mrb[0].mxu0 %v182
    %v573 = vpop.f32.mrb[0].mxu0
    %v574 = vadd.f32 %v525, %v573
    %v575 = vpop.f32.mrb[0].mxu0
    %v576 = vpop.f32.mrb[0].mxu0
    %v577 = vadd.f32 %v528, %v576
    %v578 = vpop.f32.mrb[0].mxu0
    %579 = vdwg.mxu0
    %v580 = vadd.f32 %v566, %v569
    %v581 = vadd.f32 %v580, %v574
    %v582 = vadd.f32 %v581, %v577
    %v583 = vrot.slane %v582, 4
    %v584 = vadd.f32 %v582, %v583
    %v585 = vrot.slane %v584, 2
    %v586 = vadd.f32 %v584, %v585
    %v587 = vrot.slane %v586, 1
    %v588 = vadd.f32 %v586, %v587
    %v589 = vmul.f32 %v566, %v566
    %v590 = vmul.f32 %v569, %v569
    %v591 = vmul.f32 %v574, %v574
    %v592 = vmul.f32 %v577, %v577
    %v593 = vadd.f32 %v589, %v590
    %v594 = vadd.f32 %v593, %v591
    %v595 = vadd.f32 %v594, %v592
    %v596 = vrot.slane %v595, 4
    %v597 = vadd.f32 %v595, %v596
    %v598 = vrot.slane %v597, 2
    %v599 = vadd.f32 %v597, %v598
    %v600 = vrot.slane %v599, 1
    %v601 = vadd.f32 %v599, %v600
    %vm602 = vcmask 1040384
    %v603 = vsel %vm602, %v588, %v601
    %vm604 = vcmask 1041408
    %v605 = vsel %vm604, %v603, 0.0
    %v606 = vld [vmem:[#allocation4] sm:$0xff]
    %v607 = vld [vmem:[#allocation4 + $0x8] sm:$0xff]
    %v608 = vld [vmem:[#allocation4 + $0x10] sm:$0xff]
    %v609 = vld [vmem:[#allocation4 + $0x18] sm:$0xff]
    %v610 = vld [vmem:[#allocation4 + $0x20] sm:$0xff]
    %v611 = vld [vmem:[#allocation4 + $0x28] sm:$0xff]
    %v612 = vld [vmem:[#allocation4 + $0x30] sm:$0xff]
    %v613 = vld [vmem:[#allocation4 + $0x38] sm:$0xff]
    %v614 = vld [vmem:[#allocation4 + $0x40] sm:$0xff]
    %v615 = vld [vmem:[#allocation4 + $0x48] sm:$0xff]
    %v616 = vld [vmem:[#allocation4 + $0x50] sm:$0xff]
    %v617 = vld [vmem:[#allocation4 + $0x58] sm:$0xff]
    %v618 = vld [vmem:[#allocation4 + $0x60] sm:$0xff]
    %v619 = vld [vmem:[#allocation4 + $0x68] sm:$0xff]
    %v620 = vld [vmem:[#allocation4 + $0x70] sm:$0xff]
    %v621 = vld [vmem:[#allocation4 + $0x78] sm:$0xff]
    %622 = vmatprep.subr.mxu0 0.0
    %623 = vmatpush1.msra.mxu0 %v606
    %624 = vmatprep.subr.mxu0 0.0
    %625 = vmatpush1.msra.mxu0 %v607
    %626 = vmatprep.subr.mxu0 0.0
    %627 = vmatpush1.msra.mxu0 %v608
    %628 = vmatprep.subr.mxu0 0.0
    %629 = vmatpush1.msra.mxu0 %v609
    %630 = vmatprep.subr.mxu0 0.0
    %631 = vmatpush1.msra.mxu0 %v610
    %632 = vmatprep.subr.mxu0 0.0
    %633 = vmatpush1.msra.mxu0 %v611
    %634 = vmatprep.subr.mxu0 0.0
    %635 = vmatpush1.msra.mxu0 %v612
    %636 = vmatprep.subr.mxu0 0.0
    %637 = vmatpush1.msra.mxu0 %v613
    %638 = vmatprep.subr.mxu0 0.0
    %639 = vmatpush1.msra.mxu0 %v614
    %640 = vmatprep.subr.mxu0 0.0
    %641 = vmatpush1.msra.mxu0 %v615
    %642 = vmatprep.subr.mxu0 0.0
    %643 = vmatpush1.msra.mxu0 %v616
    %644 = vmatprep.subr.mxu0 0.0
    %645 = vmatpush1.msra.mxu0 %v617
    %646 = vmatprep.subr.mxu0 0.0
    %647 = vmatpush1.msra.mxu0 %v618
    %648 = vmatprep.subr.mxu0 0.0
    %649 = vmatpush1.msra.mxu0 %v619
    %650 = vmatprep.subr.mxu0 0.0
    %651 = vmatpush1.msra.mxu0 %v620
    %652 = vmatprep.subr.mxu0 0.0
    %653 = vmatpush1.msra.mxu0 %v621
    %654 = vmatprep.subr.mxu0 0.0
    %655 = vmatpush1.msra.mxu0 0.0
    %656 = vmatprep.subr.mxu0 0.0
    %657 = vmatpush1.msra.mxu0 0.0
    %658 = vmatprep.subr.mxu0 0.0
    %659 = vmatpush1.msra.mxu0 0.0
    %660 = vmatprep.subr.mxu0 0.0
    %661 = vmatpush1.msra.mxu0 0.0
    %662 = vmatprep.subr.mxu0 0.0
    %663 = vmatpush1.msra.mxu0 0.0
    %664 = vmatprep.subr.mxu0 0.0
    %665 = vmatpush1.msra.mxu0 0.0
    %666 = vmatprep.subr.mxu0 0.0
    %667 = vmatpush1.msra.mxu0 0.0
    %668 = vmatprep.subr.mxu0 0.0
    %669 = vmatpush1.msra.mxu0 0.0
    %670 = vmatprep.subr.mxu0 0.0
    %671 = vmatpush1.msra.mxu0 0.0
    %672 = vmatprep.subr.mxu0 0.0
    %673 = vmatpush1.msra.mxu0 0.0
    %674 = vmatprep.subr.mxu0 0.0
    %675 = vmatpush1.msra.mxu0 0.0
    %676 = vmatprep.subr.mxu0 0.0
    %677 = vmatpush1.msra.mxu0 0.0
    %678 = vmatprep.subr.mxu0 0.0
    %679 = vmatpush1.msra.mxu0 0.0
    %680 = vmatprep.subr.mxu0 0.0
    %681 = vmatpush1.msra.mxu0 0.0
    %682 = vmatprep.subr.mxu0 0.0
    %683 = vmatpush1.msra.mxu0 0.0
    %684 = vmatprep.subr.mxu0 0.0
    %685 = vmatpush1.msra.mxu0 0.0
    %686 = vmatprep.mubr.f32.mxu0 0.0
    %687 = vmatmul.mubr.f32.gmra.mrb[0].mxu0 %v605
    %v688 = vpop.f32.mrb[0].mxu0
    %v689 = vadd.f32 0.0, %v688
    %v690 = vpop.f32.mrb[0].mxu0
    %691 = vdwg.mxu0
    %v692 = vmul.f32 %v689, 0.0078125
    %v693 = vmul.f32 %v692, %v692
    %v695 = vrot.slane %v693, 7
    %v697 = vsub.f32 %v692, %v695
    %v698 = vmax.f32 %v697, 0.0
    %v699 = vlaneseq
    %v700 = vshrl.u32 %v699, 7
    %v701 = vsub.s32 0, %v700
    %v702 = vrot.slane %v692, %v701
    %v703 = vsub.f32 %v566, %v702
    %v704 = vsub.f32 %v569, %v702
    %v705 = vsub.f32 %v574, %v702
    %v706 = vsub.f32 %v577, %v702
    %v707 = vadd.f32 %v698, 1e-05
    %v708 = vrsqrt.pop %v707
    %v709 = vlaneseq
    %v710 = vshrl.u32 %v709, 7
    %v711 = vsub.s32 1, %v710
    %v712 = vrot.slane %v708, %v711
    %v713 = vmul.f32 %v703, %v712
    %v714 = vmul.f32 %v704, %v712
    %v715 = vmul.f32 %v705, %v712
    %v716 = vmul.f32 %v706, %v712
    %v717 = vld [vmem:[%s3] sm:$0x1]
    %v719 = vlaneseq
    %v720 = vshrl.u32 %v719, 7
    %v721 = vsub.s32 0, %v720
    %v722 = vrot.slane %v717, %v721
    %v724 = vmul.f32 %v713, %v722
    %v725 = vmul.f32 %v714, %v722
    %v726 = vmul.f32 %v715, %v722
    %v727 = vmul.f32 %v716, %v722
    %v728 = vld [vmem:[%s4] sm:$0x1]
    %v730 = vlaneseq
    %v731 = vshrl.u32 %v730, 7
    %v732 = vsub.s32 0, %v731
    %v733 = vrot.slane %v728, %v732
    %v735 = vadd.f32 %v724, %v733
    %v736 = vadd.f32 %v725, %v733
    %v737 = vadd.f32 %v726, %v733
    %v738 = vadd.f32 %v727, %v733
    %v739 = vmax.f32 %v735, 0.0
    %v740 = vmax.f32 %v736, 0.0
    %v741 = vmax.f32 %v737, 0.0
    %v742 = vmax.f32 %v738, 0.0
    %v743 = vpack.c.bf16 %v740, %v739
    %v744 = vpack.c.bf16 %v742, %v741
    %v747 = vunpack.c.l.b16 %v743
    %v748 = vunpack.c.h.b16 %v743
    %v749 = vunpack.c.l.b16 %v744
    %v750 = vunpack.c.h.b16 %v744
    %v751 = vpack.c.b16 %v747, %v747
    %v752 = vpack.c.b16 %v748, %v748
    %v753 = vpack.c.b16 %v749, %v749
    %v754 = vpack.c.b16 %v750, %v750
    %759 = vst [vmem:[%s5] sm:$0xf] %v751
    %760 = vst [vmem:[%s5 + $0x4] sm:$0xf] %v752
    %761 = vst [vmem:[%s5 + $0x8] sm:$0xf] %v753
    %762 = vst [vmem:[%s5 + $0xc] sm:$0xf] %v754
    // Predicated region
    $region30: #{_lambda_.6} parent=1 // pred_check
      _
    $region31: #{_lambda_.6} parent=1 // pred_check_branch
      %764 = sbr.rel (0) target = $region33
    $region32: #{_lambda_.6} parent=1 // pred_region
      _
    $region33: #{_lambda_.6} parent=1 // pred_fallthru
      _
    // Predicated region
    $region34: #{_lambda_.6} parent=1 // pred_check
      _
    $region35: #{_lambda_.6} parent=1 // pred_check_branch
      %766 = sbr.rel (0) target = $region37
    $region36: #{_lambda_.6} parent=1 // pred_region
      _
    $region37: #{_lambda_.6} parent=1 // pred_fallthru
      _
    %767 = vsyncpa [#allocation3], 1
    %768 = vsyncpa [#allocation5], 1

// kernel: _lambda_.7
$region0: #{_lambda_.7}
  #allocation0 [shape = 'u32[]', space=smem, size = 0x4, offset = 0x4, fixed_abs, tag = 'smem constant byte address 0x4 - core index']
  #allocation1 [shape = 'u32[144,128]{1,0:T(1,128)}', space=vmem, size = 0x12000, scoped, tag = 'internal scratch']
  %s0 = inlined_call_operand.vmem [shape: bf16[128,384], index: 0, kind: input, shape index: {}]
  %s1 = inlined_call_operand.hbm [shape: bf16[384,128], index: 1, kind: input, shape index: {}]
  %s2 = inlined_call_operand.hbm [shape: f32[128,128], index: 2, kind: input, shape index: {}]
  %s3 = inlined_call_operand.hbm [shape: f32[1,128], index: 3, kind: input, shape index: {}]
  %s4 = inlined_call_operand.vmem [shape: f32[1,128], index: 4, kind: input, shape index: {}]
  %s5 = inlined_call_operand.vmem [shape: bf16[128,128], index: 5, kind: output, shape index: {}]
  %s6 = sld [smem:[#allocation0]]
  $region42: #{_lambda_.7} parent=0
    _
  %s8 = ssub.s32 1, %s6
  %s9 = scalar_select 0, %s8, %s6
  $region1: #{_lambda_.7} parent=0
    #allocation2 [shape = 'u8[98304]{0}', space=vmem, size = 0x18000, scoped, tag = 'input window, operand 1, single buffered']
    #allocation3 [shape = 's32[1]{0}', space=sflag, size = 0x4, scoped, tag = 'scoped memory for _lambda_.7']
    #allocation4 [shape = 'u8[65536]{0}', space=vmem, size = 0x10000, scoped, tag = 'input window, operand 2, single buffered']
    #allocation5 [shape = 's32[1]{0}', space=sflag, size = 0x4, scoped, tag = 'scoped memory for _lambda_.7']
    #allocation6 [shape = 'u8[512]{0}', space=vmem, size = 0x400, scoped, tag = 'input window, operand 3, single buffered']
    %10 = vsyncpa [#allocation3], 0
    %11 = vsyncpa [#allocation5], 0
    // Predicated region
    $region2: #{_lambda_.7} parent=1 // pred_check
      _
    $region3: #{_lambda_.7} parent=1 // pred_check_branch
      %13 = sbr.rel (0) target = $region5
    $region4: #{_lambda_.7} parent=1 // pred_region
      _
    $region5: #{_lambda_.7} parent=1 // pred_fallthru
      _
    // Predicated region
    $region6: #{_lambda_.7} parent=1 // pred_check
      _
    $region7: #{_lambda_.7} parent=1 // pred_check_branch
      %15 = sbr.rel (0) target = $region9
    $region8: #{_lambda_.7} parent=1 // pred_region
      %s17 = ssub.s32 3072, 3072
      %18 = vsyncadd [#allocation3], %s17
      %s19 = sshll.u32 [#allocation2], 4
      %s20 = int_to_ptr.vmem [resolvable:$true] %s19
      %25 = dma.hbm_to_vmem [thread:$0]  %s1, 3072, %s20, [#allocation3], 64, 64, 4
    $region9: #{_lambda_.7} parent=1 // pred_fallthru
      _
    // Predicated region
    $region10: #{_lambda_.7} parent=1 // pred_check
      _
    $region11: #{_lambda_.7} parent=1 // pred_check_branch
      %27 = sbr.rel (0) target = $region13
    $region12: #{_lambda_.7} parent=1 // pred_region
      %s29 = ssub.s32 2048, 2048
      %30 = vsyncadd [#allocation5], %s29
      %s31 = sshll.u32 [#allocation4], 4
      %s32 = int_to_ptr.vmem [resolvable:$true] %s31
      %37 = dma.hbm_to_vmem [thread:$0]  %s2, 2048, %s32, [#allocation5], 128, 128, 8
    $region13: #{_lambda_.7} parent=1 // pred_fallthru
      _
    // Predicated region
    $region14: #{_lambda_.7} parent=1 // pred_check
      _
    $region15: #{_lambda_.7} parent=1 // pred_check_branch
      %39 = sbr.rel (0) target = $region17
    $region16: #{_lambda_.7} parent=1 // pred_region
      %s41 = ssub.s32 16, 16
      %42 = vsyncadd [#allocation5], %s41
      %s44 = sshll.u32 [#allocation6], 4
      %s45 = int_to_ptr.vmem [resolvable:$true] %s44
      %47 = dma.hbm_to_vmem [thread:$0]  %s3, 16, %s45, [#allocation5]
    $region17: #{_lambda_.7} parent=1 // pred_fallthru
      _
    // Predicated region
    $region18: #{_lambda_.7} parent=1 // pred_check
      _
    $region19: #{_lambda_.7} parent=1 // pred_check_branch
      %49 = sbr.rel (0) target = $region21
    $region20: #{_lambda_.7} parent=1 // pred_region
      _
    $region21: #{_lambda_.7} parent=1 // pred_fallthru
      _
    // Predicated region
    $region22: #{_lambda_.7} parent=1 // pred_check
      _
    $region23: #{_lambda_.7} parent=1 // pred_check_branch
      %51 = sbr.rel (0) target = $region25
    $region24: #{_lambda_.7} parent=1 // pred_region
      %52 = dma.done [#allocation3], 3072
    $region25: #{_lambda_.7} parent=1 // pred_fallthru
      _
    // Predicated region
    $region26: #{_lambda_.7} parent=1 // pred_check
      _
    $region27: #{_lambda_.7} parent=1 // pred_check_branch
      %54 = sbr.rel (0) target = $region29
    $region28: #{_lambda_.7} parent=1 // pred_region
      %55 = dma.done [#allocation5], 2048
    $region29: #{_lambda_.7} parent=1 // pred_fallthru
      _
    // Predicated region
    $region30: #{_lambda_.7} parent=1 // pred_check
      _
    $region31: #{_lambda_.7} parent=1 // pred_check_branch
      %57 = sbr.rel (0) target = $region33
    $region32: #{_lambda_.7} parent=1 // pred_region
      %58 = dma.done [#allocation5], 16
    $region33: #{_lambda_.7} parent=1 // pred_fallthru
      _
    %v60 = vld [vmem:[%s0] sm:$0xff]
    %v61 = vld [vmem:[%s0 + $0x8] sm:$0xf]
    %v62 = vld [vmem:[%s0 + $0xc] sm:$0xff]
    %v63 = vld [vmem:[%s0 + $0x14] sm:$0xf]
    %v64 = vld [vmem:[%s0 + $0x18] sm:$0xff]
    %v65 = vld [vmem:[%s0 + $0x20] sm:$0xf]
    %v66 = vld [vmem:[%s0 + $0x24] sm:$0xff]
    %v67 = vld [vmem:[%s0 + $0x2c] sm:$0xf]
    %v68 = vld [vmem:[%s0 + $0x30] sm:$0xff]
    %v69 = vld [vmem:[%s0 + $0x38] sm:$0xf]
    %v70 = vld [vmem:[%s0 + $0x3c] sm:$0xff]
    %v71 = vld [vmem:[%s0 + $0x44] sm:$0xf]
    %v72 = vld [vmem:[%s0 + $0x48] sm:$0xff]
    %v73 = vld [vmem:[%s0 + $0x50] sm:$0xf]
    %v74 = vld [vmem:[%s0 + $0x54] sm:$0xff]
    %v75 = vld [vmem:[%s0 + $0x5c] sm:$0xf]
    %v76 = vld [vmem:[%s0 + $0x60] sm:$0xff]
    %v77 = vld [vmem:[%s0 + $0x68] sm:$0xf]
    %v78 = vld [vmem:[%s0 + $0x6c] sm:$0xff]
    %v79 = vld [vmem:[%s0 + $0x74] sm:$0xf]
    %v80 = vld [vmem:[%s0 + $0x78] sm:$0xff]
    %v81 = vld [vmem:[%s0 + $0x80] sm:$0xf]
    %v82 = vld [vmem:[%s0 + $0x84] sm:$0xff]
    %v83 = vld [vmem:[%s0 + $0x8c] sm:$0xf]
    %v84 = vld [vmem:[%s0 + $0x90] sm:$0xff]
    %v85 = vld [vmem:[%s0 + $0x98] sm:$0xf]
    %v86 = vld [vmem:[%s0 + $0x9c] sm:$0xff]
    %v87 = vld [vmem:[%s0 + $0xa4] sm:$0xf]
    %v88 = vld [vmem:[%s0 + $0xa8] sm:$0xff]
    %v89 = vld [vmem:[%s0 + $0xb0] sm:$0xf]
    %v90 = vld [vmem:[%s0 + $0xb4] sm:$0xff]
    %v91 = vld [vmem:[%s0 + $0xbc] sm:$0xf]
    %v92 = vld [vmem:[#allocation2] sm:$0xf]
    %v93 = vld [vmem:[#allocation2 + $0x4] sm:$0xf]
    %v94 = vld [vmem:[#allocation2 + $0x8] sm:$0xf]
    %v95 = vld [vmem:[#allocation2 + $0xc] sm:$0xf]
    %v96 = vld [vmem:[#allocation2 + $0x10] sm:$0xf]
    %v97 = vld [vmem:[#allocation2 + $0x14] sm:$0xf]
    %v98 = vld [vmem:[#allocation2 + $0x18] sm:$0xf]
    %v99 = vld [vmem:[#allocation2 + $0x1c] sm:$0xf]
    %v100 = vld [vmem:[#allocation2 + $0x20] sm:$0xf]
    %v101 = vld [vmem:[#allocation2 + $0x24] sm:$0xf]
    %v102 = vld [vmem:[#allocation2 + $0x28] sm:$0xf]
    %v103 = vld [vmem:[#allocation2 + $0x2c] sm:$0xf]
    %v104 = vld [vmem:[#allocation2 + $0x30] sm:$0xf]
    %v105 = vld [vmem:[#allocation2 + $0x34] sm:$0xf]
    %v106 = vld [vmem:[#allocation2 + $0x38] sm:$0xf]
    %v107 = vld [vmem:[#allocation2 + $0x3c] sm:$0xf]
    %v108 = vld [vmem:[#allocation2 + $0x40] sm:$0xf]
    %v109 = vld [vmem:[#allocation2 + $0x44] sm:$0xf]
    %v110 = vld [vmem:[#allocation2 + $0x48] sm:$0xf]
    %v111 = vld [vmem:[#allocation2 + $0x4c] sm:$0xf]
    %v112 = vld [vmem:[#allocation2 + $0x50] sm:$0xf]
    %v113 = vld [vmem:[#allocation2 + $0x54] sm:$0xf]
    %v114 = vld [vmem:[#allocation2 + $0x58] sm:$0xf]
    %v115 = vld [vmem:[#allocation2 + $0x5c] sm:$0xf]
    %v116 = vld [vmem:[#allocation2 + $0x60] sm:$0xf]
    %v117 = vld [vmem:[#allocation2 + $0x64] sm:$0xf]
    %v118 = vld [vmem:[#allocation2 + $0x68] sm:$0xf]
    %v119 = vld [vmem:[#allocation2 + $0x6c] sm:$0xf]
    %v120 = vld [vmem:[#allocation2 + $0x70] sm:$0xf]
    %v121 = vld [vmem:[#allocation2 + $0x74] sm:$0xf]
    %v122 = vld [vmem:[#allocation2 + $0x78] sm:$0xf]
    %v123 = vld [vmem:[#allocation2 + $0x7c] sm:$0xf]
    %v124 = vld [vmem:[#allocation2 + $0x80] sm:$0xf]
    %v125 = vld [vmem:[#allocation2 + $0x84] sm:$0xf]
    %v126 = vld [vmem:[#allocation2 + $0x88] sm:$0xf]
    %v127 = vld [vmem:[#allocation2 + $0x8c] sm:$0xf]
    %v128 = vld [vmem:[#allocation2 + $0x90] sm:$0xf]
    %v129 = vld [vmem:[#allocation2 + $0x94] sm:$0xf]
    %v130 = vld [vmem:[#allocation2 + $0x98] sm:$0xf]
    %v131 = vld [vmem:[#allocation2 + $0x9c] sm:$0xf]
    %v132 = vld [vmem:[#allocation2 + $0xa0] sm:$0xf]
    %v133 = vld [vmem:[#allocation2 + $0xa4] sm:$0xf]
    %v134 = vld [vmem:[#allocation2 + $0xa8] sm:$0xf]
    %v135 = vld [vmem:[#allocation2 + $0xac] sm:$0xf]
    %v136 = vld [vmem:[#allocation2 + $0xb0] sm:$0xf]
    %v137 = vld [vmem:[#allocation2 + $0xb4] sm:$0xf]
    %v138 = vld [vmem:[#allocation2 + $0xb8] sm:$0xf]
    %v139 = vld [vmem:[#allocation2 + $0xbc] sm:$0xf]
    %v172 = vunpack.c.l.b16 %v60
    %v173 = vunpack.c.h.b16 %v60
    %v174 = vunpack.c.l.b16 %v61
    %v175 = vunpack.c.l.b16 %v62
    %v176 = vunpack.c.h.b16 %v62
    %v177 = vunpack.c.l.b16 %v63
    %v178 = vunpack.c.l.b16 %v64
    %v179 = vunpack.c.h.b16 %v64
    %v180 = vunpack.c.l.b16 %v65
    %v181 = vunpack.c.l.b16 %v66
    %v182 = vunpack.c.h.b16 %v66
    %v183 = vunpack.c.l.b16 %v67
    %v184 = vunpack.c.l.b16 %v68
    %v185 = vunpack.c.h.b16 %v68
    %v186 = vunpack.c.l.b16 %v69
    %v187 = vunpack.c.l.b16 %v70
    %v188 = vunpack.c.h.b16 %v70
    %v189 = vunpack.c.l.b16 %v71
    %v190 = vunpack.c.l.b16 %v72
    %v191 = vunpack.c.h.b16 %v72
    %v192 = vunpack.c.l.b16 %v73
    %v193 = vunpack.c.l.b16 %v74
    %v194 = vunpack.c.h.b16 %v74
    %v195 = vunpack.c.l.b16 %v75
    %v196 = vunpack.c.l.b16 %v76
    %v197 = vunpack.c.h.b16 %v76
    %v198 = vunpack.c.l.b16 %v77
    %v199 = vunpack.c.l.b16 %v78
    %v200 = vunpack.c.h.b16 %v78
    %v201 = vunpack.c.l.b16 %v79
    %v202 = vunpack.c.l.b16 %v80
    %v203 = vunpack.c.h.b16 %v80
    %v204 = vunpack.c.l.b16 %v81
    %v205 = vunpack.c.l.b16 %v82
    %v206 = vunpack.c.h.b16 %v82
    %v207 = vunpack.c.l.b16 %v83
    %v208 = vunpack.c.l.b16 %v84
    %v209 = vunpack.c.h.b16 %v84
    %v210 = vunpack.c.l.b16 %v85
    %v211 = vunpack.c.l.b16 %v86
    %v212 = vunpack.c.h.b16 %v86
    %v213 = vunpack.c.l.b16 %v87
    %v214 = vunpack.c.l.b16 %v88
    %v215 = vunpack.c.h.b16 %v88
    %v216 = vunpack.c.l.b16 %v89
    %v217 = vunpack.c.l.b16 %v90
    %v218 = vunpack.c.h.b16 %v90
    %v219 = vunpack.c.l.b16 %v91
    %v220 = vpack.c.b16 %v175, %v172
    %v221 = vpack.c.b16 %v176, %v173
    %v222 = vpack.c.b16 %v177, %v174
    %v223 = vpack.c.b16 %v181, %v178
    %v224 = vpack.c.b16 %v182, %v179
    %v225 = vpack.c.b16 %v183, %v180
    %v226 = vpack.c.b16 %v187, %v184
    %v227 = vpack.c.b16 %v188, %v185
    %v228 = vpack.c.b16 %v189, %v186
    %v229 = vpack.c.b16 %v193, %v190
    %v230 = vpack.c.b16 %v194, %v191
    %v231 = vpack.c.b16 %v195, %v192
    %v232 = vpack.c.b16 %v199, %v196
    %v233 = vpack.c.b16 %v200, %v197
    %v234 = vpack.c.b16 %v201, %v198
    %v235 = vpack.c.b16 %v205, %v202
    %v236 = vpack.c.b16 %v206, %v203
    %v237 = vpack.c.b16 %v207, %v204
    %v238 = vpack.c.b16 %v211, %v208
    %v239 = vpack.c.b16 %v212, %v209
    %v240 = vpack.c.b16 %v213, %v210
    %v241 = vpack.c.b16 %v217, %v214
    %v242 = vpack.c.b16 %v218, %v215
    %v243 = vpack.c.b16 %v219, %v216
    %v316 = vunpack.c.l.b16 %v92
    %v317 = vunpack.c.l.b16 %v93
    %v318 = vunpack.c.l.b16 %v94
    %v319 = vunpack.c.l.b16 %v95
    %v320 = vunpack.c.l.b16 %v96
    %v321 = vunpack.c.l.b16 %v97
    %v322 = vunpack.c.l.b16 %v98
    %v323 = vunpack.c.l.b16 %v99
    %v324 = vunpack.c.l.b16 %v100
    %v325 = vunpack.c.l.b16 %v101
    %v326 = vunpack.c.l.b16 %v102
    %v327 = vunpack.c.l.b16 %v103
    %v328 = vunpack.c.l.b16 %v104
    %v329 = vunpack.c.l.b16 %v105
    %v330 = vunpack.c.l.b16 %v106
    %v331 = vunpack.c.l.b16 %v107
    %v332 = vunpack.c.l.b16 %v108
    %v333 = vunpack.c.l.b16 %v109
    %v334 = vunpack.c.l.b16 %v110
    %v335 = vunpack.c.l.b16 %v111
    %v336 = vunpack.c.l.b16 %v112
    %v337 = vunpack.c.l.b16 %v113
    %v338 = vunpack.c.l.b16 %v114
    %v339 = vunpack.c.l.b16 %v115
    %v340 = vunpack.c.l.b16 %v116
    %v341 = vunpack.c.l.b16 %v117
    %v342 = vunpack.c.l.b16 %v118
    %v343 = vunpack.c.l.b16 %v119
    %v344 = vunpack.c.l.b16 %v120
    %v345 = vunpack.c.l.b16 %v121
    %v346 = vunpack.c.l.b16 %v122
    %v347 = vunpack.c.l.b16 %v123
    %v348 = vunpack.c.l.b16 %v124
    %v349 = vunpack.c.l.b16 %v125
    %v350 = vunpack.c.l.b16 %v126
    %v351 = vunpack.c.l.b16 %v127
    %v352 = vunpack.c.l.b16 %v128
    %v353 = vunpack.c.l.b16 %v129
    %v354 = vunpack.c.l.b16 %v130
    %v355 = vunpack.c.l.b16 %v131
    %v356 = vunpack.c.l.b16 %v132
    %v357 = vunpack.c.l.b16 %v133
    %v358 = vunpack.c.l.b16 %v134
    %v359 = vunpack.c.l.b16 %v135
    %v360 = vunpack.c.l.b16 %v136
    %v361 = vunpack.c.l.b16 %v137
    %v362 = vunpack.c.l.b16 %v138
    %v363 = vunpack.c.l.b16 %v139
    %v364 = vpack.c.b16 %v317, %v316
    %v365 = vpack.c.b16 %v319, %v318
    %v366 = vpack.c.b16 %v321, %v320
    %v367 = vpack.c.b16 %v323, %v322
    %v368 = vpack.c.b16 %v325, %v324
    %v369 = vpack.c.b16 %v327, %v326
    %v370 = vpack.c.b16 %v329, %v328
    %v371 = vpack.c.b16 %v331, %v330
    %v372 = vpack.c.b16 %v333, %v332
    %v373 = vpack.c.b16 %v335, %v334
    %v374 = vpack.c.b16 %v337, %v336
    %v375 = vpack.c.b16 %v339, %v338
    %v376 = vpack.c.b16 %v341, %v340
    %v377 = vpack.c.b16 %v343, %v342
    %v378 = vpack.c.b16 %v345, %v344
    %v379 = vpack.c.b16 %v347, %v346
    %v380 = vpack.c.b16 %v349, %v348
    %v381 = vpack.c.b16 %v351, %v350
    %v382 = vpack.c.b16 %v353, %v352
    %v383 = vpack.c.b16 %v355, %v354
    %v384 = vpack.c.b16 %v357, %v356
    %v385 = vpack.c.b16 %v359, %v358
    %v386 = vpack.c.b16 %v361, %v360
    %v387 = vpack.c.b16 %v363, %v362
    %412 = vmatprep.subr.bf16.mxu0 0
    %413 = vmatpush1.bf16.msra.mxu0 %v364
    %414 = vmatprep.subr.bf16.mxu0 0
    %415 = vmatpush1.bf16.msra.mxu0 %v365
    %416 = vmatprep.subr.bf16.mxu0 0
    %417 = vmatpush1.bf16.msra.mxu0 %v366
    %418 = vmatprep.subr.bf16.mxu0 0
    %419 = vmatpush1.bf16.msra.mxu0 %v367
    %420 = vmatprep.subr.bf16.mxu0 0
    %421 = vmatpush1.bf16.msra.mxu0 %v368
    %422 = vmatprep.subr.bf16.mxu0 0
    %423 = vmatpush1.bf16.msra.mxu0 %v369
    %424 = vmatprep.subr.bf16.mxu0 0
    %425 = vmatpush1.bf16.msra.mxu0 %v370
    %426 = vmatprep.subr.bf16.mxu0 0
    %427 = vmatpush1.bf16.msra.mxu0 %v371
    %428 = vmatprep.subr.bf16.mxu0 0
    %429 = vmatpush1.bf16.msra.mxu0 %v372
    %430 = vmatprep.subr.bf16.mxu0 0
    %431 = vmatpush1.bf16.msra.mxu0 %v373
    %432 = vmatprep.subr.bf16.mxu0 0
    %433 = vmatpush1.bf16.msra.mxu0 %v374
    %434 = vmatprep.subr.bf16.mxu0 0
    %435 = vmatpush1.bf16.msra.mxu0 %v375
    %436 = vmatprep.subr.bf16.mxu0 0
    %437 = vmatpush1.bf16.msra.mxu0 %v376
    %438 = vmatprep.subr.bf16.mxu0 0
    %439 = vmatpush1.bf16.msra.mxu0 %v377
    %440 = vmatprep.subr.bf16.mxu0 0
    %441 = vmatpush1.bf16.msra.mxu0 %v378
    %442 = vmatprep.subr.bf16.mxu0 0
    %443 = vmatpush1.bf16.msra.mxu0 %v379
    %444 = vmatprep.mubr.bf16.mxu0 %v221
    %445 = vmatmul.mubr.bf16.gmra.mrb[0].mxu0 %v220
    %v446 = vpop.f32.mrb[0].mxu0
    %v447 = vadd.f32 0.0, %v446
    %v448 = vpop.f32.mrb[0].mxu0
    %v449 = vpop.f32.mrb[0].mxu0
    %v450 = vadd.f32 0.0, %v449
    %v451 = vpop.f32.mrb[0].mxu0
    %452 = vmatprep.mubr.bf16.mxu0 %v224
    %453 = vmatmul.mubr.bf16.gmra.mrb[0].mxu0 %v223
    %v454 = vpop.f32.mrb[0].mxu0
    %v455 = vadd.f32 0.0, %v454
    %v456 = vpop.f32.mrb[0].mxu0
    %v457 = vpop.f32.mrb[0].mxu0
    %v458 = vadd.f32 0.0, %v457
    %v459 = vpop.f32.mrb[0].mxu0
    %460 = vmatprep.mubr.bf16.mxu0 %v227
    %461 = vmatmul.mubr.bf16.gmra.mrb[0].mxu0 %v226
    %v462 = vpop.f32.mrb[0].mxu0
    %v463 = vadd.f32 0.0, %v462
    %v464 = vpop.f32.mrb[0].mxu0
    %v465 = vpop.f32.mrb[0].mxu0
    %v466 = vadd.f32 0.0, %v465
    %v467 = vpop.f32.mrb[0].mxu0
    %468 = vmatprep.mubr.bf16.mxu0 %v230
    %469 = vmatmul.mubr.bf16.gmra.mrb[0].mxu0 %v229
    %v470 = vpop.f32.mrb[0].mxu0
    %v471 = vadd.f32 0.0, %v470
    %v472 = vpop.f32.mrb[0].mxu0
    %v473 = vpop.f32.mrb[0].mxu0
    %v474 = vadd.f32 0.0, %v473
    %v475 = vpop.f32.mrb[0].mxu0
    %476 = vmatprep.mubr.bf16.mxu0 %v233
    %477 = vmatmul.mubr.bf16.gmra.mrb[0].mxu0 %v232
    %v478 = vpop.f32.mrb[0].mxu0
    %v479 = vadd.f32 0.0, %v478
    %v480 = vpop.f32.mrb[0].mxu0
    %v481 = vpop.f32.mrb[0].mxu0
    %v482 = vadd.f32 0.0, %v481
    %v483 = vpop.f32.mrb[0].mxu0
    %484 = vmatprep.mubr.bf16.mxu0 %v236
    %485 = vmatmul.mubr.bf16.gmra.mrb[0].mxu0 %v235
    %v486 = vpop.f32.mrb[0].mxu0
    %v487 = vadd.f32 0.0, %v486
    %v488 = vpop.f32.mrb[0].mxu0
    %v489 = vpop.f32.mrb[0].mxu0
    %v490 = vadd.f32 0.0, %v489
    %v491 = vpop.f32.mrb[0].mxu0
    %492 = vmatprep.mubr.bf16.mxu0 %v239
    %493 = vmatmul.mubr.bf16.gmra.mrb[0].mxu0 %v238
    %v494 = vpop.f32.mrb[0].mxu0
    %v495 = vadd.f32 0.0, %v494
    %v496 = vpop.f32.mrb[0].mxu0
    %v497 = vpop.f32.mrb[0].mxu0
    %v498 = vadd.f32 0.0, %v497
    %v499 = vpop.f32.mrb[0].mxu0
    %500 = vmatprep.mubr.bf16.mxu0 %v242
    %501 = vmatmul.mubr.bf16.gmra.mrb[0].mxu0 %v241
    %v502 = vpop.f32.mrb[0].mxu0
    %v503 = vadd.f32 0.0, %v502
    %v504 = vpop.f32.mrb[0].mxu0
    %v505 = vpop.f32.mrb[0].mxu0
    %v506 = vadd.f32 0.0, %v505
    %v507 = vpop.f32.mrb[0].mxu0
    %508 = vdwg.mxu0
    %509 = vmatprep.subr.bf16.mxu0 0
    %510 = vmatpush1.bf16.msra.mxu0 %v380
    %511 = vmatprep.subr.bf16.mxu0 0
    %512 = vmatpush1.bf16.msra.mxu0 %v381
    %513 = vmatprep.subr.bf16.mxu0 0
    %514 = vmatpush1.bf16.msra.mxu0 %v382
    %515 = vmatprep.subr.bf16.mxu0 0
    %516 = vmatpush1.bf16.msra.mxu0 %v383
    %517 = vmatprep.subr.bf16.mxu0 0
    %518 = vmatpush1.bf16.msra.mxu0 %v384
    %519 = vmatprep.subr.bf16.mxu0 0
    %520 = vmatpush1.bf16.msra.mxu0 %v385
    %521 = vmatprep.subr.bf16.mxu0 0
    %522 = vmatpush1.bf16.msra.mxu0 %v386
    %523 = vmatprep.subr.bf16.mxu0 0
    %524 = vmatpush1.bf16.msra.mxu0 %v387
    %525 = vmatprep.subr.bf16.mxu0 0
    %526 = vmatpush1.bf16.msra.mxu0 0
    %527 = vmatprep.subr.bf16.mxu0 0
    %528 = vmatpush1.bf16.msra.mxu0 0
    %529 = vmatprep.subr.bf16.mxu0 0
    %530 = vmatpush1.bf16.msra.mxu0 0
    %531 = vmatprep.subr.bf16.mxu0 0
    %532 = vmatpush1.bf16.msra.mxu0 0
    %533 = vmatprep.subr.bf16.mxu0 0
    %534 = vmatpush1.bf16.msra.mxu0 0
    %535 = vmatprep.subr.bf16.mxu0 0
    %536 = vmatpush1.bf16.msra.mxu0 0
    %537 = vmatprep.subr.bf16.mxu0 0
    %538 = vmatpush1.bf16.msra.mxu0 0
    %539 = vmatprep.subr.bf16.mxu0 0
    %540 = vmatpush1.bf16.msra.mxu0 0
    %541 = vmatprep.mubr.bf16.mxu0 0
    %542 = vmatmul.mubr.bf16.gmra.mrb[0].mxu0 %v222
    %v543 = vpop.f32.mrb[0].mxu0
    %v544 = vadd.f32 %v447, %v543
    %v545 = vpop.f32.mrb[0].mxu0
    %v546 = vpop.f32.mrb[0].mxu0
    %v547 = vadd.f32 %v450, %v546
    %v548 = vpop.f32.mrb[0].mxu0
    %549 = vmatprep.mubr.bf16.mxu0 0
    %550 = vmatmul.mubr.bf16.gmra.mrb[0].mxu0 %v225
    %v551 = vpop.f32.mrb[0].mxu0
    %v552 = vadd.f32 %v455, %v551
    %v553 = vpop.f32.mrb[0].mxu0
    %v554 = vpop.f32.mrb[0].mxu0
    %v555 = vadd.f32 %v458, %v554
    %v556 = vpop.f32.mrb[0].mxu0
    %557 = vmatprep.mubr.bf16.mxu0 0
    %558 = vmatmul.mubr.bf16.gmra.mrb[0].mxu0 %v228
    %v559 = vpop.f32.mrb[0].mxu0
    %v560 = vadd.f32 %v463, %v559
    %v561 = vpop.f32.mrb[0].mxu0
    %v562 = vpop.f32.mrb[0].mxu0
    %v563 = vadd.f32 %v466, %v562
    %v564 = vpop.f32.mrb[0].mxu0
    %565 = vmatprep.mubr.bf16.mxu0 0
    %566 = vmatmul.mubr.bf16.gmra.mrb[0].mxu0 %v231
    %v567 = vpop.f32.mrb[0].mxu0
    %v568 = vadd.f32 %v471, %v567
    %v569 = vpop.f32.mrb[0].mxu0
    %v570 = vpop.f32.mrb[0].mxu0
    %v571 = vadd.f32 %v474, %v570
    %v572 = vpop.f32.mrb[0].mxu0
    %573 = vmatprep.mubr.bf16.mxu0 0
    %574 = vmatmul.mubr.bf16.gmra.mrb[0].mxu0 %v234
    %v575 = vpop.f32.mrb[0].mxu0
    %v576 = vadd.f32 %v479, %v575
    %v577 = vpop.f32.mrb[0].mxu0
    %v578 = vpop.f32.mrb[0].mxu0
    %v579 = vadd.f32 %v482, %v578
    %v580 = vpop.f32.mrb[0].mxu0
    %581 = vmatprep.mubr.bf16.mxu0 0
    %582 = vmatmul.mubr.bf16.gmra.mrb[0].mxu0 %v237
    %v583 = vpop.f32.mrb[0].mxu0
    %v584 = vadd.f32 %v487, %v583
    %v585 = vpop.f32.mrb[0].mxu0
    %v586 = vpop.f32.mrb[0].mxu0
    %v587 = vadd.f32 %v490, %v586
    %v588 = vpop.f32.mrb[0].mxu0
    %589 = vmatprep.mubr.bf16.mxu0 0
    %590 = vmatmul.mubr.bf16.gmra.mrb[0].mxu0 %v240
    %v591 = vpop.f32.mrb[0].mxu0
    %v592 = vadd.f32 %v495, %v591
    %v593 = vpop.f32.mrb[0].mxu0
    %v594 = vpop.f32.mrb[0].mxu0
    %v595 = vadd.f32 %v498, %v594
    %v596 = vpop.f32.mrb[0].mxu0
    %597 = vmatprep.mubr.bf16.mxu0 0
    %598 = vmatmul.mubr.bf16.gmra.mrb[0].mxu0 %v243
    %v599 = vpop.f32.mrb[0].mxu0
    %v600 = vadd.f32 %v503, %v599
    %v601 = vpop.f32.mrb[0].mxu0
    %v602 = vpop.f32.mrb[0].mxu0
    %v603 = vadd.f32 %v506, %v602
    %v604 = vpop.f32.mrb[0].mxu0
    %605 = vdwg.mxu0
    %v606 = vadd.f32 %v544, %v547
    %v607 = vadd.f32 %v606, %v552
    %v608 = vadd.f32 %v607, %v555
    %v609 = vadd.f32 %v608, %v560
    %v610 = vadd.f32 %v609, %v563
    %v611 = vadd.f32 %v610, %v568
    %v612 = vadd.f32 %v611, %v571
    %v613 = vadd.f32 %v612, %v576
    %v614 = vadd.f32 %v613, %v579
    %v615 = vadd.f32 %v614, %v584
    %v616 = vadd.f32 %v615, %v587
    %v617 = vadd.f32 %v616, %v592
    %v618 = vadd.f32 %v617, %v595
    %v619 = vadd.f32 %v618, %v600
    %v620 = vadd.f32 %v619, %v603
    %v621 = vrot.slane %v620, 4
    %v622 = vadd.f32 %v620, %v621
    %v623 = vrot.slane %v622, 2
    %v624 = vadd.f32 %v622, %v623
    %v625 = vrot.slane %v624, 1
    %v626 = vadd.f32 %v624, %v625
    %v627 = vmul.f32 %v544, %v544
    %v628 = vmul.f32 %v547, %v547
    %v629 = vmul.f32 %v552, %v552
    %v630 = vmul.f32 %v555, %v555
    %v631 = vmul.f32 %v560, %v560
    %v632 = vmul.f32 %v563, %v563
    %v633 = vmul.f32 %v568, %v568
    %v634 = vmul.f32 %v571, %v571
    %v635 = vmul.f32 %v576, %v576
    %v636 = vmul.f32 %v579, %v579
    %v637 = vmul.f32 %v584, %v584
    %v638 = vmul.f32 %v587, %v587
    %v639 = vmul.f32 %v592, %v592
    %v640 = vmul.f32 %v595, %v595
    %v641 = vmul.f32 %v600, %v600
    %v642 = vmul.f32 %v603, %v603
    %v643 = vadd.f32 %v627, %v628
    %v644 = vadd.f32 %v643, %v629
    %v645 = vadd.f32 %v644, %v630
    %v646 = vadd.f32 %v645, %v631
    %v647 = vadd.f32 %v646, %v632
    %v648 = vadd.f32 %v647, %v633
    %v649 = vadd.f32 %v648, %v634
    %v650 = vadd.f32 %v649, %v635
    %v651 = vadd.f32 %v650, %v636
    %v652 = vadd.f32 %v651, %v637
    %v653 = vadd.f32 %v652, %v638
    %v654 = vadd.f32 %v653, %v639
    %v655 = vadd.f32 %v654, %v640
    %v656 = vadd.f32 %v655, %v641
    %v657 = vadd.f32 %v656, %v642
    %v658 = vrot.slane %v657, 4
    %v659 = vadd.f32 %v657, %v658
    %v660 = vrot.slane %v659, 2
    %v661 = vadd.f32 %v659, %v660
    %v662 = vrot.slane %v661, 1
    %v663 = vadd.f32 %v661, %v662
    %vm664 = vcmask 1040384
    %v665 = vsel %vm664, %v626, %v663
    %vm666 = vcmask 1041408
    %v667 = vsel %vm666, %v665, 0.0
    %v668 = vld [vmem:[#allocation4] sm:$0xff]
    %v669 = vld [vmem:[#allocation4 + $0x8] sm:$0xff]
    %v670 = vld [vmem:[#allocation4 + $0x10] sm:$0xff]
    %v671 = vld [vmem:[#allocation4 + $0x18] sm:$0xff]
    %v672 = vld [vmem:[#allocation4 + $0x20] sm:$0xff]
    %v673 = vld [vmem:[#allocation4 + $0x28] sm:$0xff]
    %v674 = vld [vmem:[#allocation4 + $0x30] sm:$0xff]
    %v675 = vld [vmem:[#allocation4 + $0x38] sm:$0xff]
    %v676 = vld [vmem:[#allocation4 + $0x40] sm:$0xff]
    %v677 = vld [vmem:[#allocation4 + $0x48] sm:$0xff]
    %v678 = vld [vmem:[#allocation4 + $0x50] sm:$0xff]
    %v679 = vld [vmem:[#allocation4 + $0x58] sm:$0xff]
    %v680 = vld [vmem:[#allocation4 + $0x60] sm:$0xff]
    %v681 = vld [vmem:[#allocation4 + $0x68] sm:$0xff]
    %v682 = vld [vmem:[#allocation4 + $0x70] sm:$0xff]
    %v683 = vld [vmem:[#allocation4 + $0x78] sm:$0xff]
    %684 = vmatprep.subr.mxu0 0.0
    %685 = vmatpush1.msra.mxu0 %v668
    %686 = vmatprep.subr.mxu0 0.0
    %687 = vmatpush1.msra.mxu0 %v669
    %688 = vmatprep.subr.mxu0 0.0
    %689 = vmatpush1.msra.mxu0 %v670
    %690 = vmatprep.subr.mxu0 0.0
    %691 = vmatpush1.msra.mxu0 %v671
    %692 = vmatprep.subr.mxu0 0.0
    %693 = vmatpush1.msra.mxu0 %v672
    %694 = vmatprep.subr.mxu0 0.0
    %695 = vmatpush1.msra.mxu0 %v673
    %696 = vmatprep.subr.mxu0 0.0
    %697 = vmatpush1.msra.mxu0 %v674
    %698 = vmatprep.subr.mxu0 0.0
    %699 = vmatpush1.msra.mxu0 %v675
    %700 = vmatprep.subr.mxu0 0.0
    %701 = vmatpush1.msra.mxu0 %v676
    %702 = vmatprep.subr.mxu0 0.0
    %703 = vmatpush1.msra.mxu0 %v677
    %704 = vmatprep.subr.mxu0 0.0
    %705 = vmatpush1.msra.mxu0 %v678
    %706 = vmatprep.subr.mxu0 0.0
    %707 = vmatpush1.msra.mxu0 %v679
    %708 = vmatprep.subr.mxu0 0.0
    %709 = vmatpush1.msra.mxu0 %v680
    %710 = vmatprep.subr.mxu0 0.0
    %711 = vmatpush1.msra.mxu0 %v681
    %712 = vmatprep.subr.mxu0 0.0
    %713 = vmatpush1.msra.mxu0 %v682
    %714 = vmatprep.subr.mxu0 0.0
    %715 = vmatpush1.msra.mxu0 %v683
    %716 = vmatprep.subr.mxu0 0.0
    %717 = vmatpush1.msra.mxu0 0.0
    %718 = vmatprep.subr.mxu0 0.0
    %719 = vmatpush1.msra.mxu0 0.0
    %720 = vmatprep.subr.mxu0 0.0
    %721 = vmatpush1.msra.mxu0 0.0
    %722 = vmatprep.subr.mxu0 0.0
    %723 = vmatpush1.msra.mxu0 0.0
    %724 = vmatprep.subr.mxu0 0.0
    %725 = vmatpush1.msra.mxu0 0.0
    %726 = vmatprep.subr.mxu0 0.0
    %727 = vmatpush1.msra.mxu0 0.0
    %728 = vmatprep.subr.mxu0 0.0
    %729 = vmatpush1.msra.mxu0 0.0
    %730 = vmatprep.subr.mxu0 0.0
    %731 = vmatpush1.msra.mxu0 0.0
    %732 = vmatprep.subr.mxu0 0.0
    %733 = vmatpush1.msra.mxu0 0.0
    %734 = vmatprep.subr.mxu0 0.0
    %735 = vmatpush1.msra.mxu0 0.0
    %736 = vmatprep.subr.mxu0 0.0
    %737 = vmatpush1.msra.mxu0 0.0
    %738 = vmatprep.subr.mxu0 0.0
    %739 = vmatpush1.msra.mxu0 0.0
    %740 = vmatprep.subr.mxu0 0.0
    %741 = vmatpush1.msra.mxu0 0.0
    %742 = vmatprep.subr.mxu0 0.0
    %743 = vmatpush1.msra.mxu0 0.0
    %744 = vmatprep.subr.mxu0 0.0
    %745 = vmatpush1.msra.mxu0 0.0
    %746 = vmatprep.subr.mxu0 0.0
    %747 = vmatpush1.msra.mxu0 0.0
    %748 = vmatprep.mubr.f32.mxu0 0.0
    %749 = vmatmul.mubr.f32.gmra.mrb[0].mxu0 %v667
    %v750 = vpop.f32.mrb[0].mxu0
    %v751 = vadd.f32 0.0, %v750
    %v752 = vpop.f32.mrb[0].mxu0
    %753 = vdwg.mxu0
    %v754 = vmul.f32 %v751, 0.001953125
    %v755 = vmul.f32 %v754, %v754
    %v757 = vrot.slane %v755, 7
    %v759 = vsub.f32 %v754, %v757
    %v760 = vmax.f32 %v759, 0.0
    %v761 = vlaneseq
    %v762 = vshrl.u32 %v761, 7
    %v763 = vsub.s32 0, %v762
    %v764 = vrot.slane %v754, %v763
    %v765 = vsub.f32 %v544, %v764
    %v766 = vsub.f32 %v547, %v764
    %v767 = vsub.f32 %v552, %v764
    %v768 = vsub.f32 %v555, %v764
    %v769 = vsub.f32 %v560, %v764
    %v770 = vsub.f32 %v563, %v764
    %v771 = vsub.f32 %v568, %v764
    %v772 = vsub.f32 %v571, %v764
    %v773 = vsub.f32 %v576, %v764
    %v774 = vsub.f32 %v579, %v764
    %v775 = vsub.f32 %v584, %v764
    %v776 = vsub.f32 %v587, %v764
    %v777 = vsub.f32 %v592, %v764
    %v778 = vsub.f32 %v595, %v764
    %v779 = vsub.f32 %v600, %v764
    %v780 = vsub.f32 %v603, %v764
    %v781 = vadd.f32 %v760, 1e-05
    %v782 = vrsqrt.pop %v781
    %v783 = vlaneseq
    %v784 = vshrl.u32 %v783, 7
    %v785 = vsub.s32 1, %v784
    %v786 = vrot.slane %v782, %v785
    %v787 = vmul.f32 %v765, %v786
    %v788 = vmul.f32 %v766, %v786
    %v789 = vmul.f32 %v767, %v786
    %v790 = vmul.f32 %v768, %v786
    %v791 = vmul.f32 %v769, %v786
    %v792 = vmul.f32 %v770, %v786
    %v793 = vmul.f32 %v771, %v786
    %v794 = vmul.f32 %v772, %v786
    %v795 = vmul.f32 %v773, %v786
    %v796 = vmul.f32 %v774, %v786
    %v797 = vmul.f32 %v775, %v786
    %v798 = vmul.f32 %v776, %v786
    %v799 = vmul.f32 %v777, %v786
    %v800 = vmul.f32 %v778, %v786
    %v801 = vmul.f32 %v779, %v786
    %v802 = vmul.f32 %v780, %v786
    %v803 = vld [vmem:[#allocation6] sm:$0x1]
    %v805 = vlaneseq
    %v806 = vshrl.u32 %v805, 7
    %v807 = vsub.s32 0, %v806
    %v808 = vrot.slane %v803, %v807
    %v810 = vmul.f32 %v787, %v808
    %v811 = vmul.f32 %v788, %v808
    %v812 = vmul.f32 %v789, %v808
    %v813 = vmul.f32 %v790, %v808
    %v814 = vmul.f32 %v791, %v808
    %v815 = vmul.f32 %v792, %v808
    %v816 = vmul.f32 %v793, %v808
    %v817 = vmul.f32 %v794, %v808
    %v818 = vmul.f32 %v795, %v808
    %v819 = vmul.f32 %v796, %v808
    %v820 = vmul.f32 %v797, %v808
    %v821 = vmul.f32 %v798, %v808
    %v822 = vmul.f32 %v799, %v808
    %v823 = vmul.f32 %v800, %v808
    %v824 = vmul.f32 %v801, %v808
    %v825 = vmul.f32 %v802, %v808
    %v826 = vld [vmem:[%s4] sm:$0x1]
    %v828 = vlaneseq
    %v829 = vshrl.u32 %v828, 7
    %v830 = vsub.s32 0, %v829
    %v831 = vrot.slane %v826, %v830
    %v833 = vadd.f32 %v810, %v831
    %v834 = vadd.f32 %v811, %v831
    %v835 = vadd.f32 %v812, %v831
    %v836 = vadd.f32 %v813, %v831
    %v837 = vadd.f32 %v814, %v831
    %v838 = vadd.f32 %v815, %v831
    %v839 = vadd.f32 %v816, %v831
    %v840 = vadd.f32 %v817, %v831
    %v841 = vadd.f32 %v818, %v831
    %v842 = vadd.f32 %v819, %v831
    %v843 = vadd.f32 %v820, %v831
    %v844 = vadd.f32 %v821, %v831
    %v845 = vadd.f32 %v822, %v831
    %v846 = vadd.f32 %v823, %v831
    %v847 = vadd.f32 %v824, %v831
    %v848 = vadd.f32 %v825, %v831
    %v849 = vmax.f32 %v833, 0.0
    %v850 = vmax.f32 %v834, 0.0
    %v851 = vmax.f32 %v835, 0.0
    %v852 = vmax.f32 %v836, 0.0
    %v853 = vmax.f32 %v837, 0.0
    %v854 = vmax.f32 %v838, 0.0
    %v855 = vmax.f32 %v839, 0.0
    %v856 = vmax.f32 %v840, 0.0
    %v857 = vmax.f32 %v841, 0.0
    %v858 = vmax.f32 %v842, 0.0
    %v859 = vmax.f32 %v843, 0.0
    %v860 = vmax.f32 %v844, 0.0
    %v861 = vmax.f32 %v845, 0.0
    %v862 = vmax.f32 %v846, 0.0
    %v863 = vmax.f32 %v847, 0.0
    %v864 = vmax.f32 %v848, 0.0
    %v865 = vpack.c.bf16 %v850, %v849
    %v866 = vpack.c.bf16 %v852, %v851
    %v867 = vpack.c.bf16 %v854, %v853
    %v868 = vpack.c.bf16 %v856, %v855
    %v869 = vpack.c.bf16 %v858, %v857
    %v870 = vpack.c.bf16 %v860, %v859
    %v871 = vpack.c.bf16 %v862, %v861
    %v872 = vpack.c.bf16 %v864, %v863
    %v881 = vunpack.c.l.b16 %v865
    %v882 = vunpack.c.h.b16 %v865
    %v883 = vunpack.c.l.b16 %v866
    %v884 = vunpack.c.h.b16 %v866
    %v885 = vunpack.c.l.b16 %v867
    %v886 = vunpack.c.h.b16 %v867
    %v887 = vunpack.c.l.b16 %v868
    %v888 = vunpack.c.h.b16 %v868
    %v889 = vunpack.c.l.b16 %v869
    %v890 = vunpack.c.h.b16 %v869
    %v891 = vunpack.c.l.b16 %v870
    %v892 = vunpack.c.h.b16 %v870
    %v893 = vunpack.c.l.b16 %v871
    %v894 = vunpack.c.h.b16 %v871
    %v895 = vunpack.c.l.b16 %v872
    %v896 = vunpack.c.h.b16 %v872
    %v897 = vpack.c.b16 %v881, %v881
    %v898 = vpack.c.b16 %v882, %v882
    %v899 = vpack.c.b16 %v883, %v883
    %v900 = vpack.c.b16 %v884, %v884
    %v901 = vpack.c.b16 %v885, %v885
    %v902 = vpack.c.b16 %v886, %v886
    %v903 = vpack.c.b16 %v887, %v887
    %v904 = vpack.c.b16 %v888, %v888
    %v905 = vpack.c.b16 %v889, %v889
    %v906 = vpack.c.b16 %v890, %v890
    %v907 = vpack.c.b16 %v891, %v891
    %v908 = vpack.c.b16 %v892, %v892
    %v909 = vpack.c.b16 %v893, %v893
    %v910 = vpack.c.b16 %v894, %v894
    %v911 = vpack.c.b16 %v895, %v895
    %v912 = vpack.c.b16 %v896, %v896
    %929 = vst [vmem:[%s5] sm:$0xf] %v897
    %930 = vst [vmem:[%s5 + $0x4] sm:$0xf] %v898
    %931 = vst [vmem:[%s5 + $0x8] sm:$0xf] %v899
    %932 = vst [vmem:[%s5 + $0xc] sm:$0xf] %v900
    %933 = vst [vmem:[%s5 + $0x10] sm:$0xf] %v901
    %934 = vst [vmem:[%s5 + $0x14] sm:$0xf] %v902
    %935 = vst [vmem:[%s5 + $0x18] sm:$0xf] %v903
    %936 = vst [vmem:[%s5 + $0x1c] sm:$0xf] %v904
    %937 = vst [vmem:[%s5 + $0x20] sm:$0xf] %v905
    %938 = vst [vmem:[%s5 + $0x24] sm:$0xf] %v906
    %939 = vst [vmem:[%s5 + $0x28] sm:$0xf] %v907
    %940 = vst [vmem:[%s5 + $0x2c] sm:$0xf] %v908
    %941 = vst [vmem:[%s5 + $0x30] sm:$0xf] %v909
    %942 = vst [vmem:[%s5 + $0x34] sm:$0xf] %v910
    %943 = vst [vmem:[%s5 + $0x38] sm:$0xf] %v911
    %944 = vst [vmem:[%s5 + $0x3c] sm:$0xf] %v912
    // Predicated region
    $region34: #{_lambda_.7} parent=1 // pred_check
      _
    $region35: #{_lambda_.7} parent=1 // pred_check_branch
      %946 = sbr.rel (0) target = $region37
    $region36: #{_lambda_.7} parent=1 // pred_region
      _
    $region37: #{_lambda_.7} parent=1 // pred_fallthru
      _
    // Predicated region
    $region38: #{_lambda_.7} parent=1 // pred_check
      _
    $region39: #{_lambda_.7} parent=1 // pred_check_branch
      %948 = sbr.rel (0) target = $region41
    $region40: #{_lambda_.7} parent=1 // pred_region
      _
    $region41: #{_lambda_.7} parent=1 // pred_fallthru
      _
    %949 = vsyncpa [#allocation3], 1
    %950 = vsyncpa [#allocation5], 1

// kernel: _lambda_.8
$region0: #{_lambda_.8}
  #allocation0 [shape = 'u32[]', space=smem, size = 0x4, offset = 0x4, fixed_abs, tag = 'smem constant byte address 0x4 - core index']
  #allocation1 [shape = 'u32[144,128]{1,0:T(1,128)}', space=vmem, size = 0x12000, scoped, tag = 'internal scratch']
  %s0 = inlined_call_operand.vmem [shape: bf16[512,256], index: 0, kind: input, shape index: {}]
  %s1 = inlined_call_operand.hbm [shape: bf16[256,128], index: 1, kind: input, shape index: {}]
  %s2 = inlined_call_operand.hbm [shape: f32[128,128], index: 2, kind: input, shape index: {}]
  %s3 = inlined_call_operand.hbm [shape: f32[1,128], index: 3, kind: input, shape index: {}]
  %s4 = inlined_call_operand.vmem [shape: f32[1,128], index: 4, kind: input, shape index: {}]
  %s5 = inlined_call_operand.vmem [shape: bf16[512,128], index: 5, kind: output, shape index: {}]
  %s6 = sld [smem:[#allocation0]]
  $region42: #{_lambda_.8} parent=0
    _
  %s8 = ssub.s32 1, %s6
  %s9 = scalar_select 0, %s8, %s6
  $region1: #{_lambda_.8} parent=0
    #allocation2 [shape = 'u8[65536]{0}', space=vmem, size = 0x10000, scoped, tag = 'input window, operand 1, single buffered']
    #allocation3 [shape = 's32[1]{0}', space=sflag, size = 0x4, scoped, tag = 'scoped memory for _lambda_.8']
    #allocation4 [shape = 'u8[65536]{0}', space=vmem, size = 0x10000, scoped, tag = 'input window, operand 2, single buffered']
    #allocation5 [shape = 's32[1]{0}', space=sflag, size = 0x4, scoped, tag = 'scoped memory for _lambda_.8']
    #allocation6 [shape = 'u8[512]{0}', space=vmem, size = 0x400, scoped, tag = 'input window, operand 3, single buffered']
    %10 = vsyncpa [#allocation3], 0
    %11 = vsyncpa [#allocation5], 0
    // Predicated region
    $region2: #{_lambda_.8} parent=1 // pred_check
      _
    $region3: #{_lambda_.8} parent=1 // pred_check_branch
      %13 = sbr.rel (0) target = $region5
    $region4: #{_lambda_.8} parent=1 // pred_region
      _
    $region5: #{_lambda_.8} parent=1 // pred_fallthru
      _
    // Predicated region
    $region6: #{_lambda_.8} parent=1 // pred_check
      _
    $region7: #{_lambda_.8} parent=1 // pred_check_branch
      %15 = sbr.rel (0) target = $region9
    $region8: #{_lambda_.8} parent=1 // pred_region
      %s17 = ssub.s32 2048, 2048
      %18 = vsyncadd [#allocation3], %s17
      %s19 = sshll.u32 [#allocation2], 4
      %s20 = int_to_ptr.vmem [resolvable:$true] %s19
      %25 = dma.hbm_to_vmem [thread:$0]  %s1, 2048, %s20, [#allocation3], 64, 64, 4
    $region9: #{_lambda_.8} parent=1 // pred_fallthru
      _
    // Predicated region
    $region10: #{_lambda_.8} parent=1 // pred_check
      _
    $region11: #{_lambda_.8} parent=1 // pred_check_branch
      %27 = sbr.rel (0) target = $region13
    $region12: #{_lambda_.8} parent=1 // pred_region
      %s29 = ssub.s32 2048, 2048
      %30 = vsyncadd [#allocation5], %s29
      %s31 = sshll.u32 [#allocation4], 4
      %s32 = int_to_ptr.vmem [resolvable:$true] %s31
      %37 = dma.hbm_to_vmem [thread:$0]  %s2, 2048, %s32, [#allocation5], 128, 128, 8
    $region13: #{_lambda_.8} parent=1 // pred_fallthru
      _
    // Predicated region
    $region14: #{_lambda_.8} parent=1 // pred_check
      _
    $region15: #{_lambda_.8} parent=1 // pred_check_branch
      %39 = sbr.rel (0) target = $region17
    $region16: #{_lambda_.8} parent=1 // pred_region
      %s41 = ssub.s32 16, 16
      %42 = vsyncadd [#allocation5], %s41
      %s44 = sshll.u32 [#allocation6], 4
      %s45 = int_to_ptr.vmem [resolvable:$true] %s44
      %47 = dma.hbm_to_vmem [thread:$0]  %s3, 16, %s45, [#allocation5]
    $region17: #{_lambda_.8} parent=1 // pred_fallthru
      _
    // Predicated region
    $region18: #{_lambda_.8} parent=1 // pred_check
      _
    $region19: #{_lambda_.8} parent=1 // pred_check_branch
      %49 = sbr.rel (0) target = $region21
    $region20: #{_lambda_.8} parent=1 // pred_region
      _
    $region21: #{_lambda_.8} parent=1 // pred_fallthru
      _
    // Predicated region
    $region22: #{_lambda_.8} parent=1 // pred_check
      _
    $region23: #{_lambda_.8} parent=1 // pred_check_branch
      %51 = sbr.rel (0) target = $region25
    $region24: #{_lambda_.8} parent=1 // pred_region
      %52 = dma.done [#allocation3], 2048
    $region25: #{_lambda_.8} parent=1 // pred_fallthru
      _
    // Predicated region
    $region26: #{_lambda_.8} parent=1 // pred_check
      _
    $region27: #{_lambda_.8} parent=1 // pred_check_branch
      %54 = sbr.rel (0) target = $region29
    $region28: #{_lambda_.8} parent=1 // pred_region
      %55 = dma.done [#allocation5], 2048
    $region29: #{_lambda_.8} parent=1 // pred_fallthru
      _
    // Predicated region
    $region30: #{_lambda_.8} parent=1 // pred_check
      _
    $region31: #{_lambda_.8} parent=1 // pred_check_branch
      %57 = sbr.rel (0) target = $region33
    $region32: #{_lambda_.8} parent=1 // pred_region
      %58 = dma.done [#allocation5], 16
    $region33: #{_lambda_.8} parent=1 // pred_fallthru
      _
    %v60 = vld [vmem:[%s0] sm:$0xff]
    %v61 = vld [vmem:[%s0 + $0x8] sm:$0xff]
    %v62 = vld [vmem:[%s0 + $0x10] sm:$0xff]
    %v63 = vld [vmem:[%s0 + $0x18] sm:$0xff]
    %v64 = vld [vmem:[%s0 + $0x20] sm:$0xff]
    %v65 = vld [vmem:[%s0 + $0x28] sm:$0xff]
    %v66 = vld [vmem:[%s0 + $0x30] sm:$0xff]
    %v67 = vld [vmem:[%s0 + $0x38] sm:$0xff]
    %v68 = vld [vmem:[%s0 + $0x40] sm:$0xff]
    %v69 = vld [vmem:[%s0 + $0x48] sm:$0xff]
    %v70 = vld [vmem:[%s0 + $0x50] sm:$0xff]
    %v71 = vld [vmem:[%s0 + $0x58] sm:$0xff]
    %v72 = vld [vmem:[%s0 + $0x60] sm:$0xff]
    %v73 = vld [vmem:[%s0 + $0x68] sm:$0xff]
    %v74 = vld [vmem:[%s0 + $0x70] sm:$0xff]
    %v75 = vld [vmem:[%s0 + $0x78] sm:$0xff]
    %v76 = vld [vmem:[%s0 + $0x80] sm:$0xff]
    %v77 = vld [vmem:[%s0 + $0x88] sm:$0xff]
    %v78 = vld [vmem:[%s0 + $0x90] sm:$0xff]
    %v79 = vld [vmem:[%s0 + $0x98] sm:$0xff]
    %v80 = vld [vmem:[%s0 + $0xa0] sm:$0xff]
    %v81 = vld [vmem:[%s0 + $0xa8] sm:$0xff]
    %v82 = vld [vmem:[%s0 + $0xb0] sm:$0xff]
    %v83 = vld [vmem:[%s0 + $0xb8] sm:$0xff]
    %v84 = vld [vmem:[%s0 + $0xc0] sm:$0xff]
    %v85 = vld [vmem:[%s0 + $0xc8] sm:$0xff]
    %v86 = vld [vmem:[%s0 + $0xd0] sm:$0xff]
    %v87 = vld [vmem:[%s0 + $0xd8] sm:$0xff]
    %v88 = vld [vmem:[%s0 + $0xe0] sm:$0xff]
    %v89 = vld [vmem:[%s0 + $0xe8] sm:$0xff]
    %v90 = vld [vmem:[%s0 + $0xf0] sm:$0xff]
    %v91 = vld [vmem:[%s0 + $0xf8] sm:$0xff]
    %v92 = vld [vmem:[%s0 + $0x100] sm:$0xff]
    %v93 = vld [vmem:[%s0 + $0x108] sm:$0xff]
    %v94 = vld [vmem:[%s0 + $0x110] sm:$0xff]
    %v95 = vld [vmem:[%s0 + $0x118] sm:$0xff]
    %v96 = vld [vmem:[%s0 + $0x120] sm:$0xff]
    %v97 = vld [vmem:[%s0 + $0x128] sm:$0xff]
    %v98 = vld [vmem:[%s0 + $0x130] sm:$0xff]
    %v99 = vld [vmem:[%s0 + $0x138] sm:$0xff]
    %v100 = vld [vmem:[%s0 + $0x140] sm:$0xff]
    %v101 = vld [vmem:[%s0 + $0x148] sm:$0xff]
    %v102 = vld [vmem:[%s0 + $0x150] sm:$0xff]
    %v103 = vld [vmem:[%s0 + $0x158] sm:$0xff]
    %v104 = vld [vmem:[%s0 + $0x160] sm:$0xff]
    %v105 = vld [vmem:[%s0 + $0x168] sm:$0xff]
    %v106 = vld [vmem:[%s0 + $0x170] sm:$0xff]
    %v107 = vld [vmem:[%s0 + $0x178] sm:$0xff]
    %v108 = vld [vmem:[%s0 + $0x180] sm:$0xff]
    %v109 = vld [vmem:[%s0 + $0x188] sm:$0xff]
    %v110 = vld [vmem:[%s0 + $0x190] sm:$0xff]
    %v111 = vld [vmem:[%s0 + $0x198] sm:$0xff]
    %v112 = vld [vmem:[%s0 + $0x1a0] sm:$0xff]
    %v113 = vld [vmem:[%s0 + $0x1a8] sm:$0xff]
    %v114 = vld [vmem:[%s0 + $0x1b0] sm:$0xff]
    %v115 = vld [vmem:[%s0 + $0x1b8] sm:$0xff]
    %v116 = vld [vmem:[%s0 + $0x1c0] sm:$0xff]
    %v117 = vld [vmem:[%s0 + $0x1c8] sm:$0xff]
    %v118 = vld [vmem:[%s0 + $0x1d0] sm:$0xff]
    %v119 = vld [vmem:[%s0 + $0x1d8] sm:$0xff]
    %v120 = vld [vmem:[%s0 + $0x1e0] sm:$0xff]
    %v121 = vld [vmem:[%s0 + $0x1e8] sm:$0xff]
    %v122 = vld [vmem:[%s0 + $0x1f0] sm:$0xff]
    %v123 = vld [vmem:[%s0 + $0x1f8] sm:$0xff]
    %v124 = vld [vmem:[#allocation2] sm:$0xf]
    %v125 = vld [vmem:[#allocation2 + $0x4] sm:$0xf]
    %v126 = vld [vmem:[#allocation2 + $0x8] sm:$0xf]
    %v127 = vld [vmem:[#allocation2 + $0xc] sm:$0xf]
    %v128 = vld [vmem:[#allocation2 + $0x10] sm:$0xf]
    %v129 = vld [vmem:[#allocation2 + $0x14] sm:$0xf]
    %v130 = vld [vmem:[#allocation2 + $0x18] sm:$0xf]
    %v131 = vld [vmem:[#allocation2 + $0x1c] sm:$0xf]
    %v132 = vld [vmem:[#allocation2 + $0x20] sm:$0xf]
    %v133 = vld [vmem:[#allocation2 + $0x24] sm:$0xf]
    %v134 = vld [vmem:[#allocation2 + $0x28] sm:$0xf]
    %v135 = vld [vmem:[#allocation2 + $0x2c] sm:$0xf]
    %v136 = vld [vmem:[#allocation2 + $0x30] sm:$0xf]
    %v137 = vld [vmem:[#allocation2 + $0x34] sm:$0xf]
    %v138 = vld [vmem:[#allocation2 + $0x38] sm:$0xf]
    %v139 = vld [vmem:[#allocation2 + $0x3c] sm:$0xf]
    %v140 = vld [vmem:[#allocation2 + $0x40] sm:$0xf]
    %v141 = vld [vmem:[#allocation2 + $0x44] sm:$0xf]
    %v142 = vld [vmem:[#allocation2 + $0x48] sm:$0xf]
    %v143 = vld [vmem:[#allocation2 + $0x4c] sm:$0xf]
    %v144 = vld [vmem:[#allocation2 + $0x50] sm:$0xf]
    %v145 = vld [vmem:[#allocation2 + $0x54] sm:$0xf]
    %v146 = vld [vmem:[#allocation2 + $0x58] sm:$0xf]
    %v147 = vld [vmem:[#allocation2 + $0x5c] sm:$0xf]
    %v148 = vld [vmem:[#allocation2 + $0x60] sm:$0xf]
    %v149 = vld [vmem:[#allocation2 + $0x64] sm:$0xf]
    %v150 = vld [vmem:[#allocation2 + $0x68] sm:$0xf]
    %v151 = vld [vmem:[#allocation2 + $0x6c] sm:$0xf]
    %v152 = vld [vmem:[#allocation2 + $0x70] sm:$0xf]
    %v153 = vld [vmem:[#allocation2 + $0x74] sm:$0xf]
    %v154 = vld [vmem:[#allocation2 + $0x78] sm:$0xf]
    %v155 = vld [vmem:[#allocation2 + $0x7c] sm:$0xf]
    %v220 = vunpack.c.l.b16 %v60
    %v221 = vunpack.c.h.b16 %v60
    %v222 = vunpack.c.l.b16 %v61
    %v223 = vunpack.c.h.b16 %v61
    %v224 = vunpack.c.l.b16 %v62
    %v225 = vunpack.c.h.b16 %v62
    %v226 = vunpack.c.l.b16 %v63
    %v227 = vunpack.c.h.b16 %v63
    %v228 = vunpack.c.l.b16 %v64
    %v229 = vunpack.c.h.b16 %v64
    %v230 = vunpack.c.l.b16 %v65
    %v231 = vunpack.c.h.b16 %v65
    %v232 = vunpack.c.l.b16 %v66
    %v233 = vunpack.c.h.b16 %v66
    %v234 = vunpack.c.l.b16 %v67
    %v235 = vunpack.c.h.b16 %v67
    %v236 = vunpack.c.l.b16 %v68
    %v237 = vunpack.c.h.b16 %v68
    %v238 = vunpack.c.l.b16 %v69
    %v239 = vunpack.c.h.b16 %v69
    %v240 = vunpack.c.l.b16 %v70
    %v241 = vunpack.c.h.b16 %v70
    %v242 = vunpack.c.l.b16 %v71
    %v243 = vunpack.c.h.b16 %v71
    %v244 = vunpack.c.l.b16 %v72
    %v245 = vunpack.c.h.b16 %v72
    %v246 = vunpack.c.l.b16 %v73
    %v247 = vunpack.c.h.b16 %v73
    %v248 = vunpack.c.l.b16 %v74
    %v249 = vunpack.c.h.b16 %v74
    %v250 = vunpack.c.l.b16 %v75
    %v251 = vunpack.c.h.b16 %v75
    %v252 = vunpack.c.l.b16 %v76
    %v253 = vunpack.c.h.b16 %v76
    %v254 = vunpack.c.l.b16 %v77
    %v255 = vunpack.c.h.b16 %v77
    %v256 = vunpack.c.l.b16 %v78
    %v257 = vunpack.c.h.b16 %v78
    %v258 = vunpack.c.l.b16 %v79
    %v259 = vunpack.c.h.b16 %v79
    %v260 = vunpack.c.l.b16 %v80
    %v261 = vunpack.c.h.b16 %v80
    %v262 = vunpack.c.l.b16 %v81
    %v263 = vunpack.c.h.b16 %v81
    %v264 = vunpack.c.l.b16 %v82
    %v265 = vunpack.c.h.b16 %v82
    %v266 = vunpack.c.l.b16 %v83
    %v267 = vunpack.c.h.b16 %v83
    %v268 = vunpack.c.l.b16 %v84
    %v269 = vunpack.c.h.b16 %v84
    %v270 = vunpack.c.l.b16 %v85
    %v271 = vunpack.c.h.b16 %v85
    %v272 = vunpack.c.l.b16 %v86
    %v273 = vunpack.c.h.b16 %v86
    %v274 = vunpack.c.l.b16 %v87
    %v275 = vunpack.c.h.b16 %v87
    %v276 = vunpack.c.l.b16 %v88
    %v277 = vunpack.c.h.b16 %v88
    %v278 = vunpack.c.l.b16 %v89
    %v279 = vunpack.c.h.b16 %v89
    %v280 = vunpack.c.l.b16 %v90
    %v281 = vunpack.c.h.b16 %v90
    %v282 = vunpack.c.l.b16 %v91
    %v283 = vunpack.c.h.b16 %v91
    %v284 = vunpack.c.l.b16 %v92
    %v285 = vunpack.c.h.b16 %v92
    %v286 = vunpack.c.l.b16 %v93
    %v287 = vunpack.c.h.b16 %v93
    %v288 = vunpack.c.l.b16 %v94
    %v289 = vunpack.c.h.b16 %v94
    %v290 = vunpack.c.l.b16 %v95
    %v291 = vunpack.c.h.b16 %v95
    %v292 = vunpack.c.l.b16 %v96
    %v293 = vunpack.c.h.b16 %v96
    %v294 = vunpack.c.l.b16 %v97
    %v295 = vunpack.c.h.b16 %v97
    %v296 = vunpack.c.l.b16 %v98
    %v297 = vunpack.c.h.b16 %v98
    %v298 = vunpack.c.l.b16 %v99
    %v299 = vunpack.c.h.b16 %v99
    %v300 = vunpack.c.l.b16 %v100
    %v301 = vunpack.c.h.b16 %v100
    %v302 = vunpack.c.l.b16 %v101
    %v303 = vunpack.c.h.b16 %v101
    %v304 = vunpack.c.l.b16 %v102
    %v305 = vunpack.c.h.b16 %v102
    %v306 = vunpack.c.l.b16 %v103
    %v307 = vunpack.c.h.b16 %v103
    %v308 = vunpack.c.l.b16 %v104
    %v309 = vunpack.c.h.b16 %v104
    %v310 = vunpack.c.l.b16 %v105
    %v311 = vunpack.c.h.b16 %v105
    %v312 = vunpack.c.l.b16 %v106
    %v313 = vunpack.c.h.b16 %v106
    %v314 = vunpack.c.l.b16 %v107
    %v315 = vunpack.c.h.b16 %v107
    %v316 = vunpack.c.l.b16 %v108
    %v317 = vunpack.c.h.b16 %v108
    %v318 = vunpack.c.l.b16 %v109
    %v319 = vunpack.c.h.b16 %v109
    %v320 = vunpack.c.l.b16 %v110
    %v321 = vunpack.c.h.b16 %v110
    %v322 = vunpack.c.l.b16 %v111
    %v323 = vunpack.c.h.b16 %v111
    %v324 = vunpack.c.l.b16 %v112
    %v325 = vunpack.c.h.b16 %v112
    %v326 = vunpack.c.l.b16 %v113
    %v327 = vunpack.c.h.b16 %v113
    %v328 = vunpack.c.l.b16 %v114
    %v329 = vunpack.c.h.b16 %v114
    %v330 = vunpack.c.l.b16 %v115
    %v331 = vunpack.c.h.b16 %v115
    %v332 = vunpack.c.l.b16 %v116
    %v333 = vunpack.c.h.b16 %v116
    %v334 = vunpack.c.l.b16 %v117
    %v335 = vunpack.c.h.b16 %v117
    %v336 = vunpack.c.l.b16 %v118
    %v337 = vunpack.c.h.b16 %v118
    %v338 = vunpack.c.l.b16 %v119
    %v339 = vunpack.c.h.b16 %v119
    %v340 = vunpack.c.l.b16 %v120
    %v341 = vunpack.c.h.b16 %v120
    %v342 = vunpack.c.l.b16 %v121
    %v343 = vunpack.c.h.b16 %v121
    %v344 = vunpack.c.l.b16 %v122
    %v345 = vunpack.c.h.b16 %v122
    %v346 = vunpack.c.l.b16 %v123
    %v347 = vunpack.c.h.b16 %v123
    %v348 = vpack.c.b16 %v222, %v220
    %v349 = vpack.c.b16 %v223, %v221
    %v350 = vpack.c.b16 %v226, %v224
    %v351 = vpack.c.b16 %v227, %v225
    %v352 = vpack.c.b16 %v230, %v228
    %v353 = vpack.c.b16 %v231, %v229
    %v354 = vpack.c.b16 %v234, %v232
    %v355 = vpack.c.b16 %v235, %v233
    %v356 = vpack.c.b16 %v238, %v236
    %v357 = vpack.c.b16 %v239, %v237
    %v358 = vpack.c.b16 %v242, %v240
    %v359 = vpack.c.b16 %v243, %v241
    %v360 = vpack.c.b16 %v246, %v244
    %v361 = vpack.c.b16 %v247, %v245
    %v362 = vpack.c.b16 %v250, %v248
    %v363 = vpack.c.b16 %v251, %v249
    %v364 = vpack.c.b16 %v254, %v252
    %v365 = vpack.c.b16 %v255, %v253
    %v366 = vpack.c.b16 %v258, %v256
    %v367 = vpack.c.b16 %v259, %v257
    %v368 = vpack.c.b16 %v262, %v260
    %v369 = vpack.c.b16 %v263, %v261
    %v370 = vpack.c.b16 %v266, %v264
    %v371 = vpack.c.b16 %v267, %v265
    %v372 = vpack.c.b16 %v270, %v268
    %v373 = vpack.c.b16 %v271, %v269
    %v374 = vpack.c.b16 %v274, %v272
    %v375 = vpack.c.b16 %v275, %v273
    %v376 = vpack.c.b16 %v278, %v276
    %v377 = vpack.c.b16 %v279, %v277
    %v378 = vpack.c.b16 %v282, %v280
    %v379 = vpack.c.b16 %v283, %v281
    %v380 = vpack.c.b16 %v286, %v284
    %v381 = vpack.c.b16 %v287, %v285
    %v382 = vpack.c.b16 %v290, %v288
    %v383 = vpack.c.b16 %v291, %v289
    %v384 = vpack.c.b16 %v294, %v292
    %v385 = vpack.c.b16 %v295, %v293
    %v386 = vpack.c.b16 %v298, %v296
    %v387 = vpack.c.b16 %v299, %v297
    %v388 = vpack.c.b16 %v302, %v300
    %v389 = vpack.c.b16 %v303, %v301
    %v390 = vpack.c.b16 %v306, %v304
    %v391 = vpack.c.b16 %v307, %v305
    %v392 = vpack.c.b16 %v310, %v308
    %v393 = vpack.c.b16 %v311, %v309
    %v394 = vpack.c.b16 %v314, %v312
    %v395 = vpack.c.b16 %v315, %v313
    %v396 = vpack.c.b16 %v318, %v316
    %v397 = vpack.c.b16 %v319, %v317
    %v398 = vpack.c.b16 %v322, %v320
    %v399 = vpack.c.b16 %v323, %v321
    %v400 = vpack.c.b16 %v326, %v324
    %v401 = vpack.c.b16 %v327, %v325
    %v402 = vpack.c.b16 %v330, %v328
    %v403 = vpack.c.b16 %v331, %v329
    %v404 = vpack.c.b16 %v334, %v332
    %v405 = vpack.c.b16 %v335, %v333
    %v406 = vpack.c.b16 %v338, %v336
    %v407 = vpack.c.b16 %v339, %v337
    %v408 = vpack.c.b16 %v342, %v340
    %v409 = vpack.c.b16 %v343, %v341
    %v410 = vpack.c.b16 %v346, %v344
    %v411 = vpack.c.b16 %v347, %v345
    %v508 = vunpack.c.l.b16 %v124
    %v509 = vunpack.c.l.b16 %v125
    %v510 = vunpack.c.l.b16 %v126
    %v511 = vunpack.c.l.b16 %v127
    %v512 = vunpack.c.l.b16 %v128
    %v513 = vunpack.c.l.b16 %v129
    %v514 = vunpack.c.l.b16 %v130
    %v515 = vunpack.c.l.b16 %v131
    %v516 = vunpack.c.l.b16 %v132
    %v517 = vunpack.c.l.b16 %v133
    %v518 = vunpack.c.l.b16 %v134
    %v519 = vunpack.c.l.b16 %v135
    %v520 = vunpack.c.l.b16 %v136
    %v521 = vunpack.c.l.b16 %v137
    %v522 = vunpack.c.l.b16 %v138
    %v523 = vunpack.c.l.b16 %v139
    %v524 = vunpack.c.l.b16 %v140
    %v525 = vunpack.c.l.b16 %v141
    %v526 = vunpack.c.l.b16 %v142
    %v527 = vunpack.c.l.b16 %v143
    %v528 = vunpack.c.l.b16 %v144
    %v529 = vunpack.c.l.b16 %v145
    %v530 = vunpack.c.l.b16 %v146
    %v531 = vunpack.c.l.b16 %v147
    %v532 = vunpack.c.l.b16 %v148
    %v533 = vunpack.c.l.b16 %v149
    %v534 = vunpack.c.l.b16 %v150
    %v535 = vunpack.c.l.b16 %v151
    %v536 = vunpack.c.l.b16 %v152
    %v537 = vunpack.c.l.b16 %v153
    %v538 = vunpack.c.l.b16 %v154
    %v539 = vunpack.c.l.b16 %v155
    %v540 = vpack.c.b16 %v509, %v508
    %v541 = vpack.c.b16 %v511, %v510
    %v542 = vpack.c.b16 %v513, %v512
    %v543 = vpack.c.b16 %v515, %v514
    %v544 = vpack.c.b16 %v517, %v516
    %v545 = vpack.c.b16 %v519, %v518
    %v546 = vpack.c.b16 %v521, %v520
    %v547 = vpack.c.b16 %v523, %v522
    %v548 = vpack.c.b16 %v525, %v524
    %v549 = vpack.c.b16 %v527, %v526
    %v550 = vpack.c.b16 %v529, %v528
    %v551 = vpack.c.b16 %v531, %v530
    %v552 = vpack.c.b16 %v533, %v532
    %v553 = vpack.c.b16 %v535, %v534
    %v554 = vpack.c.b16 %v537, %v536
    %v555 = vpack.c.b16 %v539, %v538
    %572 = vmatprep.subr.bf16.mxu0 0
    %573 = vmatpush1.bf16.msra.mxu0 %v540
    %574 = vmatprep.subr.bf16.mxu0 0
    %575 = vmatpush1.bf16.msra.mxu0 %v541
    %576 = vmatprep.subr.bf16.mxu0 0
    %577 = vmatpush1.bf16.msra.mxu0 %v542
    %578 = vmatprep.subr.bf16.mxu0 0
    %579 = vmatpush1.bf16.msra.mxu0 %v543
    %580 = vmatprep.subr.bf16.mxu0 0
    %581 = vmatpush1.bf16.msra.mxu0 %v544
    %582 = vmatprep.subr.bf16.mxu0 0
    %583 = vmatpush1.bf16.msra.mxu0 %v545
    %584 = vmatprep.subr.bf16.mxu0 0
    %585 = vmatpush1.bf16.msra.mxu0 %v546
    %586 = vmatprep.subr.bf16.mxu0 0
    %587 = vmatpush1.bf16.msra.mxu0 %v547
    %588 = vmatprep.subr.bf16.mxu0 0
    %589 = vmatpush1.bf16.msra.mxu0 %v548
    %590 = vmatprep.subr.bf16.mxu0 0
    %591 = vmatpush1.bf16.msra.mxu0 %v549
    %592 = vmatprep.subr.bf16.mxu0 0
    %593 = vmatpush1.bf16.msra.mxu0 %v550
    %594 = vmatprep.subr.bf16.mxu0 0
    %595 = vmatpush1.bf16.msra.mxu0 %v551
    %596 = vmatprep.subr.bf16.mxu0 0
    %597 = vmatpush1.bf16.msra.mxu0 %v552
    %598 = vmatprep.subr.bf16.mxu0 0
    %599 = vmatpush1.bf16.msra.mxu0 %v553
    %600 = vmatprep.subr.bf16.mxu0 0
    %601 = vmatpush1.bf16.msra.mxu0 %v554
    %602 = vmatprep.subr.bf16.mxu0 0
    %603 = vmatpush1.bf16.msra.mxu0 %v555
    %604 = vmatprep.mubr.bf16.mxu0 %v349
    %605 = vmatmul.mubr.bf16.gmra.mrb[0].mxu0 %v348
    %v606 = vpop.f32.mrb[0].mxu0
    %v607 = vadd.f32 0.0, %v606
    %v608 = vpop.f32.mrb[0].mxu0
    %v609 = vpop.f32.mrb[0].mxu0
    %v610 = vadd.f32 0.0, %v609
    %v611 = vpop.f32.mrb[0].mxu0
    %612 = vmatprep.mubr.bf16.mxu0 %v351
    %613 = vmatmul.mubr.bf16.gmra.mrb[0].mxu0 %v350
    %v614 = vpop.f32.mrb[0].mxu0
    %v615 = vadd.f32 0.0, %v614
    %v616 = vpop.f32.mrb[0].mxu0
    %v617 = vpop.f32.mrb[0].mxu0
    %v618 = vadd.f32 0.0, %v617
    %v619 = vpop.f32.mrb[0].mxu0
    %620 = vmatprep.mubr.bf16.mxu0 %v353
    %621 = vmatmul.mubr.bf16.gmra.mrb[0].mxu0 %v352
    %v622 = vpop.f32.mrb[0].mxu0
    %v623 = vadd.f32 0.0, %v622
    %v624 = vpop.f32.mrb[0].mxu0
    %v625 = vpop.f32.mrb[0].mxu0
    %v626 = vadd.f32 0.0, %v625
    %v627 = vpop.f32.mrb[0].mxu0
    %628 = vmatprep.mubr.bf16.mxu0 %v355
    %629 = vmatmul.mubr.bf16.gmra.mrb[0].mxu0 %v354
    %v630 = vpop.f32.mrb[0].mxu0
    %v631 = vadd.f32 0.0, %v630
    %v632 = vpop.f32.mrb[0].mxu0
    %v633 = vpop.f32.mrb[0].mxu0
    %v634 = vadd.f32 0.0, %v633
    %v635 = vpop.f32.mrb[0].mxu0
    %636 = vmatprep.mubr.bf16.mxu0 %v357
    %637 = vmatmul.mubr.bf16.gmra.mrb[0].mxu0 %v356
    %v638 = vpop.f32.mrb[0].mxu0
    %v639 = vadd.f32 0.0, %v638
    %v640 = vpop.f32.mrb[0].mxu0
    %v641 = vpop.f32.mrb[0].mxu0
    %v642 = vadd.f32 0.0, %v641
    %v643 = vpop.f32.mrb[0].mxu0
    %644 = vmatprep.mubr.bf16.mxu0 %v359
    %645 = vmatmul.mubr.bf16.gmra.mrb[0].mxu0 %v358
    %v646 = vpop.f32.mrb[0].mxu0
    %v647 = vadd.f32 0.0, %v646
    %v648 = vpop.f32.mrb[0].mxu0
    %v649 = vpop.f32.mrb[0].mxu0
    %v650 = vadd.f32 0.0, %v649
    %v651 = vpop.f32.mrb[0].mxu0
    %652 = vmatprep.mubr.bf16.mxu0 %v361
    %653 = vmatmul.mubr.bf16.gmra.mrb[0].mxu0 %v360
    %v654 = vpop.f32.mrb[0].mxu0
    %v655 = vadd.f32 0.0, %v654
    %v656 = vpop.f32.mrb[0].mxu0
    %v657 = vpop.f32.mrb[0].mxu0
    %v658 = vadd.f32 0.0, %v657
    %v659 = vpop.f32.mrb[0].mxu0
    %660 = vmatprep.mubr.bf16.mxu0 %v363
    %661 = vmatmul.mubr.bf16.gmra.mrb[0].mxu0 %v362
    %v662 = vpop.f32.mrb[0].mxu0
    %v663 = vadd.f32 0.0, %v662
    %v664 = vpop.f32.mrb[0].mxu0
    %v665 = vpop.f32.mrb[0].mxu0
    %v666 = vadd.f32 0.0, %v665
    %v667 = vpop.f32.mrb[0].mxu0
    %668 = vmatprep.mubr.bf16.mxu0 %v365
    %669 = vmatmul.mubr.bf16.gmra.mrb[0].mxu0 %v364
    %v670 = vpop.f32.mrb[0].mxu0
    %v671 = vadd.f32 0.0, %v670
    %v672 = vpop.f32.mrb[0].mxu0
    %v673 = vpop.f32.mrb[0].mxu0
    %v674 = vadd.f32 0.0, %v673
    %v675 = vpop.f32.mrb[0].mxu0
    %676 = vmatprep.mubr.bf16.mxu0 %v367
    %677 = vmatmul.mubr.bf16.gmra.mrb[0].mxu0 %v366
    %v678 = vpop.f32.mrb[0].mxu0
    %v679 = vadd.f32 0.0, %v678
    %v680 = vpop.f32.mrb[0].mxu0
    %v681 = vpop.f32.mrb[0].mxu0
    %v682 = vadd.f32 0.0, %v681
    %v683 = vpop.f32.mrb[0].mxu0
    %684 = vmatprep.mubr.bf16.mxu0 %v369
    %685 = vmatmul.mubr.bf16.gmra.mrb[0].mxu0 %v368
    %v686 = vpop.f32.mrb[0].mxu0
    %v687 = vadd.f32 0.0, %v686
    %v688 = vpop.f32.mrb[0].mxu0
    %v689 = vpop.f32.mrb[0].mxu0
    %v690 = vadd.f32 0.0, %v689
    %v691 = vpop.f32.mrb[0].mxu0
    %692 = vmatprep.mubr.bf16.mxu0 %v371
    %693 = vmatmul.mubr.bf16.gmra.mrb[0].mxu0 %v370
    %v694 = vpop.f32.mrb[0].mxu0
    %v695 = vadd.f32 0.0, %v694
    %v696 = vpop.f32.mrb[0].mxu0
    %v697 = vpop.f32.mrb[0].mxu0
    %v698 = vadd.f32 0.0, %v697
    %v699 = vpop.f32.mrb[0].mxu0
    %700 = vmatprep.mubr.bf16.mxu0 %v373
    %701 = vmatmul.mubr.bf16.gmra.mrb[0].mxu0 %v372
    %v702 = vpop.f32.mrb[0].mxu0
    %v703 = vadd.f32 0.0, %v702
    %v704 = vpop.f32.mrb[0].mxu0
    %v705 = vpop.f32.mrb[0].mxu0
    %v706 = vadd.f32 0.0, %v705
    %v707 = vpop.f32.mrb[0].mxu0
    %708 = vmatprep.mubr.bf16.mxu0 %v375
    %709 = vmatmul.mubr.bf16.gmra.mrb[0].mxu0 %v374
    %v710 = vpop.f32.mrb[0].mxu0
    %v711 = vadd.f32 0.0, %v710
    %v712 = vpop.f32.mrb[0].mxu0
    %v713 = vpop.f32.mrb[0].mxu0
    %v714 = vadd.f32 0.0, %v713
    %v715 = vpop.f32.mrb[0].mxu0
    %716 = vmatprep.mubr.bf16.mxu0 %v377
    %717 = vmatmul.mubr.bf16.gmra.mrb[0].mxu0 %v376
    %v718 = vpop.f32.mrb[0].mxu0
    %v719 = vadd.f32 0.0, %v718
    %v720 = vpop.f32.mrb[0].mxu0
    %v721 = vpop.f32.mrb[0].mxu0
    %v722 = vadd.f32 0.0, %v721
    %v723 = vpop.f32.mrb[0].mxu0
    %724 = vmatprep.mubr.bf16.mxu0 %v379
    %725 = vmatmul.mubr.bf16.gmra.mrb[0].mxu0 %v378
    %v726 = vpop.f32.mrb[0].mxu0
    %v727 = vadd.f32 0.0, %v726
    %v728 = vpop.f32.mrb[0].mxu0
    %v729 = vpop.f32.mrb[0].mxu0
    %v730 = vadd.f32 0.0, %v729
    %v731 = vpop.f32.mrb[0].mxu0
    %732 = vmatprep.mubr.bf16.mxu0 %v381
    %733 = vmatmul.mubr.bf16.gmra.mrb[0].mxu0 %v380
    %v734 = vpop.f32.mrb[0].mxu0
    %v735 = vadd.f32 0.0, %v734
    %v736 = vpop.f32.mrb[0].mxu0
    %v737 = vpop.f32.mrb[0].mxu0
    %v738 = vadd.f32 0.0, %v737
    %v739 = vpop.f32.mrb[0].mxu0
    %740 = vmatprep.mubr.bf16.mxu0 %v383
    %741 = vmatmul.mubr.bf16.gmra.mrb[0].mxu0 %v382
    %v742 = vpop.f32.mrb[0].mxu0
    %v743 = vadd.f32 0.0, %v742
    %v744 = vpop.f32.mrb[0].mxu0
    %v745 = vpop.f32.mrb[0].mxu0
    %v746 = vadd.f32 0.0, %v745
    %v747 = vpop.f32.mrb[0].mxu0
    %748 = vmatprep.mubr.bf16.mxu0 %v385
    %749 = vmatmul.mubr.bf16.gmra.mrb[0].mxu0 %v384
    %v750 = vpop.f32.mrb[0].mxu0
    %v751 = vadd.f32 0.0, %v750
    %v752 = vpop.f32.mrb[0].mxu0
    %v753 = vpop.f32.mrb[0].mxu0
    %v754 = vadd.f32 0.0, %v753
    %v755 = vpop.f32.mrb[0].mxu0
    %756 = vmatprep.mubr.bf16.mxu0 %v387
    %757 = vmatmul.mubr.bf16.gmra.mrb[0].mxu0 %v386
    %v758 = vpop.f32.mrb[0].mxu0
    %v759 = vadd.f32 0.0, %v758
    %v760 = vpop.f32.mrb[0].mxu0
    %v761 = vpop.f32.mrb[0].mxu0
    %v762 = vadd.f32 0.0, %v761
    %v763 = vpop.f32.mrb[0].mxu0
    %764 = vmatprep.mubr.bf16.mxu0 %v389
    %765 = vmatmul.mubr.bf16.gmra.mrb[0].mxu0 %v388
    %v766 = vpop.f32.mrb[0].mxu0
    %v767 = vadd.f32 0.0, %v766
    %v768 = vpop.f32.mrb[0].mxu0
    %v769 = vpop.f32.mrb[0].mxu0
    %v770 = vadd.f32 0.0, %v769
    %v771 = vpop.f32.mrb[0].mxu0
    %772 = vmatprep.mubr.bf16.mxu0 %v391
    %773 = vmatmul.mubr.bf16.gmra.mrb[0].mxu0 %v390
    %v774 = vpop.f32.mrb[0].mxu0
    %v775 = vadd.f32 0.0, %v774
    %v776 = vpop.f32.mrb[0].mxu0
    %v777 = vpop.f32.mrb[0].mxu0
    %v778 = vadd.f32 0.0, %v777
    %v779 = vpop.f32.mrb[0].mxu0
    %780 = vmatprep.mubr.bf16.mxu0 %v393
    %781 = vmatmul.mubr.bf16.gmra.mrb[0].mxu0 %v392
    %v782 = vpop.f32.mrb[0].mxu0
    %v783 = vadd.f32 0.0, %v782
    %v784 = vpop.f32.mrb[0].mxu0
    %v785 = vpop.f32.mrb[0].mxu0
    %v786 = vadd.f32 0.0, %v785
    %v787 = vpop.f32.mrb[0].mxu0
    %788 = vmatprep.mubr.bf16.mxu0 %v395
    %789 = vmatmul.mubr.bf16.gmra.mrb[0].mxu0 %v394
    %v790 = vpop.f32.mrb[0].mxu0
    %v791 = vadd.f32 0.0, %v790
    %v792 = vpop.f32.mrb[0].mxu0
    %v793 = vpop.f32.mrb[0].mxu0
    %v794 = vadd.f32 0.0, %v793
    %v795 = vpop.f32.mrb[0].mxu0
    %796 = vmatprep.mubr.bf16.mxu0 %v397
    %797 = vmatmul.mubr.bf16.gmra.mrb[0].mxu0 %v396
    %v798 = vpop.f32.mrb[0].mxu0
    %v799 = vadd.f32 0.0, %v798
    %v800 = vpop.f32.mrb[0].mxu0
    %v801 = vpop.f32.mrb[0].mxu0
    %v802 = vadd.f32 0.0, %v801
    %v803 = vpop.f32.mrb[0].mxu0
    %804 = vmatprep.mubr.bf16.mxu0 %v399
    %805 = vmatmul.mubr.bf16.gmra.mrb[0].mxu0 %v398
    %v806 = vpop.f32.mrb[0].mxu0
    %v807 = vadd.f32 0.0, %v806
    %v808 = vpop.f32.mrb[0].mxu0
    %v809 = vpop.f32.mrb[0].mxu0
    %v810 = vadd.f32 0.0, %v809
    %v811 = vpop.f32.mrb[0].mxu0
    %812 = vmatprep.mubr.bf16.mxu0 %v401
    %813 = vmatmul.mubr.bf16.gmra.mrb[0].mxu0 %v400
    %v814 = vpop.f32.mrb[0].mxu0
    %v815 = vadd.f32 0.0, %v814
    %v816 = vpop.f32.mrb[0].mxu0
    %v817 = vpop.f32.mrb[0].mxu0
    %v818 = vadd.f32 0.0, %v817
    %v819 = vpop.f32.mrb[0].mxu0
    %820 = vmatprep.mubr.bf16.mxu0 %v403
    %821 = vmatmul.mubr.bf16.gmra.mrb[0].mxu0 %v402
    %v822 = vpop.f32.mrb[0].mxu0
    %v823 = vadd.f32 0.0, %v822
    %v824 = vpop.f32.mrb[0].mxu0
    %v825 = vpop.f32.mrb[0].mxu0
    %v826 = vadd.f32 0.0, %v825
    %v827 = vpop.f32.mrb[0].mxu0
    %828 = vmatprep.mubr.bf16.mxu0 %v405
    %829 = vmatmul.mubr.bf16.gmra.mrb[0].mxu0 %v404
    %v830 = vpop.f32.mrb[0].mxu0
    %v831 = vadd.f32 0.0, %v830
    %v832 = vpop.f32.mrb[0].mxu0
    %v833 = vpop.f32.mrb[0].mxu0
    %v834 = vadd.f32 0.0, %v833
    %v835 = vpop.f32.mrb[0].mxu0
    %836 = vmatprep.mubr.bf16.mxu0 %v407
    %837 = vmatmul.mubr.bf16.gmra.mrb[0].mxu0 %v406
    %v838 = vpop.f32.mrb[0].mxu0
    %v839 = vadd.f32 0.0, %v838
    %v840 = vpop.f32.mrb[0].mxu0
    %v841 = vpop.f32.mrb[0].mxu0
    %v842 = vadd.f32 0.0, %v841
    %v843 = vpop.f32.mrb[0].mxu0
    %844 = vmatprep.mubr.bf16.mxu0 %v409
    %845 = vmatmul.mubr.bf16.gmra.mrb[0].mxu0 %v408
    %v846 = vpop.f32.mrb[0].mxu0
    %v847 = vadd.f32 0.0, %v846
    %v848 = vpop.f32.mrb[0].mxu0
    %v849 = vpop.f32.mrb[0].mxu0
    %v850 = vadd.f32 0.0, %v849
    %v851 = vpop.f32.mrb[0].mxu0
    %852 = vmatprep.mubr.bf16.mxu0 %v411
    %853 = vmatmul.mubr.bf16.gmra.mrb[0].mxu0 %v410
    %v854 = vpop.f32.mrb[0].mxu0
    %v855 = vadd.f32 0.0, %v854
    %v856 = vpop.f32.mrb[0].mxu0
    %v857 = vpop.f32.mrb[0].mxu0
    %v858 = vadd.f32 0.0, %v857
    %v859 = vpop.f32.mrb[0].mxu0
    %860 = vdwg.mxu0
    %v861 = vadd.f32 %v607, %v610
    %v862 = vadd.f32 %v861, %v615
    %v863 = vadd.f32 %v862, %v618
    %v864 = vadd.f32 %v863, %v623
    %v865 = vadd.f32 %v864, %v626
    %v866 = vadd.f32 %v865, %v631
    %v867 = vadd.f32 %v866, %v634
    %v868 = vadd.f32 %v867, %v639
    %v869 = vadd.f32 %v868, %v642
    %v870 = vadd.f32 %v869, %v647
    %v871 = vadd.f32 %v870, %v650
    %v872 = vadd.f32 %v871, %v655
    %v873 = vadd.f32 %v872, %v658
    %v874 = vadd.f32 %v873, %v663
    %v875 = vadd.f32 %v874, %v666
    %v876 = vadd.f32 %v875, %v671
    %v877 = vadd.f32 %v876, %v674
    %v878 = vadd.f32 %v877, %v679
    %v879 = vadd.f32 %v878, %v682
    %v880 = vadd.f32 %v879, %v687
    %v881 = vadd.f32 %v880, %v690
    %v882 = vadd.f32 %v881, %v695
    %v883 = vadd.f32 %v882, %v698
    %v884 = vadd.f32 %v883, %v703
    %v885 = vadd.f32 %v884, %v706
    %v886 = vadd.f32 %v885, %v711
    %v887 = vadd.f32 %v886, %v714
    %v888 = vadd.f32 %v887, %v719
    %v889 = vadd.f32 %v888, %v722
    %v890 = vadd.f32 %v889, %v727
    %v891 = vadd.f32 %v890, %v730
    %v892 = vadd.f32 %v891, %v735
    %v893 = vadd.f32 %v892, %v738
    %v894 = vadd.f32 %v893, %v743
    %v895 = vadd.f32 %v894, %v746
    %v896 = vadd.f32 %v895, %v751
    %v897 = vadd.f32 %v896, %v754
    %v898 = vadd.f32 %v897, %v759
    %v899 = vadd.f32 %v898, %v762
    %v900 = vadd.f32 %v899, %v767
    %v901 = vadd.f32 %v900, %v770
    %v902 = vadd.f32 %v901, %v775
    %v903 = vadd.f32 %v902, %v778
    %v904 = vadd.f32 %v903, %v783
    %v905 = vadd.f32 %v904, %v786
    %v906 = vadd.f32 %v905, %v791
    %v907 = vadd.f32 %v906, %v794
    %v908 = vadd.f32 %v907, %v799
    %v909 = vadd.f32 %v908, %v802
    %v910 = vadd.f32 %v909, %v807
    %v911 = vadd.f32 %v910, %v810
    %v912 = vadd.f32 %v911, %v815
    %v913 = vadd.f32 %v912, %v818
    %v914 = vadd.f32 %v913, %v823
    %v915 = vadd.f32 %v914, %v826
    %v916 = vadd.f32 %v915, %v831
    %v917 = vadd.f32 %v916, %v834
    %v918 = vadd.f32 %v917, %v839
    %v919 = vadd.f32 %v918, %v842
    %v920 = vadd.f32 %v919, %v847
    %v921 = vadd.f32 %v920, %v850
    %v922 = vadd.f32 %v921, %v855
    %v923 = vadd.f32 %v922, %v858
    %v924 = vrot.slane %v923, 4
    %v925 = vadd.f32 %v923, %v924
    %v926 = vrot.slane %v925, 2
    %v927 = vadd.f32 %v925, %v926
    %v928 = vrot.slane %v927, 1
    %v929 = vadd.f32 %v927, %v928
    %v930 = vmul.f32 %v607, %v607
    %v931 = vmul.f32 %v610, %v610
    %v932 = vmul.f32 %v615, %v615
    %v933 = vmul.f32 %v618, %v618
    %v934 = vmul.f32 %v623, %v623
    %v935 = vmul.f32 %v626, %v626
    %v936 = vmul.f32 %v631, %v631
    %v937 = vmul.f32 %v634, %v634
    %v938 = vmul.f32 %v639, %v639
    %v939 = vmul.f32 %v642, %v642
    %v940 = vmul.f32 %v647, %v647
    %v941 = vmul.f32 %v650, %v650
    %v942 = vmul.f32 %v655, %v655
    %v943 = vmul.f32 %v658, %v658
    %v944 = vmul.f32 %v663, %v663
    %v945 = vmul.f32 %v666, %v666
    %v946 = vmul.f32 %v671, %v671
    %v947 = vmul.f32 %v674, %v674
    %v948 = vmul.f32 %v679, %v679
    %v949 = vmul.f32 %v682, %v682
    %v950 = vmul.f32 %v687, %v687
    %v951 = vmul.f32 %v690, %v690
    %v952 = vmul.f32 %v695, %v695
    %v953 = vmul.f32 %v698, %v698
    %v954 = vmul.f32 %v703, %v703
    %v955 = vmul.f32 %v706, %v706
    %v956 = vmul.f32 %v711, %v711
    %v957 = vmul.f32 %v714, %v714
    %v958 = vmul.f32 %v719, %v719
    %v959 = vmul.f32 %v722, %v722
    %v960 = vmul.f32 %v727, %v727
    %v961 = vmul.f32 %v730, %v730
    %v962 = vmul.f32 %v735, %v735
    %v963 = vmul.f32 %v738, %v738
    %v964 = vmul.f32 %v743, %v743
    %v965 = vmul.f32 %v746, %v746
    %v966 = vmul.f32 %v751, %v751
    %v967 = vmul.f32 %v754, %v754
    %v968 = vmul.f32 %v759, %v759
    %v969 = vmul.f32 %v762, %v762
    %v970 = vmul.f32 %v767, %v767
    %v971 = vmul.f32 %v770, %v770
    %v972 = vmul.f32 %v775, %v775
    %v973 = vmul.f32 %v778, %v778
    %v974 = vmul.f32 %v783, %v783
    %v975 = vmul.f32 %v786, %v786
    %v976 = vmul.f32 %v791, %v791
    %v977 = vmul.f32 %v794, %v794
    %v978 = vmul.f32 %v799, %v799
    %v979 = vmul.f32 %v802, %v802
    %v980 = vmul.f32 %v807, %v807
    %v981 = vmul.f32 %v810, %v810
    %v982 = vmul.f32 %v815, %v815
    %v983 = vmul.f32 %v818, %v818
    %v984 = vmul.f32 %v823, %v823
    %v985 = vmul.f32 %v826, %v826
    %v986 = vmul.f32 %v831, %v831
    %v987 = vmul.f32 %v834, %v834
    %v988 = vmul.f32 %v839, %v839
    %v989 = vmul.f32 %v842, %v842
    %v990 = vmul.f32 %v847, %v847
    %v991 = vmul.f32 %v850, %v850
    %v992 = vmul.f32 %v855, %v855
    %v993 = vmul.f32 %v858, %v858
    %v994 = vadd.f32 %v930, %v931
    %v995 = vadd.f32 %v994, %v932
    %v996 = vadd.f32 %v995, %v933
    %v997 = vadd.f32 %v996, %v934
    %v998 = vadd.f32 %v997, %v935
    %v999 = vadd.f32 %v998, %v936
    %v1000 = vadd.f32 %v999, %v937
    %v1001 = vadd.f32 %v1000, %v938
    %v1002 = vadd.f32 %v1001, %v939
    %v1003 = vadd.f32 %v1002, %v940
    %v1004 = vadd.f32 %v1003, %v941
    %v1005 = vadd.f32 %v1004, %v942
    %v1006 = vadd.f32 %v1005, %v943
    %v1007 = vadd.f32 %v1006, %v944
    %v1008 = vadd.f32 %v1007, %v945
    %v1009 = vadd.f32 %v1008, %v946
    %v1010 = vadd.f32 %v1009, %v947
    %v1011 = vadd.f32 %v1010, %v948
    %v1012 = vadd.f32 %v1011, %v949
    %v1013 = vadd.f32 %v1012, %v950
    %v1014 = vadd.f32 %v1013, %v951
    %v1015 = vadd.f32 %v1014, %v952
    %v1016 = vadd.f32 %v1015, %v953
    %v1017 = vadd.f32 %v1016, %v954
    %v1018 = vadd.f32 %v1017, %v955
    %v1019 = vadd.f32 %v1018, %v956
    %v1020 = vadd.f32 %v1019, %v957
    %v1021 = vadd.f32 %v1020, %v958
    %v1022 = vadd.f32 %v1021, %v959
    %v1023 = vadd.f32 %v1022, %v960
    %v1024 = vadd.f32 %v1023, %v961
    %v1025 = vadd.f32 %v1024, %v962
    %v1026 = vadd.f32 %v1025, %v963
    %v1027 = vadd.f32 %v1026, %v964
    %v1028 = vadd.f32 %v1027, %v965
    %v1029 = vadd.f32 %v1028, %v966
    %v1030 = vadd.f32 %v1029, %v967
    %v1031 = vadd.f32 %v1030, %v968
    %v1032 = vadd.f32 %v1031, %v969
    %v1033 = vadd.f32 %v1032, %v970
    %v1034 = vadd.f32 %v1033, %v971
    %v1035 = vadd.f32 %v1034, %v972
    %v1036 = vadd.f32 %v1035, %v973
    %v1037 = vadd.f32 %v1036, %v974
    %v1038 = vadd.f32 %v1037, %v975
    %v1039 = vadd.f32 %v1038, %v976
    %v1040 = vadd.f32 %v1039, %v977
    %v1041 = vadd.f32 %v1040, %v978
    %v1042 = vadd.f32 %v1041, %v979
    %v1043 = vadd.f32 %v1042, %v980
    %v1044 = vadd.f32 %v1043, %v981
    %v1045 = vadd.f32 %v1044, %v982
    %v1046 = vadd.f32 %v1045, %v983
    %v1047 = vadd.f32 %v1046, %v984
    %v1048 = vadd.f32 %v1047, %v985
    %v1049 = vadd.f32 %v1048, %v986
    %v1050 = vadd.f32 %v1049, %v987
    %v1051 = vadd.f32 %v1050, %v988
    %v1052 = vadd.f32 %v1051, %v989
    %v1053 = vadd.f32 %v1052, %v990
    %v1054 = vadd.f32 %v1053, %v991
    %v1055 = vadd.f32 %v1054, %v992
    %v1056 = vadd.f32 %v1055, %v993
    %v1057 = vrot.slane %v1056, 4
    %v1058 = vadd.f32 %v1056, %v1057
    %v1059 = vrot.slane %v1058, 2
    %v1060 = vadd.f32 %v1058, %v1059
    %v1061 = vrot.slane %v1060, 1
    %v1062 = vadd.f32 %v1060, %v1061
    %vm1063 = vcmask 1040384
    %v1064 = vsel %vm1063, %v929, %v1062
    %vm1065 = vcmask 1041408
    %v1066 = vsel %vm1065, %v1064, 0.0
    %v1067 = vld [vmem:[#allocation4] sm:$0xff]
    %v1068 = vld [vmem:[#allocation4 + $0x8] sm:$0xff]
    %v1069 = vld [vmem:[#allocation4 + $0x10] sm:$0xff]
    %v1070 = vld [vmem:[#allocation4 + $0x18] sm:$0xff]
    %v1071 = vld [vmem:[#allocation4 + $0x20] sm:$0xff]
    %v1072 = vld [vmem:[#allocation4 + $0x28] sm:$0xff]
    %v1073 = vld [vmem:[#allocation4 + $0x30] sm:$0xff]
    %v1074 = vld [vmem:[#allocation4 + $0x38] sm:$0xff]
    %v1075 = vld [vmem:[#allocation4 + $0x40] sm:$0xff]
    %v1076 = vld [vmem:[#allocation4 + $0x48] sm:$0xff]
    %v1077 = vld [vmem:[#allocation4 + $0x50] sm:$0xff]
    %v1078 = vld [vmem:[#allocation4 + $0x58] sm:$0xff]
    %v1079 = vld [vmem:[#allocation4 + $0x60] sm:$0xff]
    %v1080 = vld [vmem:[#allocation4 + $0x68] sm:$0xff]
    %v1081 = vld [vmem:[#allocation4 + $0x70] sm:$0xff]
    %v1082 = vld [vmem:[#allocation4 + $0x78] sm:$0xff]
    %1083 = vmatprep.subr.mxu0 0.0
    %1084 = vmatpush1.msra.mxu0 %v1067
    %1085 = vmatprep.subr.mxu0 0.0
    %1086 = vmatpush1.msra.mxu0 %v1068
    %1087 = vmatprep.subr.mxu0 0.0
    %1088 = vmatpush1.msra.mxu0 %v1069
    %1089 = vmatprep.subr.mxu0 0.0
    %1090 = vmatpush1.msra.mxu0 %v1070
    %1091 = vmatprep.subr.mxu0 0.0
    %1092 = vmatpush1.msra.mxu0 %v1071
    %1093 = vmatprep.subr.mxu0 0.0
    %1094 = vmatpush1.msra.mxu0 %v1072
    %1095 = vmatprep.subr.mxu0 0.0
    %1096 = vmatpush1.msra.mxu0 %v1073
    %1097 = vmatprep.subr.mxu0 0.0
    %1098 = vmatpush1.msra.mxu0 %v1074
    %1099 = vmatprep.subr.mxu0 0.0
    %1100 = vmatpush1.msra.mxu0 %v1075
    %1101 = vmatprep.subr.mxu0 0.0
    %1102 = vmatpush1.msra.mxu0 %v1076
    %1103 = vmatprep.subr.mxu0 0.0
    %1104 = vmatpush1.msra.mxu0 %v1077
    %1105 = vmatprep.subr.mxu0 0.0
    %1106 = vmatpush1.msra.mxu0 %v1078
    %1107 = vmatprep.subr.mxu0 0.0
    %1108 = vmatpush1.msra.mxu0 %v1079
    %1109 = vmatprep.subr.mxu0 0.0
    %1110 = vmatpush1.msra.mxu0 %v1080
    %1111 = vmatprep.subr.mxu0 0.0
    %1112 = vmatpush1.msra.mxu0 %v1081
    %1113 = vmatprep.subr.mxu0 0.0
    %1114 = vmatpush1.msra.mxu0 %v1082
    %1115 = vmatprep.subr.mxu0 0.0
    %1116 = vmatpush1.msra.mxu0 0.0
    %1117 = vmatprep.subr.mxu0 0.0
    %1118 = vmatpush1.msra.mxu0 0.0
    %1119 = vmatprep.subr.mxu0 0.0
    %1120 = vmatpush1.msra.mxu0 0.0
    %1121 = vmatprep.subr.mxu0 0.0
    %1122 = vmatpush1.msra.mxu0 0.0
    %1123 = vmatprep.subr.mxu0 0.0
    %1124 = vmatpush1.msra.mxu0 0.0
    %1125 = vmatprep.subr.mxu0 0.0
    %1126 = vmatpush1.msra.mxu0 0.0
    %1127 = vmatprep.subr.mxu0 0.0
    %1128 = vmatpush1.msra.mxu0 0.0
    %1129 = vmatprep.subr.mxu0 0.0
    %1130 = vmatpush1.msra.mxu0 0.0
    %1131 = vmatprep.subr.mxu0 0.0
    %1132 = vmatpush1.msra.mxu0 0.0
    %1133 = vmatprep.subr.mxu0 0.0
    %1134 = vmatpush1.msra.mxu0 0.0
    %1135 = vmatprep.subr.mxu0 0.0
    %1136 = vmatpush1.msra.mxu0 0.0
    %1137 = vmatprep.subr.mxu0 0.0
    %1138 = vmatpush1.msra.mxu0 0.0
    %1139 = vmatprep.subr.mxu0 0.0
    %1140 = vmatpush1.msra.mxu0 0.0
    %1141 = vmatprep.subr.mxu0 0.0
    %1142 = vmatpush1.msra.mxu0 0.0
    %1143 = vmatprep.subr.mxu0 0.0
    %1144 = vmatpush1.msra.mxu0 0.0
    %1145 = vmatprep.subr.mxu0 0.0
    %1146 = vmatpush1.msra.mxu0 0.0
    %1147 = vmatprep.mubr.f32.mxu0 0.0
    %1148 = vmatmul.mubr.f32.gmra.mrb[0].mxu0 %v1066
    %v1149 = vpop.f32.mrb[0].mxu0
    %v1150 = vadd.f32 0.0, %v1149
    %v1151 = vpop.f32.mrb[0].mxu0
    %1152 = vdwg.mxu0
    %v1153 = vmul.f32 %v1150, 0.00048828125
    %v1154 = vmul.f32 %v1153, %v1153
    %v1156 = vrot.slane %v1154, 7
    %v1158 = vsub.f32 %v1153, %v1156
    %v1159 = vmax.f32 %v1158, 0.0
    %v1160 = vlaneseq
    %v1161 = vshrl.u32 %v1160, 7
    %v1162 = vsub.s32 0, %v1161
    %v1163 = vrot.slane %v1153, %v1162
    %v1164 = vsub.f32 %v607, %v1163
    %v1165 = vsub.f32 %v610, %v1163
    %v1166 = vsub.f32 %v615, %v1163
    %v1167 = vsub.f32 %v618, %v1163
    %v1168 = vsub.f32 %v623, %v1163
    %v1169 = vsub.f32 %v626, %v1163
    %v1170 = vsub.f32 %v631, %v1163
    %v1171 = vsub.f32 %v634, %v1163
    %v1172 = vsub.f32 %v639, %v1163
    %v1173 = vsub.f32 %v642, %v1163
    %v1174 = vsub.f32 %v647, %v1163
    %v1175 = vsub.f32 %v650, %v1163
    %v1176 = vsub.f32 %v655, %v1163
    %v1177 = vsub.f32 %v658, %v1163
    %v1178 = vsub.f32 %v663, %v1163
    %v1179 = vsub.f32 %v666, %v1163
    %v1180 = vsub.f32 %v671, %v1163
    %v1181 = vsub.f32 %v674, %v1163
    %v1182 = vsub.f32 %v679, %v1163
    %v1183 = vsub.f32 %v682, %v1163
    %v1184 = vsub.f32 %v687, %v1163
    %v1185 = vsub.f32 %v690, %v1163
    %v1186 = vsub.f32 %v695, %v1163
    %v1187 = vsub.f32 %v698, %v1163
    %v1188 = vsub.f32 %v703, %v1163
    %v1189 = vsub.f32 %v706, %v1163
    %v1190 = vsub.f32 %v711, %v1163
    %v1191 = vsub.f32 %v714, %v1163
    %v1192 = vsub.f32 %v719, %v1163
    %v1193 = vsub.f32 %v722, %v1163
    %v1194 = vsub.f32 %v727, %v1163
    %v1195 = vsub.f32 %v730, %v1163
    %v1196 = vsub.f32 %v735, %v1163
    %v1197 = vsub.f32 %v738, %v1163
    %v1198 = vsub.f32 %v743, %v1163
    %v1199 = vsub.f32 %v746, %v1163
    %v1200 = vsub.f32 %v751, %v1163
    %v1201 = vsub.f32 %v754, %v1163
    %v1202 = vsub.f32 %v759, %v1163
    %v1203 = vsub.f32 %v762, %v1163
    %v1204 = vsub.f32 %v767, %v1163
    %v1205 = vsub.f32 %v770, %v1163
    %v1206 = vsub.f32 %v775, %v1163
    %v1207 = vsub.f32 %v778, %v1163
    %v1208 = vsub.f32 %v783, %v1163
    %v1209 = vsub.f32 %v786, %v1163
    %v1210 = vsub.f32 %v791, %v1163
    %v1211 = vsub.f32 %v794, %v1163
    %v1212 = vsub.f32 %v799, %v1163
    %v1213 = vsub.f32 %v802, %v1163
    %v1214 = vsub.f32 %v807, %v1163
    %v1215 = vsub.f32 %v810, %v1163
    %v1216 = vsub.f32 %v815, %v1163
    %v1217 = vsub.f32 %v818, %v1163
    %v1218 = vsub.f32 %v823, %v1163
    %v1219 = vsub.f32 %v826, %v1163
    %v1220 = vsub.f32 %v831, %v1163
    %v1221 = vsub.f32 %v834, %v1163
    %v1222 = vsub.f32 %v839, %v1163
    %v1223 = vsub.f32 %v842, %v1163
    %v1224 = vsub.f32 %v847, %v1163
    %v1225 = vsub.f32 %v850, %v1163
    %v1226 = vsub.f32 %v855, %v1163
    %v1227 = vsub.f32 %v858, %v1163
    %v1228 = vadd.f32 %v1159, 1e-05
    %v1229 = vrsqrt.pop %v1228
    %v1230 = vlaneseq
    %v1231 = vshrl.u32 %v1230, 7
    %v1232 = vsub.s32 1, %v1231
    %v1233 = vrot.slane %v1229, %v1232
    %v1234 = vmul.f32 %v1164, %v1233
    %v1235 = vmul.f32 %v1165, %v1233
    %v1236 = vmul.f32 %v1166, %v1233
    %v1237 = vmul.f32 %v1167, %v1233
    %v1238 = vmul.f32 %v1168, %v1233
    %v1239 = vmul.f32 %v1169, %v1233
    %v1240 = vmul.f32 %v1170, %v1233
    %v1241 = vmul.f32 %v1171, %v1233
    %v1242 = vmul.f32 %v1172, %v1233
    %v1243 = vmul.f32 %v1173, %v1233
    %v1244 = vmul.f32 %v1174, %v1233
    %v1245 = vmul.f32 %v1175, %v1233
    %v1246 = vmul.f32 %v1176, %v1233
    %v1247 = vmul.f32 %v1177, %v1233
    %v1248 = vmul.f32 %v1178, %v1233
    %v1249 = vmul.f32 %v1179, %v1233
    %v1250 = vmul.f32 %v1180, %v1233
    %v1251 = vmul.f32 %v1181, %v1233
    %v1252 = vmul.f32 %v1182, %v1233
    %v1253 = vmul.f32 %v1183, %v1233
    %v1254 = vmul.f32 %v1184, %v1233
    %v1255 = vmul.f32 %v1185, %v1233
    %v1256 = vmul.f32 %v1186, %v1233
    %v1257 = vmul.f32 %v1187, %v1233
    %v1258 = vmul.f32 %v1188, %v1233
    %v1259 = vmul.f32 %v1189, %v1233
    %v1260 = vmul.f32 %v1190, %v1233
    %v1261 = vmul.f32 %v1191, %v1233
    %v1262 = vmul.f32 %v1192, %v1233
    %v1263 = vmul.f32 %v1193, %v1233
    %v1264 = vmul.f32 %v1194, %v1233
    %v1265 = vmul.f32 %v1195, %v1233
    %v1266 = vmul.f32 %v1196, %v1233
    %v1267 = vmul.f32 %v1197, %v1233
    %v1268 = vmul.f32 %v1198, %v1233
    %v1269 = vmul.f32 %v1199, %v1233
    %v1270 = vmul.f32 %v1200, %v1233
    %v1271 = vmul.f32 %v1201, %v1233
    %v1272 = vmul.f32 %v1202, %v1233
    %v1273 = vmul.f32 %v1203, %v1233
    %v1274 = vmul.f32 %v1204, %v1233
    %v1275 = vmul.f32 %v1205, %v1233
    %v1276 = vmul.f32 %v1206, %v1233
    %v1277 = vmul.f32 %v1207, %v1233
    %v1278 = vmul.f32 %v1208, %v1233
    %v1279 = vmul.f32 %v1209, %v1233
    %v1280 = vmul.f32 %v1210, %v1233
    %v1281 = vmul.f32 %v1211, %v1233
    %v1282 = vmul.f32 %v1212, %v1233
    %v1283 = vmul.f32 %v1213, %v1233
    %v1284 = vmul.f32 %v1214, %v1233
    %v1285 = vmul.f32 %v1215, %v1233
    %v1286 = vmul.f32 %v1216, %v1233
    %v1287 = vmul.f32 %v1217, %v1233
    %v1288 = vmul.f32 %v1218, %v1233
    %v1289 = vmul.f32 %v1219, %v1233
    %v1290 = vmul.f32 %v1220, %v1233
    %v1291 = vmul.f32 %v1221, %v1233
    %v1292 = vmul.f32 %v1222, %v1233
    %v1293 = vmul.f32 %v1223, %v1233
    %v1294 = vmul.f32 %v1224, %v1233
    %v1295 = vmul.f32 %v1225, %v1233
    %v1296 = vmul.f32 %v1226, %v1233
    %v1297 = vmul.f32 %v1227, %v1233
    %v1298 = vld [vmem:[#allocation6] sm:$0x1]
    %v1300 = vlaneseq
    %v1301 = vshrl.u32 %v1300, 7
    %v1302 = vsub.s32 0, %v1301
    %v1303 = vrot.slane %v1298, %v1302
    %v1305 = vmul.f32 %v1234, %v1303
    %v1306 = vmul.f32 %v1235, %v1303
    %v1307 = vmul.f32 %v1236, %v1303
    %v1308 = vmul.f32 %v1237, %v1303
    %v1309 = vmul.f32 %v1238, %v1303
    %v1310 = vmul.f32 %v1239, %v1303
    %v1311 = vmul.f32 %v1240, %v1303
    %v1312 = vmul.f32 %v1241, %v1303
    %v1313 = vmul.f32 %v1242, %v1303
    %v1314 = vmul.f32 %v1243, %v1303
    %v1315 = vmul.f32 %v1244, %v1303
    %v1316 = vmul.f32 %v1245, %v1303
    %v1317 = vmul.f32 %v1246, %v1303
    %v1318 = vmul.f32 %v1247, %v1303
    %v1319 = vmul.f32 %v1248, %v1303
    %v1320 = vmul.f32 %v1249, %v1303
    %v1321 = vmul.f32 %v1250, %v1303
    %v1322 = vmul.f32 %v1251, %v1303
    %v1323 = vmul.f32 %v1252, %v1303
    %v1324 = vmul.f32 %v1253, %v1303
    %v1325 = vmul.f32 %v1254, %v1303
    %v1326 = vmul.f32 %v1255, %v1303
    %v1327 = vmul.f32 %v1256, %v1303
    %v1328 = vmul.f32 %v1257, %v1303
    %v1329 = vmul.f32 %v1258, %v1303
    %v1330 = vmul.f32 %v1259, %v1303
    %v1331 = vmul.f32 %v1260, %v1303
    %v1332 = vmul.f32 %v1261, %v1303
    %v1333 = vmul.f32 %v1262, %v1303
    %v1334 = vmul.f32 %v1263, %v1303
    %v1335 = vmul.f32 %v1264, %v1303
    %v1336 = vmul.f32 %v1265, %v1303
    %v1337 = vmul.f32 %v1266, %v1303
    %v1338 = vmul.f32 %v1267, %v1303
    %v1339 = vmul.f32 %v1268, %v1303
    %v1340 = vmul.f32 %v1269, %v1303
    %v1341 = vmul.f32 %v1270, %v1303
    %v1342 = vmul.f32 %v1271, %v1303
    %v1343 = vmul.f32 %v1272, %v1303
    %v1344 = vmul.f32 %v1273, %v1303
    %v1345 = vmul.f32 %v1274, %v1303
    %v1346 = vmul.f32 %v1275, %v1303
    %v1347 = vmul.f32 %v1276, %v1303
    %v1348 = vmul.f32 %v1277, %v1303
    %v1349 = vmul.f32 %v1278, %v1303
    %v1350 = vmul.f32 %v1279, %v1303
    %v1351 = vmul.f32 %v1280, %v1303
    %v1352 = vmul.f32 %v1281, %v1303
    %v1353 = vmul.f32 %v1282, %v1303
    %v1354 = vmul.f32 %v1283, %v1303
    %v1355 = vmul.f32 %v1284, %v1303
    %v1356 = vmul.f32 %v1285, %v1303
    %v1357 = vmul.f32 %v1286, %v1303
    %v1358 = vmul.f32 %v1287, %v1303
    %v1359 = vmul.f32 %v1288, %v1303
    %v1360 = vmul.f32 %v1289, %v1303
    %v1361 = vmul.f32 %v1290, %v1303
    %v1362 = vmul.f32 %v1291, %v1303
    %v1363 = vmul.f32 %v1292, %v1303
    %v1364 = vmul.f32 %v1293, %v1303
    %v1365 = vmul.f32 %v1294, %v1303
    %v1366 = vmul.f32 %v1295, %v1303
    %v1367 = vmul.f32 %v1296, %v1303
    %v1368 = vmul.f32 %v1297, %v1303
    %v1369 = vld [vmem:[%s4] sm:$0x1]
    %v1371 = vlaneseq
    %v1372 = vshrl.u32 %v1371, 7
    %v1373 = vsub.s32 0, %v1372
    %v1374 = vrot.slane %v1369, %v1373
    %v1376 = vadd.f32 %v1305, %v1374
    %v1377 = vadd.f32 %v1306, %v1374
    %v1378 = vadd.f32 %v1307, %v1374
    %v1379 = vadd.f32 %v1308, %v1374
    %v1380 = vadd.f32 %v1309, %v1374
    %v1381 = vadd.f32 %v1310, %v1374
    %v1382 = vadd.f32 %v1311, %v1374
    %v1383 = vadd.f32 %v1312, %v1374
    %v1384 = vadd.f32 %v1313, %v1374
    %v1385 = vadd.f32 %v1314, %v1374
    %v1386 = vadd.f32 %v1315, %v1374
    %v1387 = vadd.f32 %v1316, %v1374
    %v1388 = vadd.f32 %v1317, %v1374
    %v1389 = vadd.f32 %v1318, %v1374
    %v1390 = vadd.f32 %v1319, %v1374
    %v1391 = vadd.f32 %v1320, %v1374
    %v1392 = vadd.f32 %v1321, %v1374
    %v1393 = vadd.f32 %v1322, %v1374
    %v1394 = vadd.f32 %v1323, %v1374
    %v1395 = vadd.f32 %v1324, %v1374
    %v1396 = vadd.f32 %v1325, %v1374
    %v1397 = vadd.f32 %v1326, %v1374
    %v1398 = vadd.f32 %v1327, %v1374
    %v1399 = vadd.f32 %v1328, %v1374
    %v1400 = vadd.f32 %v1329, %v1374
    %v1401 = vadd.f32 %v1330, %v1374
    %v1402 = vadd.f32 %v1331, %v1374
    %v1403 = vadd.f32 %v1332, %v1374
    %v1404 = vadd.f32 %v1333, %v1374
    %v1405 = vadd.f32 %v1334, %v1374
    %v1406 = vadd.f32 %v1335, %v1374
    %v1407 = vadd.f32 %v1336, %v1374
    %v1408 = vadd.f32 %v1337, %v1374
    %v1409 = vadd.f32 %v1338, %v1374
    %v1410 = vadd.f32 %v1339, %v1374
    %v1411 = vadd.f32 %v1340, %v1374
    %v1412 = vadd.f32 %v1341, %v1374
    %v1413 = vadd.f32 %v1342, %v1374
    %v1414 = vadd.f32 %v1343, %v1374
    %v1415 = vadd.f32 %v1344, %v1374
    %v1416 = vadd.f32 %v1345, %v1374
    %v1417 = vadd.f32 %v1346, %v1374
    %v1418 = vadd.f32 %v1347, %v1374
    %v1419 = vadd.f32 %v1348, %v1374
    %v1420 = vadd.f32 %v1349, %v1374
    %v1421 = vadd.f32 %v1350, %v1374
    %v1422 = vadd.f32 %v1351, %v1374
    %v1423 = vadd.f32 %v1352, %v1374
    %v1424 = vadd.f32 %v1353, %v1374
    %v1425 = vadd.f32 %v1354, %v1374
    %v1426 = vadd.f32 %v1355, %v1374
    %v1427 = vadd.f32 %v1356, %v1374
    %v1428 = vadd.f32 %v1357, %v1374
    %v1429 = vadd.f32 %v1358, %v1374
    %v1430 = vadd.f32 %v1359, %v1374
    %v1431 = vadd.f32 %v1360, %v1374
    %v1432 = vadd.f32 %v1361, %v1374
    %v1433 = vadd.f32 %v1362, %v1374
    %v1434 = vadd.f32 %v1363, %v1374
    %v1435 = vadd.f32 %v1364, %v1374
    %v1436 = vadd.f32 %v1365, %v1374
    %v1437 = vadd.f32 %v1366, %v1374
    %v1438 = vadd.f32 %v1367, %v1374
    %v1439 = vadd.f32 %v1368, %v1374
    %v1440 = vmax.f32 %v1376, 0.0
    %v1441 = vmax.f32 %v1377, 0.0
    %v1442 = vmax.f32 %v1378, 0.0
    %v1443 = vmax.f32 %v1379, 0.0
    %v1444 = vmax.f32 %v1380, 0.0
    %v1445 = vmax.f32 %v1381, 0.0
    %v1446 = vmax.f32 %v1382, 0.0
    %v1447 = vmax.f32 %v1383, 0.0
    %v1448 = vmax.f32 %v1384, 0.0
    %v1449 = vmax.f32 %v1385, 0.0
    %v1450 = vmax.f32 %v1386, 0.0
    %v1451 = vmax.f32 %v1387, 0.0
    %v1452 = vmax.f32 %v1388, 0.0
    %v1453 = vmax.f32 %v1389, 0.0
    %v1454 = vmax.f32 %v1390, 0.0
    %v1455 = vmax.f32 %v1391, 0.0
    %v1456 = vmax.f32 %v1392, 0.0
    %v1457 = vmax.f32 %v1393, 0.0
    %v1458 = vmax.f32 %v1394, 0.0
    %v1459 = vmax.f32 %v1395, 0.0
    %v1460 = vmax.f32 %v1396, 0.0
    %v1461 = vmax.f32 %v1397, 0.0
    %v1462 = vmax.f32 %v1398, 0.0
    %v1463 = vmax.f32 %v1399, 0.0
    %v1464 = vmax.f32 %v1400, 0.0
    %v1465 = vmax.f32 %v1401, 0.0
    %v1466 = vmax.f32 %v1402, 0.0
    %v1467 = vmax.f32 %v1403, 0.0
    %v1468 = vmax.f32 %v1404, 0.0
    %v1469 = vmax.f32 %v1405, 0.0
    %v1470 = vmax.f32 %v1406, 0.0
    %v1471 = vmax.f32 %v1407, 0.0
    %v1472 = vmax.f32 %v1408, 0.0
    %v1473 = vmax.f32 %v1409, 0.0
    %v1474 = vmax.f32 %v1410, 0.0
    %v1475 = vmax.f32 %v1411, 0.0
    %v1476 = vmax.f32 %v1412, 0.0
    %v1477 = vmax.f32 %v1413, 0.0
    %v1478 = vmax.f32 %v1414, 0.0
    %v1479 = vmax.f32 %v1415, 0.0
    %v1480 = vmax.f32 %v1416, 0.0
    %v1481 = vmax.f32 %v1417, 0.0
    %v1482 = vmax.f32 %v1418, 0.0
    %v1483 = vmax.f32 %v1419, 0.0
    %v1484 = vmax.f32 %v1420, 0.0
    %v1485 = vmax.f32 %v1421, 0.0
    %v1486 = vmax.f32 %v1422, 0.0
    %v1487 = vmax.f32 %v1423, 0.0
    %v1488 = vmax.f32 %v1424, 0.0
    %v1489 = vmax.f32 %v1425, 0.0
    %v1490 = vmax.f32 %v1426, 0.0
    %v1491 = vmax.f32 %v1427, 0.0
    %v1492 = vmax.f32 %v1428, 0.0
    %v1493 = vmax.f32 %v1429, 0.0
    %v1494 = vmax.f32 %v1430, 0.0
    %v1495 = vmax.f32 %v1431, 0.0
    %v1496 = vmax.f32 %v1432, 0.0
    %v1497 = vmax.f32 %v1433, 0.0
    %v1498 = vmax.f32 %v1434, 0.0
    %v1499 = vmax.f32 %v1435, 0.0
    %v1500 = vmax.f32 %v1436, 0.0
    %v1501 = vmax.f32 %v1437, 0.0
    %v1502 = vmax.f32 %v1438, 0.0
    %v1503 = vmax.f32 %v1439, 0.0
    %v1504 = vpack.c.bf16 %v1441, %v1440
    %v1505 = vpack.c.bf16 %v1443, %v1442
    %v1506 = vpack.c.bf16 %v1445, %v1444
    %v1507 = vpack.c.bf16 %v1447, %v1446
    %v1508 = vpack.c.bf16 %v1449, %v1448
    %v1509 = vpack.c.bf16 %v1451, %v1450
    %v1510 = vpack.c.bf16 %v1453, %v1452
    %v1511 = vpack.c.bf16 %v1455, %v1454
    %v1512 = vpack.c.bf16 %v1457, %v1456
    %v1513 = vpack.c.bf16 %v1459, %v1458
    %v1514 = vpack.c.bf16 %v1461, %v1460
    %v1515 = vpack.c.bf16 %v1463, %v1462
    %v1516 = vpack.c.bf16 %v1465, %v1464
    %v1517 = vpack.c.bf16 %v1467, %v1466
    %v1518 = vpack.c.bf16 %v1469, %v1468
    %v1519 = vpack.c.bf16 %v1471, %v1470
    %v1520 = vpack.c.bf16 %v1473, %v1472
    %v1521 = vpack.c.bf16 %v1475, %v1474
    %v1522 = vpack.c.bf16 %v1477, %v1476
    %v1523 = vpack.c.bf16 %v1479, %v1478
    %v1524 = vpack.c.bf16 %v1481, %v1480
    %v1525 = vpack.c.bf16 %v1483, %v1482
    %v1526 = vpack.c.bf16 %v1485, %v1484
    %v1527 = vpack.c.bf16 %v1487, %v1486
    %v1528 = vpack.c.bf16 %v1489, %v1488
    %v1529 = vpack.c.bf16 %v1491, %v1490
    %v1530 = vpack.c.bf16 %v1493, %v1492
    %v1531 = vpack.c.bf16 %v1495, %v1494
    %v1532 = vpack.c.bf16 %v1497, %v1496
    %v1533 = vpack.c.bf16 %v1499, %v1498
    %v1534 = vpack.c.bf16 %v1501, %v1500
    %v1535 = vpack.c.bf16 %v1503, %v1502
    %v1568 = vunpack.c.l.b16 %v1504
    %v1569 = vunpack.c.h.b16 %v1504
    %v1570 = vunpack.c.l.b16 %v1505
    %v1571 = vunpack.c.h.b16 %v1505
    %v1572 = vunpack.c.l.b16 %v1506
    %v1573 = vunpack.c.h.b16 %v1506
    %v1574 = vunpack.c.l.b16 %v1507
    %v1575 = vunpack.c.h.b16 %v1507
    %v1576 = vunpack.c.l.b16 %v1508
    %v1577 = vunpack.c.h.b16 %v1508
    %v1578 = vunpack.c.l.b16 %v1509
    %v1579 = vunpack.c.h.b16 %v1509
    %v1580 = vunpack.c.l.b16 %v1510
    %v1581 = vunpack.c.h.b16 %v1510
    %v1582 = vunpack.c.l.b16 %v1511
    %v1583 = vunpack.c.h.b16 %v1511
    %v1584 = vunpack.c.l.b16 %v1512
    %v1585 = vunpack.c.h.b16 %v1512
    %v1586 = vunpack.c.l.b16 %v1513
    %v1587 = vunpack.c.h.b16 %v1513
    %v1588 = vunpack.c.l.b16 %v1514
    %v1589 = vunpack.c.h.b16 %v1514
    %v1590 = vunpack.c.l.b16 %v1515
    %v1591 = vunpack.c.h.b16 %v1515
    %v1592 = vunpack.c.l.b16 %v1516
    %v1593 = vunpack.c.h.b16 %v1516
    %v1594 = vunpack.c.l.b16 %v1517
    %v1595 = vunpack.c.h.b16 %v1517
    %v1596 = vunpack.c.l.b16 %v1518
    %v1597 = vunpack.c.h.b16 %v1518
    %v1598 = vunpack.c.l.b16 %v1519
    %v1599 = vunpack.c.h.b16 %v1519
    %v1600 = vunpack.c.l.b16 %v1520
    %v1601 = vunpack.c.h.b16 %v1520
    %v1602 = vunpack.c.l.b16 %v1521
    %v1603 = vunpack.c.h.b16 %v1521
    %v1604 = vunpack.c.l.b16 %v1522
    %v1605 = vunpack.c.h.b16 %v1522
    %v1606 = vunpack.c.l.b16 %v1523
    %v1607 = vunpack.c.h.b16 %v1523
    %v1608 = vunpack.c.l.b16 %v1524
    %v1609 = vunpack.c.h.b16 %v1524
    %v1610 = vunpack.c.l.b16 %v1525
    %v1611 = vunpack.c.h.b16 %v1525
    %v1612 = vunpack.c.l.b16 %v1526
    %v1613 = vunpack.c.h.b16 %v1526
    %v1614 = vunpack.c.l.b16 %v1527
    %v1615 = vunpack.c.h.b16 %v1527
    %v1616 = vunpack.c.l.b16 %v1528
    %v1617 = vunpack.c.h.b16 %v1528
    %v1618 = vunpack.c.l.b16 %v1529
    %v1619 = vunpack.c.h.b16 %v1529
    %v1620 = vunpack.c.l.b16 %v1530
    %v1621 = vunpack.c.h.b16 %v1530
    %v1622 = vunpack.c.l.b16 %v1531
    %v1623 = vunpack.c.h.b16 %v1531
    %v1624 = vunpack.c.l.b16 %v1532
    %v1625 = vunpack.c.h.b16 %v1532
    %v1626 = vunpack.c.l.b16 %v1533
    %v1627 = vunpack.c.h.b16 %v1533
    %v1628 = vunpack.c.l.b16 %v1534
    %v1629 = vunpack.c.h.b16 %v1534
    %v1630 = vunpack.c.l.b16 %v1535
    %v1631 = vunpack.c.h.b16 %v1535
    %v1632 = vpack.c.b16 %v1568, %v1568
    %v1633 = vpack.c.b16 %v1569, %v1569
    %v1634 = vpack.c.b16 %v1570, %v1570
    %v1635 = vpack.c.b16 %v1571, %v1571
    %v1636 = vpack.c.b16 %v1572, %v1572
    %v1637 = vpack.c.b16 %v1573, %v1573
    %v1638 = vpack.c.b16 %v1574, %v1574
    %v1639 = vpack.c.b16 %v1575, %v1575
    %v1640 = vpack.c.b16 %v1576, %v1576
    %v1641 = vpack.c.b16 %v1577, %v1577
    %v1642 = vpack.c.b16 %v1578, %v1578
    %v1643 = vpack.c.b16 %v1579, %v1579
    %v1644 = vpack.c.b16 %v1580, %v1580
    %v1645 = vpack.c.b16 %v1581, %v1581
    %v1646 = vpack.c.b16 %v1582, %v1582
    %v1647 = vpack.c.b16 %v1583, %v1583
    %v1648 = vpack.c.b16 %v1584, %v1584
    %v1649 = vpack.c.b16 %v1585, %v1585
    %v1650 = vpack.c.b16 %v1586, %v1586
    %v1651 = vpack.c.b16 %v1587, %v1587
    %v1652 = vpack.c.b16 %v1588, %v1588
    %v1653 = vpack.c.b16 %v1589, %v1589
    %v1654 = vpack.c.b16 %v1590, %v1590
    %v1655 = vpack.c.b16 %v1591, %v1591
    %v1656 = vpack.c.b16 %v1592, %v1592
    %v1657 = vpack.c.b16 %v1593, %v1593
    %v1658 = vpack.c.b16 %v1594, %v1594
    %v1659 = vpack.c.b16 %v1595, %v1595
    %v1660 = vpack.c.b16 %v1596, %v1596
    %v1661 = vpack.c.b16 %v1597, %v1597
    %v1662 = vpack.c.b16 %v1598, %v1598
    %v1663 = vpack.c.b16 %v1599, %v1599
    %v1664 = vpack.c.b16 %v1600, %v1600
    %v1665 = vpack.c.b16 %v1601, %v1601
    %v1666 = vpack.c.b16 %v1602, %v1602
    %v1667 = vpack.c.b16 %v1603, %v1603
    %v1668 = vpack.c.b16 %v1604, %v1604
    %v1669 = vpack.c.b16 %v1605, %v1605
    %v1670 = vpack.c.b16 %v1606, %v1606
    %v1671 = vpack.c.b16 %v1607, %v1607
    %v1672 = vpack.c.b16 %v1608, %v1608
    %v1673 = vpack.c.b16 %v1609, %v1609
    %v1674 = vpack.c.b16 %v1610, %v1610
    %v1675 = vpack.c.b16 %v1611, %v1611
    %v1676 = vpack.c.b16 %v1612, %v1612
    %v1677 = vpack.c.b16 %v1613, %v1613
    %v1678 = vpack.c.b16 %v1614, %v1614
    %v1679 = vpack.c.b16 %v1615, %v1615
    %v1680 = vpack.c.b16 %v1616, %v1616
    %v1681 = vpack.c.b16 %v1617, %v1617
    %v1682 = vpack.c.b16 %v1618, %v1618
    %v1683 = vpack.c.b16 %v1619, %v1619
    %v1684 = vpack.c.b16 %v1620, %v1620
    %v1685 = vpack.c.b16 %v1621, %v1621
    %v1686 = vpack.c.b16 %v1622, %v1622
    %v1687 = vpack.c.b16 %v1623, %v1623
    %v1688 = vpack.c.b16 %v1624, %v1624
    %v1689 = vpack.c.b16 %v1625, %v1625
    %v1690 = vpack.c.b16 %v1626, %v1626
    %v1691 = vpack.c.b16 %v1627, %v1627
    %v1692 = vpack.c.b16 %v1628, %v1628
    %v1693 = vpack.c.b16 %v1629, %v1629
    %v1694 = vpack.c.b16 %v1630, %v1630
    %v1695 = vpack.c.b16 %v1631, %v1631
    %1760 = vst [vmem:[%s5] sm:$0xf] %v1632
    %1761 = vst [vmem:[%s5 + $0x4] sm:$0xf] %v1633
    %1762 = vst [vmem:[%s5 + $0x8] sm:$0xf] %v1634
    %1763 = vst [vmem:[%s5 + $0xc] sm:$0xf] %v1635
    %1764 = vst [vmem:[%s5 + $0x10] sm:$0xf] %v1636
    %1765 = vst [vmem:[%s5 + $0x14] sm:$0xf] %v1637
    %1766 = vst [vmem:[%s5 + $0x18] sm:$0xf] %v1638
    %1767 = vst [vmem:[%s5 + $0x1c] sm:$0xf] %v1639
    %1768 = vst [vmem:[%s5 + $0x20] sm:$0xf] %v1640
    %1769 = vst [vmem:[%s5 + $0x24] sm:$0xf] %v1641
    %1770 = vst [vmem:[%s5 + $0x28] sm:$0xf] %v1642
    %1771 = vst [vmem:[%s5 + $0x2c] sm:$0xf] %v1643
    %1772 = vst [vmem:[%s5 + $0x30] sm:$0xf] %v1644
    %1773 = vst [vmem:[%s5 + $0x34] sm:$0xf] %v1645
    %1774 = vst [vmem:[%s5 + $0x38] sm:$0xf] %v1646
    %1775 = vst [vmem:[%s5 + $0x3c] sm:$0xf] %v1647
    %1776 = vst [vmem:[%s5 + $0x40] sm:$0xf] %v1648
    %1777 = vst [vmem:[%s5 + $0x44] sm:$0xf] %v1649
    %1778 = vst [vmem:[%s5 + $0x48] sm:$0xf] %v1650
    %1779 = vst [vmem:[%s5 + $0x4c] sm:$0xf] %v1651
    %1780 = vst [vmem:[%s5 + $0x50] sm:$0xf] %v1652
    %1781 = vst [vmem:[%s5 + $0x54] sm:$0xf] %v1653
    %1782 = vst [vmem:[%s5 + $0x58] sm:$0xf] %v1654
    %1783 = vst [vmem:[%s5 + $0x5c] sm:$0xf] %v1655
    %1784 = vst [vmem:[%s5 + $0x60] sm:$0xf] %v1656
    %1785 = vst [vmem:[%s5 + $0x64] sm:$0xf] %v1657
    %1786 = vst [vmem:[%s5 + $0x68] sm:$0xf] %v1658
    %1787 = vst [vmem:[%s5 + $0x6c] sm:$0xf] %v1659
    %1788 = vst [vmem:[%s5 + $0x70] sm:$0xf] %v1660
    %1789 = vst [vmem:[%s5 + $0x74] sm:$0xf] %v1661
    %1790 = vst [vmem:[%s5 + $0x78] sm:$0xf] %v1662
    %1791 = vst [vmem:[%s5 + $0x7c] sm:$0xf] %v1663
    %1792 = vst [vmem:[%s5 + $0x80] sm:$0xf] %v1664
    %1793 = vst [vmem:[%s5 + $0x84] sm:$0xf] %v1665
    %1794 = vst [vmem:[%s5 + $0x88] sm:$0xf] %v1666
    %1795 = vst [vmem:[%s5 + $0x8c] sm:$0xf] %v1667
    %1796 = vst [vmem:[%s5 + $0x90] sm:$0xf] %v1668
    %1797 = vst [vmem:[%s5 + $0x94] sm:$0xf] %v1669
    %1798 = vst [vmem:[%s5 + $0x98] sm:$0xf] %v1670
    %1799 = vst [vmem:[%s5 + $0x9c] sm:$0xf] %v1671
    %1800 = vst [vmem:[%s5 + $0xa0] sm:$0xf] %v1672
    %1801 = vst [vmem:[%s5 + $0xa4] sm:$0xf] %v1673
    %1802 = vst [vmem:[%s5 + $0xa8] sm:$0xf] %v1674
    %1803 = vst [vmem:[%s5 + $0xac] sm:$0xf] %v1675
    %1804 = vst [vmem:[%s5 + $0xb0] sm:$0xf] %v1676
    %1805 = vst [vmem:[%s5 + $0xb4] sm:$0xf] %v1677
    %1806 = vst [vmem:[%s5 + $0xb8] sm:$0xf] %v1678
    %1807 = vst [vmem:[%s5 + $0xbc] sm:$0xf] %v1679
    %1808 = vst [vmem:[%s5 + $0xc0] sm:$0xf] %v1680
    %1809 = vst [vmem:[%s5 + $0xc4] sm:$0xf] %v1681
    %1810 = vst [vmem:[%s5 + $0xc8] sm:$0xf] %v1682
    %1811 = vst [vmem:[%s5 + $0xcc] sm:$0xf] %v1683
    %1812 = vst [vmem:[%s5 + $0xd0] sm:$0xf] %v1684
    %1813 = vst [vmem:[%s5 + $0xd4] sm:$0xf] %v1685
    %1814 = vst [vmem:[%s5 + $0xd8] sm:$0xf] %v1686
    %1815 = vst [vmem:[%s5 + $0xdc] sm:$0xf] %v1687
    %1816 = vst [vmem:[%s5 + $0xe0] sm:$0xf] %v1688
    %1817 = vst [vmem:[%s5 + $0xe4] sm:$0xf] %v1689
    %1818 = vst [vmem:[%s5 + $0xe8] sm:$0xf] %v1690
    %1819 = vst [vmem:[%s5 + $0xec] sm:$0xf] %v1691
    %1820 = vst [vmem:[%s5 + $0xf0] sm:$0xf] %v1692
    %1821 = vst [vmem:[%s5 + $0xf4] sm:$0xf] %v1693
    %1822 = vst [vmem:[%s5 + $0xf8] sm:$0xf] %v1694
    %1823 = vst [vmem:[%s5 + $0xfc] sm:$0xf] %v1695
    // Predicated region
    $region34: #{_lambda_.8} parent=1 // pred_check
      _
    $region35: #{_lambda_.8} parent=1 // pred_check_branch
      %1825 = sbr.rel (0) target = $region37
    $region36: #{_lambda_.8} parent=1 // pred_region
      _
    $region37: #{_lambda_.8} parent=1 // pred_fallthru
      _
    // Predicated region
    $region38: #{_lambda_.8} parent=1 // pred_check
      _
    $region39: #{_lambda_.8} parent=1 // pred_check_branch
      %1827 = sbr.rel (0) target = $region41
    $region40: #{_lambda_.8} parent=1 // pred_region
      _
    $region41: #{_lambda_.8} parent=1 // pred_fallthru
      _
    %1828 = vsyncpa [#allocation3], 1
    %1829 = vsyncpa [#allocation5], 1

// kernel: _lambda_.9
$region0: #{_lambda_.9}
  #allocation0 [shape = 'u32[]', space=smem, size = 0x4, offset = 0x4, fixed_abs, tag = 'smem constant byte address 0x4 - core index']
  #allocation1 [shape = 'u32[144,128]{1,0:T(1,128)}', space=vmem, size = 0x12000, scoped, tag = 'internal scratch']
  %s0 = inlined_call_operand.vmem [shape: bf16[2048,128], index: 0, kind: input, shape index: {}]
  %s1 = inlined_call_operand.vmem [shape: bf16[128,128], index: 1, kind: input, shape index: {}]
  %s2 = inlined_call_operand.vmem [shape: f32[2048,128], index: 2, kind: output, shape index: {}]
  %s3 = sld [smem:[#allocation0]]
  $region41: #{_lambda_.9} parent=0
    _
  %s5 = ssub.s32 1, %s3
  %s6 = scalar_select 0, %s5, %s3
  loop: start=0, step=1, limit=6
  $region2: #{_lambda_.9} parent=0 // loop_pre_header
    _
  $region3: #{_lambda_.9} parent=0 // loop_header
    %s8 = sphi 0, %s12
    %p9 = scmp.ge.s32.totalorder %s8, 6
    %s18 = sphi 0, %s20
    %s21 = sphi 0, %s18
    %s22 = sphi 0, %s21
    %s38 = sphi 0, %s22
    %s42 = sphi 0, %s42
    %s44 = sphi 0, %s42
    %s45 = sphi 0, %s44
    %s59 = sphi 0, %s45
    %s65 = sphi 0, %s67
    %s68 = sphi 0, %s65
    %s69 = sphi 0, %s68
    %s85 = sphi 0, %s69
  $region4: #{_lambda_.9} parent=0 // loop_header_branch
    %11 = sbr.rel (%p9) target = $region8
  $region5: #{_lambda_.9} parent=0 // loop_body
    %s13 = ssub.s32 %s8, 1
    %s14 = ssub.s32 %s8, 2
    %s15 = sadd.s32 %s8, 1
    %s16 = ssub.s32 %s8, %s15
    %p17 = scmp.eq.s32.totalorder %s16, 0
    %s19 = sadd.s32 %s18, 1
    %s20 = scalar_select %p17, %s18, %s19
    %p23 = pneg %p17
    %p24 = scmp.eq.s32.totalorder %s8, 3
    %p25 = por %p23, %p24
    %p26 = scmp.ne.s32.totalorder %s18, %s21
    %p27 = scmp.eq.s32.totalorder %s8, 0
    %p28 = por %p26, %p27
    %p29 = scmp.ne.s32.totalorder %s18, %s21
    %p30 = scmp.eq.s32.totalorder %s13, 3
    %p31 = por %p29, %p30
    %p32 = scmp.ne.s32.totalorder %s21, %s22
    %p33 = scmp.eq.s32.totalorder %s13, 0
    %p34 = por %p32, %p33
    %p35 = scmp.ne.s32.totalorder %s21, %s22
    %p36 = scmp.eq.s32.totalorder %s14, 3
    %p37 = por %p35, %p36
    %p39 = scmp.ne.s32.totalorder %s22, %s38
    %p40 = scmp.eq.s32.totalorder %s14, 0
    %p41 = por %p39, %p40
    %s43 = sadd.s32 %s42, 1
    %p46 = scmp.eq.s32.totalorder %s8, 3
    %p47 = scmp.ne.s32.totalorder %s42, %s44
    %p48 = scmp.eq.s32.totalorder %s8, 0
    %p49 = por %p47, %p48
    %p50 = scmp.ne.s32.totalorder %s42, %s44
    %p51 = scmp.eq.s32.totalorder %s13, 3
    %p52 = por %p50, %p51
    %p53 = scmp.ne.s32.totalorder %s44, %s45
    %p54 = scmp.eq.s32.totalorder %s13, 0
    %p55 = por %p53, %p54
    %p56 = scmp.ne.s32.totalorder %s44, %s45
    %p57 = scmp.eq.s32.totalorder %s14, 3
    %p58 = por %p56, %p57
    %p60 = scmp.ne.s32.totalorder %s45, %s59
    %p61 = scmp.eq.s32.totalorder %s14, 0
    %p62 = por %p60, %p61
    %s63 = ssub.s32 %s8, %s15
    %p64 = scmp.eq.s32.totalorder %s63, 0
    %s66 = sadd.s32 %s65, 1
    %s67 = scalar_select %p64, %s65, %s66
    %p70 = pneg %p64
    %p71 = scmp.eq.s32.totalorder %s8, 3
    %p72 = por %p70, %p71
    %p73 = scmp.ne.s32.totalorder %s65, %s68
    %p74 = scmp.eq.s32.totalorder %s8, 0
    %p75 = por %p73, %p74
    %p76 = scmp.ne.s32.totalorder %s65, %s68
    %p77 = scmp.eq.s32.totalorder %s13, 3
    %p78 = por %p76, %p77
    %p79 = scmp.ne.s32.totalorder %s68, %s69
    %p80 = scmp.eq.s32.totalorder %s13, 0
    %p81 = por %p79, %p80
    %p82 = scmp.ne.s32.totalorder %s68, %s69
    %p83 = scmp.eq.s32.totalorder %s14, 3
    %p84 = por %p82, %p83
    %p86 = scmp.ne.s32.totalorder %s69, %s85
    %p87 = scmp.eq.s32.totalorder %s14, 0
    %p88 = por %p86, %p87
    %p89 = scmp.le.s32.totalorder 1, %s8
    %p90 = scmp.lt.s32.totalorder %s8, 5
    %p91 = pnand %p89, %p90
    %p92 = pneg %p91
    // Predicated region
    $region9: #{_lambda_.9} parent=5 // pred_check
      _
    $region10: #{_lambda_.9} parent=5 // pred_check_branch
      %94 = sbr.rel (%p91) target = $region12
    $region11: #{_lambda_.9} parent=5 // pred_region
      %s95 = ssub.s32 %s8, 1
      // Predicated region
      $region13: #{_lambda_.9} parent=11 // pred_check
        %p96 = pneg %p55
      $region14: #{_lambda_.9} parent=11 // pred_check_branch
        %98 = sbr.rel (%p96) target = $region16
      $region15: #{_lambda_.9} parent=11 // pred_region
        _
      $region16: #{_lambda_.9} parent=11 // pred_fallthru
        _
    $region12: #{_lambda_.9} parent=5 // pred_fallthru
      _
    %p99 = scmp.lt.s32.totalorder %s8, 4
    // Predicated region
    $region17: #{_lambda_.9} parent=5 // pred_check
      %p100 = pneg %p99
    $region18: #{_lambda_.9} parent=5 // pred_check_branch
      %102 = sbr.rel (%p100) target = $region20
    $region19: #{_lambda_.9} parent=5 // pred_region
      // Predicated region
      $region21: #{_lambda_.9} parent=19 // pred_check
        %p103 = pneg %p28
      $region22: #{_lambda_.9} parent=19 // pred_check_branch
        %105 = sbr.rel (%p103) target = $region24
      $region23: #{_lambda_.9} parent=19 // pred_region
        %s106 = smul.u32 64, %s8
        %p107 = scmp.lt.s32.totalorder %s106, 255
        %s108 = scalar_select %p107, %s106, 255
        %s109 = smul.addr %s108, 4
        %s110 = scalar_lea.vmem %s0, %s109
        %s111 = smul.u32 64, %s8
      $region24: #{_lambda_.9} parent=19 // pred_fallthru
        _
    $region20: #{_lambda_.9} parent=5 // pred_fallthru
      _
    %p112 = scmp.le.s32.totalorder 1, %s8
    %p113 = scmp.lt.s32.totalorder %s8, 5
    %p114 = pnand %p112, %p113
    %p115 = pneg %p114
    // Predicated region
    $region25: #{_lambda_.9} parent=5 // pred_check
      _
    $region26: #{_lambda_.9} parent=5 // pred_check_branch
      %117 = sbr.rel (%p114) target = $region28
    $region27: #{_lambda_.9} parent=5 // pred_region
      %s118 = ssub.s32 %s8, 1
      %s119 = smul.u32 64, %s13
      %p120 = scmp.lt.s32.totalorder %s119, 255
      %s121 = scalar_select %p120, %s119, 255
      %s122 = smul.addr %s121, 4
      %s123 = scalar_lea.vmem %s0, %s122
      %p124 = pneg %p34
      %p125 = pneg %p31
      %p126 = pneg %p55
      %p127 = pneg %p52
      %p128 = pneg %p81
      %p129 = pneg %p78
      %s130 = smul.u32 64, %s13
      %p131 = scmp.lt.s32.totalorder %s130, 255
      %s132 = scalar_select %p131, %s130, 255
      %s133 = smul.addr %s132, 8
      %s134 = scalar_lea.vmem %s2, %s133
      %s135 = smul.u32 64, %s13
      %p136 = scmp.lt.s32.totalorder %s135, 255
      %s137 = scalar_select %p136, %s135, 255
      %s138 = smul.addr %s137, 4
      %s139 = scalar_lea.vmem %s0, %s138
      %s140 = smul.u32 64, %s13
      %s141 = smul.u32 64, %s13
      %p142 = scmp.lt.s32.totalorder %s141, 255
      %s143 = scalar_select %p142, %s141, 255
      %s144 = smul.addr %s143, 8
      %s145 = scalar_lea.vmem %s2, %s144
      %s146 = smul.u32 64, %s13
      %v148 = vld [vmem:[%s139] sm:$0xf]
      %v149 = vld [vmem:[%s139 + $0x4] sm:$0xf]
      %v150 = vld [vmem:[%s139 + $0x8] sm:$0xf]
      %v151 = vld [vmem:[%s139 + $0xc] sm:$0xf]
      %v152 = vld [vmem:[%s139 + $0x10] sm:$0xf]
      %v153 = vld [vmem:[%s139 + $0x14] sm:$0xf]
      %v154 = vld [vmem:[%s139 + $0x18] sm:$0xf]
      %v155 = vld [vmem:[%s139 + $0x1c] sm:$0xf]
      %v156 = vld [vmem:[%s139 + $0x20] sm:$0xf]
      %v157 = vld [vmem:[%s139 + $0x24] sm:$0xf]
      %v158 = vld [vmem:[%s139 + $0x28] sm:$0xf]
      %v159 = vld [vmem:[%s139 + $0x2c] sm:$0xf]
      %v160 = vld [vmem:[%s139 + $0x30] sm:$0xf]
      %v161 = vld [vmem:[%s139 + $0x34] sm:$0xf]
      %v162 = vld [vmem:[%s139 + $0x38] sm:$0xf]
      %v163 = vld [vmem:[%s139 + $0x3c] sm:$0xf]
      %v164 = vld [vmem:[%s139 + $0x40] sm:$0xf]
      %v165 = vld [vmem:[%s139 + $0x44] sm:$0xf]
      %v166 = vld [vmem:[%s139 + $0x48] sm:$0xf]
      %v167 = vld [vmem:[%s139 + $0x4c] sm:$0xf]
      %v168 = vld [vmem:[%s139 + $0x50] sm:$0xf]
      %v169 = vld [vmem:[%s139 + $0x54] sm:$0xf]
      %v170 = vld [vmem:[%s139 + $0x58] sm:$0xf]
      %v171 = vld [vmem:[%s139 + $0x5c] sm:$0xf]
      %v172 = vld [vmem:[%s139 + $0x60] sm:$0xf]
      %v173 = vld [vmem:[%s139 + $0x64] sm:$0xf]
      %v174 = vld [vmem:[%s139 + $0x68] sm:$0xf]
      %v175 = vld [vmem:[%s139 + $0x6c] sm:$0xf]
      %v176 = vld [vmem:[%s139 + $0x70] sm:$0xf]
      %v177 = vld [vmem:[%s139 + $0x74] sm:$0xf]
      %v178 = vld [vmem:[%s139 + $0x78] sm:$0xf]
      %v179 = vld [vmem:[%s139 + $0x7c] sm:$0xf]
      %v180 = vld [vmem:[%s139 + $0x80] sm:$0xf]
      %v181 = vld [vmem:[%s139 + $0x84] sm:$0xf]
      %v182 = vld [vmem:[%s139 + $0x88] sm:$0xf]
      %v183 = vld [vmem:[%s139 + $0x8c] sm:$0xf]
      %v184 = vld [vmem:[%s139 + $0x90] sm:$0xf]
      %v185 = vld [vmem:[%s139 + $0x94] sm:$0xf]
      %v186 = vld [vmem:[%s139 + $0x98] sm:$0xf]
      %v187 = vld [vmem:[%s139 + $0x9c] sm:$0xf]
      %v188 = vld [vmem:[%s139 + $0xa0] sm:$0xf]
      %v189 = vld [vmem:[%s139 + $0xa4] sm:$0xf]
      %v190 = vld [vmem:[%s139 + $0xa8] sm:$0xf]
      %v191 = vld [vmem:[%s139 + $0xac] sm:$0xf]
      %v192 = vld [vmem:[%s139 + $0xb0] sm:$0xf]
      %v193 = vld [vmem:[%s139 + $0xb4] sm:$0xf]
      %v194 = vld [vmem:[%s139 + $0xb8] sm:$0xf]
      %v195 = vld [vmem:[%s139 + $0xbc] sm:$0xf]
      %v196 = vld [vmem:[%s139 + $0xc0] sm:$0xf]
      %v197 = vld [vmem:[%s139 + $0xc4] sm:$0xf]
      %v198 = vld [vmem:[%s139 + $0xc8] sm:$0xf]
      %v199 = vld [vmem:[%s139 + $0xcc] sm:$0xf]
      %v200 = vld [vmem:[%s139 + $0xd0] sm:$0xf]
      %v201 = vld [vmem:[%s139 + $0xd4] sm:$0xf]
      %v202 = vld [vmem:[%s139 + $0xd8] sm:$0xf]
      %v203 = vld [vmem:[%s139 + $0xdc] sm:$0xf]
      %v204 = vld [vmem:[%s139 + $0xe0] sm:$0xf]
      %v205 = vld [vmem:[%s139 + $0xe4] sm:$0xf]
      %v206 = vld [vmem:[%s139 + $0xe8] sm:$0xf]
      %v207 = vld [vmem:[%s139 + $0xec] sm:$0xf]
      %v208 = vld [vmem:[%s139 + $0xf0] sm:$0xf]
      %v209 = vld [vmem:[%s139 + $0xf4] sm:$0xf]
      %v210 = vld [vmem:[%s139 + $0xf8] sm:$0xf]
      %v211 = vld [vmem:[%s139 + $0xfc] sm:$0xf]
      %v212 = vld [vmem:[%s1] sm:$0xf]
      %v213 = vld [vmem:[%s1 + $0x4] sm:$0xf]
      %v214 = vld [vmem:[%s1 + $0x8] sm:$0xf]
      %v215 = vld [vmem:[%s1 + $0xc] sm:$0xf]
      %v216 = vld [vmem:[%s1 + $0x10] sm:$0xf]
      %v217 = vld [vmem:[%s1 + $0x14] sm:$0xf]
      %v218 = vld [vmem:[%s1 + $0x18] sm:$0xf]
      %v219 = vld [vmem:[%s1 + $0x1c] sm:$0xf]
      %v220 = vld [vmem:[%s1 + $0x20] sm:$0xf]
      %v221 = vld [vmem:[%s1 + $0x24] sm:$0xf]
      %v222 = vld [vmem:[%s1 + $0x28] sm:$0xf]
      %v223 = vld [vmem:[%s1 + $0x2c] sm:$0xf]
      %v224 = vld [vmem:[%s1 + $0x30] sm:$0xf]
      %v225 = vld [vmem:[%s1 + $0x34] sm:$0xf]
      %v226 = vld [vmem:[%s1 + $0x38] sm:$0xf]
      %v227 = vld [vmem:[%s1 + $0x3c] sm:$0xf]
      %v292 = vunpack.c.l.b16 %v148
      %v293 = vunpack.c.l.b16 %v149
      %v294 = vunpack.c.l.b16 %v150
      %v295 = vunpack.c.l.b16 %v151
      %v296 = vunpack.c.l.b16 %v152
      %v297 = vunpack.c.l.b16 %v153
      %v298 = vunpack.c.l.b16 %v154
      %v299 = vunpack.c.l.b16 %v155
      %v300 = vunpack.c.l.b16 %v156
      %v301 = vunpack.c.l.b16 %v157
      %v302 = vunpack.c.l.b16 %v158
      %v303 = vunpack.c.l.b16 %v159
      %v304 = vunpack.c.l.b16 %v160
      %v305 = vunpack.c.l.b16 %v161
      %v306 = vunpack.c.l.b16 %v162
      %v307 = vunpack.c.l.b16 %v163
      %v308 = vunpack.c.l.b16 %v164
      %v309 = vunpack.c.l.b16 %v165
      %v310 = vunpack.c.l.b16 %v166
      %v311 = vunpack.c.l.b16 %v167
      %v312 = vunpack.c.l.b16 %v168
      %v313 = vunpack.c.l.b16 %v169
      %v314 = vunpack.c.l.b16 %v170
      %v315 = vunpack.c.l.b16 %v171
      %v316 = vunpack.c.l.b16 %v172
      %v317 = vunpack.c.l.b16 %v173
      %v318 = vunpack.c.l.b16 %v174
      %v319 = vunpack.c.l.b16 %v175
      %v320 = vunpack.c.l.b16 %v176
      %v321 = vunpack.c.l.b16 %v177
      %v322 = vunpack.c.l.b16 %v178
      %v323 = vunpack.c.l.b16 %v179
      %v324 = vunpack.c.l.b16 %v180
      %v325 = vunpack.c.l.b16 %v181
      %v326 = vunpack.c.l.b16 %v182
      %v327 = vunpack.c.l.b16 %v183
      %v328 = vunpack.c.l.b16 %v184
      %v329 = vunpack.c.l.b16 %v185
      %v330 = vunpack.c.l.b16 %v186
      %v331 = vunpack.c.l.b16 %v187
      %v332 = vunpack.c.l.b16 %v188
      %v333 = vunpack.c.l.b16 %v189
      %v334 = vunpack.c.l.b16 %v190
      %v335 = vunpack.c.l.b16 %v191
      %v336 = vunpack.c.l.b16 %v192
      %v337 = vunpack.c.l.b16 %v193
      %v338 = vunpack.c.l.b16 %v194
      %v339 = vunpack.c.l.b16 %v195
      %v340 = vunpack.c.l.b16 %v196
      %v341 = vunpack.c.l.b16 %v197
      %v342 = vunpack.c.l.b16 %v198
      %v343 = vunpack.c.l.b16 %v199
      %v344 = vunpack.c.l.b16 %v200
      %v345 = vunpack.c.l.b16 %v201
      %v346 = vunpack.c.l.b16 %v202
      %v347 = vunpack.c.l.b16 %v203
      %v348 = vunpack.c.l.b16 %v204
      %v349 = vunpack.c.l.b16 %v205
      %v350 = vunpack.c.l.b16 %v206
      %v351 = vunpack.c.l.b16 %v207
      %v352 = vunpack.c.l.b16 %v208
      %v353 = vunpack.c.l.b16 %v209
      %v354 = vunpack.c.l.b16 %v210
      %v355 = vunpack.c.l.b16 %v211
      %v356 = vpack.c.b16 %v293, %v292
      %v357 = vpack.c.b16 %v295, %v294
      %v358 = vpack.c.b16 %v297, %v296
      %v359 = vpack.c.b16 %v299, %v298
      %v360 = vpack.c.b16 %v301, %v300
      %v361 = vpack.c.b16 %v303, %v302
      %v362 = vpack.c.b16 %v305, %v304
      %v363 = vpack.c.b16 %v307, %v306
      %v364 = vpack.c.b16 %v309, %v308
      %v365 = vpack.c.b16 %v311, %v310
      %v366 = vpack.c.b16 %v313, %v312
      %v367 = vpack.c.b16 %v315, %v314
      %v368 = vpack.c.b16 %v317, %v316
      %v369 = vpack.c.b16 %v319, %v318
      %v370 = vpack.c.b16 %v321, %v320
      %v371 = vpack.c.b16 %v323, %v322
      %v372 = vpack.c.b16 %v325, %v324
      %v373 = vpack.c.b16 %v327, %v326
      %v374 = vpack.c.b16 %v329, %v328
      %v375 = vpack.c.b16 %v331, %v330
      %v376 = vpack.c.b16 %v333, %v332
      %v377 = vpack.c.b16 %v335, %v334
      %v378 = vpack.c.b16 %v337, %v336
      %v379 = vpack.c.b16 %v339, %v338
      %v380 = vpack.c.b16 %v341, %v340
      %v381 = vpack.c.b16 %v343, %v342
      %v382 = vpack.c.b16 %v345, %v344
      %v383 = vpack.c.b16 %v347, %v346
      %v384 = vpack.c.b16 %v349, %v348
      %v385 = vpack.c.b16 %v351, %v350
      %v386 = vpack.c.b16 %v353, %v352
      %v387 = vpack.c.b16 %v355, %v354
      %v436 = vunpack.c.l.b16 %v212
      %v437 = vunpack.c.l.b16 %v213
      %v438 = vunpack.c.l.b16 %v214
      %v439 = vunpack.c.l.b16 %v215
      %v440 = vunpack.c.l.b16 %v216
      %v441 = vunpack.c.l.b16 %v217
      %v442 = vunpack.c.l.b16 %v218
      %v443 = vunpack.c.l.b16 %v219
      %v444 = vunpack.c.l.b16 %v220
      %v445 = vunpack.c.l.b16 %v221
      %v446 = vunpack.c.l.b16 %v222
      %v447 = vunpack.c.l.b16 %v223
      %v448 = vunpack.c.l.b16 %v224
      %v449 = vunpack.c.l.b16 %v225
      %v450 = vunpack.c.l.b16 %v226
      %v451 = vunpack.c.l.b16 %v227
      %v452 = vpack.c.b16 %v437, %v436
      %v453 = vpack.c.b16 %v439, %v438
      %v454 = vpack.c.b16 %v441, %v440
      %v455 = vpack.c.b16 %v443, %v442
      %v456 = vpack.c.b16 %v445, %v444
      %v457 = vpack.c.b16 %v447, %v446
      %v458 = vpack.c.b16 %v449, %v448
      %v459 = vpack.c.b16 %v451, %v450
      %468 = vmatprep.subr.bf16.mxu0 0
      %469 = vmatpush1.bf16.msra.mxu0 %v452
      %470 = vmatprep.subr.bf16.mxu0 0
      %471 = vmatpush1.bf16.msra.mxu0 %v453
      %472 = vmatprep.subr.bf16.mxu0 0
      %473 = vmatpush1.bf16.msra.mxu0 %v454
      %474 = vmatprep.subr.bf16.mxu0 0
      %475 = vmatpush1.bf16.msra.mxu0 %v455
      %476 = vmatprep.subr.bf16.mxu0 0
      %477 = vmatpush1.bf16.msra.mxu0 %v456
      %478 = vmatprep.subr.bf16.mxu0 0
      %479 = vmatpush1.bf16.msra.mxu0 %v457
      %480 = vmatprep.subr.bf16.mxu0 0
      %481 = vmatpush1.bf16.msra.mxu0 %v458
      %482 = vmatprep.subr.bf16.mxu0 0
      %483 = vmatpush1.bf16.msra.mxu0 %v459
      %484 = vmatprep.subr.bf16.mxu0 0
      %485 = vmatpush1.bf16.msra.mxu0 0
      %486 = vmatprep.subr.bf16.mxu0 0
      %487 = vmatpush1.bf16.msra.mxu0 0
      %488 = vmatprep.subr.bf16.mxu0 0
      %489 = vmatpush1.bf16.msra.mxu0 0
      %490 = vmatprep.subr.bf16.mxu0 0
      %491 = vmatpush1.bf16.msra.mxu0 0
      %492 = vmatprep.subr.bf16.mxu0 0
      %493 = vmatpush1.bf16.msra.mxu0 0
      %494 = vmatprep.subr.bf16.mxu0 0
      %495 = vmatpush1.bf16.msra.mxu0 0
      %496 = vmatprep.subr.bf16.mxu0 0
      %497 = vmatpush1.bf16.msra.mxu0 0
      %498 = vmatprep.subr.bf16.mxu0 0
      %499 = vmatpush1.bf16.msra.mxu0 0
      %500 = vmatprep.mubr.bf16.mxu0 0
      %501 = vmatmul.mubr.bf16.gmra.mrb[0].mxu0 %v356
      %v502 = vpop.f32.mrb[0].mxu0
      %v503 = vadd.f32 0.0, %v502
      %v504 = vpop.f32.mrb[0].mxu0
      %v505 = vpop.f32.mrb[0].mxu0
      %v506 = vadd.f32 0.0, %v505
      %v507 = vpop.f32.mrb[0].mxu0
      %508 = vmatprep.mubr.bf16.mxu0 0
      %509 = vmatmul.mubr.bf16.gmra.mrb[0].mxu0 %v357
      %v510 = vpop.f32.mrb[0].mxu0
      %v511 = vadd.f32 0.0, %v510
      %v512 = vpop.f32.mrb[0].mxu0
      %v513 = vpop.f32.mrb[0].mxu0
      %v514 = vadd.f32 0.0, %v513
      %v515 = vpop.f32.mrb[0].mxu0
      %516 = vmatprep.mubr.bf16.mxu0 0
      %517 = vmatmul.mubr.bf16.gmra.mrb[0].mxu0 %v358
      %v518 = vpop.f32.mrb[0].mxu0
      %v519 = vadd.f32 0.0, %v518
      %v520 = vpop.f32.mrb[0].mxu0
      %v521 = vpop.f32.mrb[0].mxu0
      %v522 = vadd.f32 0.0, %v521
      %v523 = vpop.f32.mrb[0].mxu0
      %524 = vmatprep.mubr.bf16.mxu0 0
      %525 = vmatmul.mubr.bf16.gmra.mrb[0].mxu0 %v359
      %v526 = vpop.f32.mrb[0].mxu0
      %v527 = vadd.f32 0.0, %v526
      %v528 = vpop.f32.mrb[0].mxu0
      %v529 = vpop.f32.mrb[0].mxu0
      %v530 = vadd.f32 0.0, %v529
      %v531 = vpop.f32.mrb[0].mxu0
      %532 = vmatprep.mubr.bf16.mxu0 0
      %533 = vmatmul.mubr.bf16.gmra.mrb[0].mxu0 %v360
      %v534 = vpop.f32.mrb[0].mxu0
      %v535 = vadd.f32 0.0, %v534
      %v536 = vpop.f32.mrb[0].mxu0
      %v537 = vpop.f32.mrb[0].mxu0
      %v538 = vadd.f32 0.0, %v537
      %v539 = vpop.f32.mrb[0].mxu0
      %540 = vmatprep.mubr.bf16.mxu0 0
      %541 = vmatmul.mubr.bf16.gmra.mrb[0].mxu0 %v361
      %v542 = vpop.f32.mrb[0].mxu0
      %v543 = vadd.f32 0.0, %v542
      %v544 = vpop.f32.mrb[0].mxu0
      %v545 = vpop.f32.mrb[0].mxu0
      %v546 = vadd.f32 0.0, %v545
      %v547 = vpop.f32.mrb[0].mxu0
      %548 = vmatprep.mubr.bf16.mxu0 0
      %549 = vmatmul.mubr.bf16.gmra.mrb[0].mxu0 %v362
      %v550 = vpop.f32.mrb[0].mxu0
      %v551 = vadd.f32 0.0, %v550
      %v552 = vpop.f32.mrb[0].mxu0
      %v553 = vpop.f32.mrb[0].mxu0
      %v554 = vadd.f32 0.0, %v553
      %v555 = vpop.f32.mrb[0].mxu0
      %556 = vmatprep.mubr.bf16.mxu0 0
      %557 = vmatmul.mubr.bf16.gmra.mrb[0].mxu0 %v363
      %v558 = vpop.f32.mrb[0].mxu0
      %v559 = vadd.f32 0.0, %v558
      %v560 = vpop.f32.mrb[0].mxu0
      %v561 = vpop.f32.mrb[0].mxu0
      %v562 = vadd.f32 0.0, %v561
      %v563 = vpop.f32.mrb[0].mxu0
      %564 = vmatprep.mubr.bf16.mxu0 0
      %565 = vmatmul.mubr.bf16.gmra.mrb[0].mxu0 %v364
      %v566 = vpop.f32.mrb[0].mxu0
      %v567 = vadd.f32 0.0, %v566
      %v568 = vpop.f32.mrb[0].mxu0
      %v569 = vpop.f32.mrb[0].mxu0
      %v570 = vadd.f32 0.0, %v569
      %v571 = vpop.f32.mrb[0].mxu0
      %572 = vmatprep.mubr.bf16.mxu0 0
      %573 = vmatmul.mubr.bf16.gmra.mrb[0].mxu0 %v365
      %v574 = vpop.f32.mrb[0].mxu0
      %v575 = vadd.f32 0.0, %v574
      %v576 = vpop.f32.mrb[0].mxu0
      %v577 = vpop.f32.mrb[0].mxu0
      %v578 = vadd.f32 0.0, %v577
      %v579 = vpop.f32.mrb[0].mxu0
      %580 = vmatprep.mubr.bf16.mxu0 0
      %581 = vmatmul.mubr.bf16.gmra.mrb[0].mxu0 %v366
      %v582 = vpop.f32.mrb[0].mxu0
      %v583 = vadd.f32 0.0, %v582
      %v584 = vpop.f32.mrb[0].mxu0
      %v585 = vpop.f32.mrb[0].mxu0
      %v586 = vadd.f32 0.0, %v585
      %v587 = vpop.f32.mrb[0].mxu0
      %588 = vmatprep.mubr.bf16.mxu0 0
      %589 = vmatmul.mubr.bf16.gmra.mrb[0].mxu0 %v367
      %v590 = vpop.f32.mrb[0].mxu0
      %v591 = vadd.f32 0.0, %v590
      %v592 = vpop.f32.mrb[0].mxu0
      %v593 = vpop.f32.mrb[0].mxu0
      %v594 = vadd.f32 0.0, %v593
      %v595 = vpop.f32.mrb[0].mxu0
      %596 = vmatprep.mubr.bf16.mxu0 0
      %597 = vmatmul.mubr.bf16.gmra.mrb[0].mxu0 %v368
      %v598 = vpop.f32.mrb[0].mxu0
      %v599 = vadd.f32 0.0, %v598
      %v600 = vpop.f32.mrb[0].mxu0
      %v601 = vpop.f32.mrb[0].mxu0
      %v602 = vadd.f32 0.0, %v601
      %v603 = vpop.f32.mrb[0].mxu0
      %604 = vmatprep.mubr.bf16.mxu0 0
      %605 = vmatmul.mubr.bf16.gmra.mrb[0].mxu0 %v369
      %v606 = vpop.f32.mrb[0].mxu0
      %v607 = vadd.f32 0.0, %v606
      %v608 = vpop.f32.mrb[0].mxu0
      %v609 = vpop.f32.mrb[0].mxu0
      %v610 = vadd.f32 0.0, %v609
      %v611 = vpop.f32.mrb[0].mxu0
      %612 = vmatprep.mubr.bf16.mxu0 0
      %613 = vmatmul.mubr.bf16.gmra.mrb[0].mxu0 %v370
      %v614 = vpop.f32.mrb[0].mxu0
      %v615 = vadd.f32 0.0, %v614
      %v616 = vpop.f32.mrb[0].mxu0
      %v617 = vpop.f32.mrb[0].mxu0
      %v618 = vadd.f32 0.0, %v617
      %v619 = vpop.f32.mrb[0].mxu0
      %620 = vmatprep.mubr.bf16.mxu0 0
      %621 = vmatmul.mubr.bf16.gmra.mrb[0].mxu0 %v371
      %v622 = vpop.f32.mrb[0].mxu0
      %v623 = vadd.f32 0.0, %v622
      %v624 = vpop.f32.mrb[0].mxu0
      %v625 = vpop.f32.mrb[0].mxu0
      %v626 = vadd.f32 0.0, %v625
      %v627 = vpop.f32.mrb[0].mxu0
      %628 = vmatprep.mubr.bf16.mxu0 0
      %629 = vmatmul.mubr.bf16.gmra.mrb[0].mxu0 %v372
      %v630 = vpop.f32.mrb[0].mxu0
      %v631 = vadd.f32 0.0, %v630
      %v632 = vpop.f32.mrb[0].mxu0
      %v633 = vpop.f32.mrb[0].mxu0
      %v634 = vadd.f32 0.0, %v633
      %v635 = vpop.f32.mrb[0].mxu0
      %636 = vmatprep.mubr.bf16.mxu0 0
      %637 = vmatmul.mubr.bf16.gmra.mrb[0].mxu0 %v373
      %v638 = vpop.f32.mrb[0].mxu0
      %v639 = vadd.f32 0.0, %v638
      %v640 = vpop.f32.mrb[0].mxu0
      %v641 = vpop.f32.mrb[0].mxu0
      %v642 = vadd.f32 0.0, %v641
      %v643 = vpop.f32.mrb[0].mxu0
      %644 = vmatprep.mubr.bf16.mxu0 0
      %645 = vmatmul.mubr.bf16.gmra.mrb[0].mxu0 %v374
      %v646 = vpop.f32.mrb[0].mxu0
      %v647 = vadd.f32 0.0, %v646
      %v648 = vpop.f32.mrb[0].mxu0
      %v649 = vpop.f32.mrb[0].mxu0
      %v650 = vadd.f32 0.0, %v649
      %v651 = vpop.f32.mrb[0].mxu0
      %652 = vmatprep.mubr.bf16.mxu0 0
      %653 = vmatmul.mubr.bf16.gmra.mrb[0].mxu0 %v375
      %v654 = vpop.f32.mrb[0].mxu0
      %v655 = vadd.f32 0.0, %v654
      %v656 = vpop.f32.mrb[0].mxu0
      %v657 = vpop.f32.mrb[0].mxu0
      %v658 = vadd.f32 0.0, %v657
      %v659 = vpop.f32.mrb[0].mxu0
      %660 = vmatprep.mubr.bf16.mxu0 0
      %661 = vmatmul.mubr.bf16.gmra.mrb[0].mxu0 %v376
      %v662 = vpop.f32.mrb[0].mxu0
      %v663 = vadd.f32 0.0, %v662
      %v664 = vpop.f32.mrb[0].mxu0
      %v665 = vpop.f32.mrb[0].mxu0
      %v666 = vadd.f32 0.0, %v665
      %v667 = vpop.f32.mrb[0].mxu0
      %668 = vmatprep.mubr.bf16.mxu0 0
      %669 = vmatmul.mubr.bf16.gmra.mrb[0].mxu0 %v377
      %v670 = vpop.f32.mrb[0].mxu0
      %v671 = vadd.f32 0.0, %v670
      %v672 = vpop.f32.mrb[0].mxu0
      %v673 = vpop.f32.mrb[0].mxu0
      %v674 = vadd.f32 0.0, %v673
      %v675 = vpop.f32.mrb[0].mxu0
      %676 = vmatprep.mubr.bf16.mxu0 0
      %677 = vmatmul.mubr.bf16.gmra.mrb[0].mxu0 %v378
      %v678 = vpop.f32.mrb[0].mxu0
      %v679 = vadd.f32 0.0, %v678
      %v680 = vpop.f32.mrb[0].mxu0
      %v681 = vpop.f32.mrb[0].mxu0
      %v682 = vadd.f32 0.0, %v681
      %v683 = vpop.f32.mrb[0].mxu0
      %684 = vmatprep.mubr.bf16.mxu0 0
      %685 = vmatmul.mubr.bf16.gmra.mrb[0].mxu0 %v379
      %v686 = vpop.f32.mrb[0].mxu0
      %v687 = vadd.f32 0.0, %v686
      %v688 = vpop.f32.mrb[0].mxu0
      %v689 = vpop.f32.mrb[0].mxu0
      %v690 = vadd.f32 0.0, %v689
      %v691 = vpop.f32.mrb[0].mxu0
      %692 = vmatprep.mubr.bf16.mxu0 0
      %693 = vmatmul.mubr.bf16.gmra.mrb[0].mxu0 %v380
      %v694 = vpop.f32.mrb[0].mxu0
      %v695 = vadd.f32 0.0, %v694
      %v696 = vpop.f32.mrb[0].mxu0
      %v697 = vpop.f32.mrb[0].mxu0
      %v698 = vadd.f32 0.0, %v697
      %v699 = vpop.f32.mrb[0].mxu0
      %700 = vmatprep.mubr.bf16.mxu0 0
      %701 = vmatmul.mubr.bf16.gmra.mrb[0].mxu0 %v381
      %v702 = vpop.f32.mrb[0].mxu0
      %v703 = vadd.f32 0.0, %v702
      %v704 = vpop.f32.mrb[0].mxu0
      %v705 = vpop.f32.mrb[0].mxu0
      %v706 = vadd.f32 0.0, %v705
      %v707 = vpop.f32.mrb[0].mxu0
      %708 = vmatprep.mubr.bf16.mxu0 0
      %709 = vmatmul.mubr.bf16.gmra.mrb[0].mxu0 %v382
      %v710 = vpop.f32.mrb[0].mxu0
      %v711 = vadd.f32 0.0, %v710
      %v712 = vpop.f32.mrb[0].mxu0
      %v713 = vpop.f32.mrb[0].mxu0
      %v714 = vadd.f32 0.0, %v713
      %v715 = vpop.f32.mrb[0].mxu0
      %716 = vmatprep.mubr.bf16.mxu0 0
      %717 = vmatmul.mubr.bf16.gmra.mrb[0].mxu0 %v383
      %v718 = vpop.f32.mrb[0].mxu0
      %v719 = vadd.f32 0.0, %v718
      %v720 = vpop.f32.mrb[0].mxu0
      %v721 = vpop.f32.mrb[0].mxu0
      %v722 = vadd.f32 0.0, %v721
      %v723 = vpop.f32.mrb[0].mxu0
      %724 = vmatprep.mubr.bf16.mxu0 0
      %725 = vmatmul.mubr.bf16.gmra.mrb[0].mxu0 %v384
      %v726 = vpop.f32.mrb[0].mxu0
      %v727 = vadd.f32 0.0, %v726
      %v728 = vpop.f32.mrb[0].mxu0
      %v729 = vpop.f32.mrb[0].mxu0
      %v730 = vadd.f32 0.0, %v729
      %v731 = vpop.f32.mrb[0].mxu0
      %732 = vmatprep.mubr.bf16.mxu0 0
      %733 = vmatmul.mubr.bf16.gmra.mrb[0].mxu0 %v385
      %v734 = vpop.f32.mrb[0].mxu0
      %v735 = vadd.f32 0.0, %v734
      %v736 = vpop.f32.mrb[0].mxu0
      %v737 = vpop.f32.mrb[0].mxu0
      %v738 = vadd.f32 0.0, %v737
      %v739 = vpop.f32.mrb[0].mxu0
      %740 = vmatprep.mubr.bf16.mxu0 0
      %741 = vmatmul.mubr.bf16.gmra.mrb[0].mxu0 %v386
      %v742 = vpop.f32.mrb[0].mxu0
      %v743 = vadd.f32 0.0, %v742
      %v744 = vpop.f32.mrb[0].mxu0
      %v745 = vpop.f32.mrb[0].mxu0
      %v746 = vadd.f32 0.0, %v745
      %v747 = vpop.f32.mrb[0].mxu0
      %748 = vmatprep.mubr.bf16.mxu0 0
      %749 = vmatmul.mubr.bf16.gmra.mrb[0].mxu0 %v387
      %v750 = vpop.f32.mrb[0].mxu0
      %v751 = vadd.f32 0.0, %v750
      %v752 = vpop.f32.mrb[0].mxu0
      %v753 = vpop.f32.mrb[0].mxu0
      %v754 = vadd.f32 0.0, %v753
      %v755 = vpop.f32.mrb[0].mxu0
      %756 = vdwg.mxu0
      %v757 = vtanh.pop %v503
      %v758 = vtanh.pop %v506
      %v759 = vtanh.pop %v511
      %v760 = vtanh.pop %v514
      %v761 = vtanh.pop %v519
      %v762 = vtanh.pop %v522
      %v763 = vtanh.pop %v527
      %v764 = vtanh.pop %v530
      %v765 = vtanh.pop %v535
      %v766 = vtanh.pop %v538
      %v767 = vtanh.pop %v543
      %v768 = vtanh.pop %v546
      %v769 = vtanh.pop %v551
      %v770 = vtanh.pop %v554
      %v771 = vtanh.pop %v559
      %v772 = vtanh.pop %v562
      %v773 = vtanh.pop %v567
      %v774 = vtanh.pop %v570
      %v775 = vtanh.pop %v575
      %v776 = vtanh.pop %v578
      %v777 = vtanh.pop %v583
      %v778 = vtanh.pop %v586
      %v779 = vtanh.pop %v591
      %v780 = vtanh.pop %v594
      %v781 = vtanh.pop %v599
      %v782 = vtanh.pop %v602
      %v783 = vtanh.pop %v607
      %v784 = vtanh.pop %v610
      %v785 = vtanh.pop %v615
      %v786 = vtanh.pop %v618
      %v787 = vtanh.pop %v623
      %v788 = vtanh.pop %v626
      %v789 = vtanh.pop %v631
      %v790 = vtanh.pop %v634
      %v791 = vtanh.pop %v639
      %v792 = vtanh.pop %v642
      %v793 = vtanh.pop %v647
      %v794 = vtanh.pop %v650
      %v795 = vtanh.pop %v655
      %v796 = vtanh.pop %v658
      %v797 = vtanh.pop %v663
      %v798 = vtanh.pop %v666
      %v799 = vtanh.pop %v671
      %v800 = vtanh.pop %v674
      %v801 = vtanh.pop %v679
      %v802 = vtanh.pop %v682
      %v803 = vtanh.pop %v687
      %v804 = vtanh.pop %v690
      %v805 = vtanh.pop %v695
      %v806 = vtanh.pop %v698
      %v807 = vtanh.pop %v703
      %v808 = vtanh.pop %v706
      %v809 = vtanh.pop %v711
      %v810 = vtanh.pop %v714
      %v811 = vtanh.pop %v719
      %v812 = vtanh.pop %v722
      %v813 = vtanh.pop %v727
      %v814 = vtanh.pop %v730
      %v815 = vtanh.pop %v735
      %v816 = vtanh.pop %v738
      %v817 = vtanh.pop %v743
      %v818 = vtanh.pop %v746
      %v819 = vtanh.pop %v751
      %v820 = vtanh.pop %v754
      %821 = vst [vmem:[%s145] sm:$0xff] %v757
      %822 = vst [vmem:[%s145 + $0x8] sm:$0xff] %v758
      %823 = vst [vmem:[%s145 + $0x10] sm:$0xff] %v759
      %824 = vst [vmem:[%s145 + $0x18] sm:$0xff] %v760
      %825 = vst [vmem:[%s145 + $0x20] sm:$0xff] %v761
      %826 = vst [vmem:[%s145 + $0x28] sm:$0xff] %v762
      %827 = vst [vmem:[%s145 + $0x30] sm:$0xff] %v763
      %828 = vst [vmem:[%s145 + $0x38] sm:$0xff] %v764
      %829 = vst [vmem:[%s145 + $0x40] sm:$0xff] %v765
      %830 = vst [vmem:[%s145 + $0x48] sm:$0xff] %v766
      %831 = vst [vmem:[%s145 + $0x50] sm:$0xff] %v767
      %832 = vst [vmem:[%s145 + $0x58] sm:$0xff] %v768
      %833 = vst [vmem:[%s145 + $0x60] sm:$0xff] %v769
      %834 = vst [vmem:[%s145 + $0x68] sm:$0xff] %v770
      %835 = vst [vmem:[%s145 + $0x70] sm:$0xff] %v771
      %836 = vst [vmem:[%s145 + $0x78] sm:$0xff] %v772
      %837 = vst [vmem:[%s145 + $0x80] sm:$0xff] %v773
      %838 = vst [vmem:[%s145 + $0x88] sm:$0xff] %v774
      %839 = vst [vmem:[%s145 + $0x90] sm:$0xff] %v775
      %840 = vst [vmem:[%s145 + $0x98] sm:$0xff] %v776
      %841 = vst [vmem:[%s145 + $0xa0] sm:$0xff] %v777
      %842 = vst [vmem:[%s145 + $0xa8] sm:$0xff] %v778
      %843 = vst [vmem:[%s145 + $0xb0] sm:$0xff] %v779
      %844 = vst [vmem:[%s145 + $0xb8] sm:$0xff] %v780
      %845 = vst [vmem:[%s145 + $0xc0] sm:$0xff] %v781
      %846 = vst [vmem:[%s145 + $0xc8] sm:$0xff] %v782
      %847 = vst [vmem:[%s145 + $0xd0] sm:$0xff] %v783
      %848 = vst [vmem:[%s145 + $0xd8] sm:$0xff] %v784
      %849 = vst [vmem:[%s145 + $0xe0] sm:$0xff] %v785
      %850 = vst [vmem:[%s145 + $0xe8] sm:$0xff] %v786
      %851 = vst [vmem:[%s145 + $0xf0] sm:$0xff] %v787
      %852 = vst [vmem:[%s145 + $0xf8] sm:$0xff] %v788
      %853 = vst [vmem:[%s145 + $0x100] sm:$0xff] %v789
      %854 = vst [vmem:[%s145 + $0x108] sm:$0xff] %v790
      %855 = vst [vmem:[%s145 + $0x110] sm:$0xff] %v791
      %856 = vst [vmem:[%s145 + $0x118] sm:$0xff] %v792
      %857 = vst [vmem:[%s145 + $0x120] sm:$0xff] %v793
      %858 = vst [vmem:[%s145 + $0x128] sm:$0xff] %v794
      %859 = vst [vmem:[%s145 + $0x130] sm:$0xff] %v795
      %860 = vst [vmem:[%s145 + $0x138] sm:$0xff] %v796
      %861 = vst [vmem:[%s145 + $0x140] sm:$0xff] %v797
      %862 = vst [vmem:[%s145 + $0x148] sm:$0xff] %v798
      %863 = vst [vmem:[%s145 + $0x150] sm:$0xff] %v799
      %864 = vst [vmem:[%s145 + $0x158] sm:$0xff] %v800
      %865 = vst [vmem:[%s145 + $0x160] sm:$0xff] %v801
      %866 = vst [vmem:[%s145 + $0x168] sm:$0xff] %v802
      %867 = vst [vmem:[%s145 + $0x170] sm:$0xff] %v803
      %868 = vst [vmem:[%s145 + $0x178] sm:$0xff] %v804
      %869 = vst [vmem:[%s145 + $0x180] sm:$0xff] %v805
      %870 = vst [vmem:[%s145 + $0x188] sm:$0xff] %v806
      %871 = vst [vmem:[%s145 + $0x190] sm:$0xff] %v807
      %872 = vst [vmem:[%s145 + $0x198] sm:$0xff] %v808
      %873 = vst [vmem:[%s145 + $0x1a0] sm:$0xff] %v809
      %874 = vst [vmem:[%s145 + $0x1a8] sm:$0xff] %v810
      %875 = vst [vmem:[%s145 + $0x1b0] sm:$0xff] %v811
      %876 = vst [vmem:[%s145 + $0x1b8] sm:$0xff] %v812
      %877 = vst [vmem:[%s145 + $0x1c0] sm:$0xff] %v813
      %878 = vst [vmem:[%s145 + $0x1c8] sm:$0xff] %v814
      %879 = vst [vmem:[%s145 + $0x1d0] sm:$0xff] %v815
      %880 = vst [vmem:[%s145 + $0x1d8] sm:$0xff] %v816
      %881 = vst [vmem:[%s145 + $0x1e0] sm:$0xff] %v817
      %882 = vst [vmem:[%s145 + $0x1e8] sm:$0xff] %v818
      %883 = vst [vmem:[%s145 + $0x1f0] sm:$0xff] %v819
      %884 = vst [vmem:[%s145 + $0x1f8] sm:$0xff] %v820
      %s885 = smul.u32 64, %s13
      %p886 = scmp.lt.s32.totalorder %s885, 255
      %s887 = scalar_select %p886, %s885, 255
      %s888 = smul.addr %s887, 8
      %s889 = scalar_lea.vmem %s2, %s888
      // Predicated region
      $region29: #{_lambda_.9} parent=27 // pred_check
        %p890 = pneg %p78
      $region30: #{_lambda_.9} parent=27 // pred_check_branch
        %892 = sbr.rel (%p890) target = $region32
      $region31: #{_lambda_.9} parent=27 // pred_region
        %s893 = smul.u32 64, %s13
      $region32: #{_lambda_.9} parent=27 // pred_fallthru
        _
    $region28: #{_lambda_.9} parent=5 // pred_fallthru
      _
    %p894 = scmp.le.s32.totalorder 2, %s8
    // Predicated region
    $region33: #{_lambda_.9} parent=5 // pred_check
      %p895 = pneg %p894
    $region34: #{_lambda_.9} parent=5 // pred_check_branch
      %897 = sbr.rel (%p895) target = $region36
    $region35: #{_lambda_.9} parent=5 // pred_region
      %s898 = ssub.s32 %s8, 2
      // Predicated region
      $region37: #{_lambda_.9} parent=35 // pred_check
        %p899 = pneg %p84
      $region38: #{_lambda_.9} parent=35 // pred_check_branch
        %901 = sbr.rel (%p899) target = $region40
      $region39: #{_lambda_.9} parent=35 // pred_region
        %s902 = smul.u32 64, %s14
        %p903 = scmp.lt.s32.totalorder %s902, 255
        %s904 = scalar_select %p903, %s902, 255
        %s905 = smul.addr %s904, 8
        %s906 = scalar_lea.vmem %s2, %s905
      $region40: #{_lambda_.9} parent=35 // pred_fallthru
        _
    $region36: #{_lambda_.9} parent=5 // pred_fallthru
      _
  $region6: #{_lambda_.9} parent=0 // loop_footer
    %s12 = sadd.s32 1, %s8
  $region7: #{_lambda_.9} parent=0 // loop_footer_branch
    %7 = sbr.rel target = $region3
  $region8: #{_lambda_.9} parent=0 // loop_exit
    _

</llo_original>
